<compile_context>
chip_gen: v7x
topology: tpu7x:2x2x1
jax: 0.10.0
libtpu: 0.0.40
codegen_flags: <defaults>
</compile_context>

<pallas_src>
import jax
import jax.numpy as jnp
from jax.experimental import pallas as pl

# ----------------------------- model sizes ---------------------------------
B        = 2          # videos per batch (nn.LSTM "seq" axis, see TODO above)
T        = 8          # frames per video (nn.LSTM "batch" axis)
CH       = 3          # image channels
IMG      = 16         # spatial size
KH = KW  = 3          # conv kernel
NUM_FTRS = 64         # backbone feature width (fc.in_features)
EMBED    = 32         # embedding_dim
HID      = 32         # hidden_dim
TAGSET   = 8          # tagset_size

N_IMG = B * T                  # 16 images per forward
PIX   = IMG * IMG              # 256 pixels per image
KDIM  = KH * KW * CH           # 27 = im2col contraction size
KPAD  = 32                     # contraction padded for MXU friendliness

# Block-diagonal mean-pool matrix: feat[n] = mean_p conv[n*PIX + p]  (one MXU matmul)
_POOL = (jnp.repeat(jnp.eye(N_IMG, dtype=jnp.float32), PIX, axis=1)
         * (1.0 / PIX)).astype(jnp.bfloat16)                       # (N_IMG, N_IMG*PIX)


# --------------------------- fused forward kernel ---------------------------
def clstm_fused_kernel(patches_ref, wconv_ref, bconv_ref, pool_ref,
                       wfc_ref, bfc_ref, wih_ref, whh_ref, blstm_ref,
                       wtag_ref, btag_ref, o_ref):
    # ---- backbone: conv3x3 as a single im2col matmul + bias + ReLU ----
    conv = jnp.dot(patches_ref[...], wconv_ref[...],
                   preferred_element_type=jnp.float32)               # (N*PIX, F) f32
    conv = jnp.maximum(conv + bconv_ref[...], 0.0)

    # ---- global average pool: block-diagonal matmul on the MXU ----
    feat = jnp.dot(pool_ref[...], conv.astype(jnp.bfloat16),
                   preferred_element_type=jnp.float32)               # (N, F)

    # ---- fc: features -> embeddings, batched over all 16 images ----
    emb = (jnp.dot(feat.astype(jnp.bfloat16), wfc_ref[...],
                   preferred_element_type=jnp.float32) + bfc_ref[...])   # (N, E)

    # ---- LSTM: seq axis = video axis (len B), batch = T frames (nn.LSTM default) ----
    # Input-gate contributions for the whole sequence in one matmul; gate order i,f,g,o.
    gates_x = (jnp.dot(emb.astype(jnp.bfloat16), wih_ref[...],
                       preferred_element_type=jnp.float32) + blstm_ref[...])  # (N, 4H)

    lane  = jax.lax.broadcasted_iota(jnp.int32, (T, 4 * HID), 1)
    g_sel = (lane >= 2 * HID) & (lane < 3 * HID)      # tanh lanes (the "g" gate)

    h = jnp.zeros((T, HID), jnp.float32)              # h0 = c0 = 0 (nn.LSTM default)
    c = jnp.zeros((T, HID), jnp.float32)
    hs = []
    for s in range(B):                                # static unroll, seq len = 2
        gates = gates_x[s * T:(s + 1) * T, :]
        if s > 0:                                     # h0 == 0 -> skip first h-matmul
            gates = gates + jnp.dot(h.astype(jnp.bfloat16), whh_ref[...],
                                    preferred_element_type=jnp.float32)
        # Full-width activations: one sigmoid + one tanh pass over the 128-lane vreg.
        act = jnp.where(g_sel, jnp.tanh(gates), jax.nn.sigmoid(gates))
        i_g = act[:, 0 * HID:1 * HID]
        f_g = act[:, 1 * HID:2 * HID]
        g_g = act[:, 2 * HID:3 * HID]
        o_g = act[:, 3 * HID:4 * HID]
        c = f_g * c + i_g * g_g
        h = o_g * jnp.tanh(c)
        hs.append(h)

    # ---- hidden2tag, fused: one matmul, ONE contiguous (N, TAGSET) store ----
    h_all = jnp.concatenate(hs, axis=0)               # (N, HID), row index = b*T + t
    o_ref[...] = (jnp.dot(h_all.astype(jnp.bfloat16), wtag_ref[...],
                          preferred_element_type=jnp.float32) + btag_ref[...])


# ------------------------------- wrapper ------------------------------------
def _im2col(frames):
    """(B,T,C,H,W) f32 -> lane-dense (N*PIX, KPAD) bf16 patch matrix (one XLA fusion)."""
    x = frames.reshape(N_IMG, CH, IMG, IMG)
    x = jnp.transpose(x, (0, 2, 3, 1))                            # NCHW -> NHWC
    xp = jnp.pad(x, ((0, 0), (1, 1), (1, 1), (0, 0)))             # SAME pad for 3x3
    cols = [xp[:, kh:kh + IMG, kw:kw + IMG, :]
            for kh in range(KH) for kw in range(KW)]
    patches = jnp.concatenate(cols, axis=-1).reshape(N_IMG * PIX, KDIM)
    patches = jnp.pad(patches, ((0, 0), (0, KPAD - KDIM)))        # 27 -> 32
    return patches.astype(jnp.bfloat16)


@jax.jit
def clstm_forward(frames, params):
    # frames: (B, T, C, H, W) float32 (PyTorch NCHW per frame)
    patches = _im2col(frames)
    return pl.pallas_call(
        clstm_fused_kernel,
        out_shape=jax.ShapeDtypeStruct((N_IMG, TAGSET), jnp.float32),
    )(patches, params["w_conv"], params["b_conv"], _POOL,
      params["w_fc"], params["b_fc"],
      params["w_ih_t"], params["w_hh_t"], params["b_lstm"],
      params["w_tag_t"], params["b_tag"])


# ------------------------------- parameters ---------------------------------
def init_params(key):
    ks = jax.random.split(key, 10)
    s = 0.1
    # conv weights defined in HWIO (KH, KW, CH, F), flattened to im2col layout and
    # zero-padded along the contraction to KPAD; MXU operands stored in bf16.
    w_conv4 = jax.random.normal(ks[0], (KH, KW, CH, NUM_FTRS), dtype=jnp.float32) * s
    w_conv = jnp.pad(w_conv4.reshape(KDIM, NUM_FTRS), ((0, KPAD - KDIM), (0, 0)))
    return {
        "w_conv":  w_conv.astype(jnp.bfloat16),                                   # (KPAD, F)
        "b_conv":  (jax.random.normal(ks[1], (1, NUM_FTRS)) * s).astype(jnp.float32),
        "w_fc":    (jax.random.normal(ks[2], (NUM_FTRS, EMBED)) * s).astype(jnp.bfloat16),
        "b_fc":    (jax.random.normal(ks[3], (1, EMBED)) * s).astype(jnp.float32),
        # LSTM weights pre-transposed to (in_features, 4*HID); gate order i, f, g, o.
        "w_ih_t":  (jax.random.normal(ks[4], (EMBED, 4 * HID)) * s).astype(jnp.bfloat16),
        "w_hh_t":  (jax.random.normal(ks[5], (HID, 4 * HID)) * s).astype(jnp.bfloat16),
        "b_lstm":  (jax.random.normal(ks[6], (1, 4 * HID)) * s).astype(jnp.float32),  # b_ih + b_hh
        "w_tag_t": (jax.random.normal(ks[7], (HID, TAGSET)) * s).astype(jnp.bfloat16),
        "b_tag":   (jax.random.normal(ks[8], (1, TAGSET)) * s).astype(jnp.float32),
    }


if __name__ == "__main__":
    key = jax.random.PRNGKey(0)
    k_params, k_frames = jax.random.split(key)
    params = init_params(k_params)
    frames = jax.random.normal(k_frames, (B, T, CH, IMG, IMG), dtype=jnp.float32)

    out = clstm_forward(frames, params)
    out = jax.block_until_ready(out)
    assert out.shape == (B * T, TAGSET), out.shape
    assert bool(jnp.all(jnp.isfinite(out)))
    print("KERNEL_OK")
</pallas_src>

<mosaic_0001>
module attributes {stable_mosaic.version = 11 : i64} {
  func.func @clstm_fused_kernel(%arg0: memref<4096x32xbf16, #tpu.memory_space<vmem>>, %arg1: memref<32x64xbf16, #tpu.memory_space<vmem>>, %arg2: memref<1x64xf32, #tpu.memory_space<vmem>>, %arg3: memref<16x4096xbf16, #tpu.memory_space<vmem>>, %arg4: memref<64x32xbf16, #tpu.memory_space<vmem>>, %arg5: memref<1x32xf32, #tpu.memory_space<vmem>>, %arg6: memref<32x128xbf16, #tpu.memory_space<vmem>>, %arg7: memref<32x128xbf16, #tpu.memory_space<vmem>>, %arg8: memref<1x128xf32, #tpu.memory_space<vmem>>, %arg9: memref<32x8xbf16, #tpu.memory_space<vmem>>, %arg10: memref<1x8xf32, #tpu.memory_space<vmem>>, %arg11: memref<16x8xf32, #tpu.memory_space<vmem>>) attributes {dimension_semantics = [], scalar_prefetch = 0 : i64, scratch_operands = 0 : i64, tpu.core_type = #tpu.core_type<tc>} {
    %c0 = arith.constant 0 : index
    %c0_0 = arith.constant 0 : index
    %0 = vector.load %arg0[%c0, %c0_0] : memref<4096x32xbf16, #tpu.memory_space<vmem>>, vector<4096x32xbf16>
    %c0_1 = arith.constant 0 : index
    %c0_2 = arith.constant 0 : index
    %1 = vector.load %arg1[%c0_1, %c0_2] : memref<32x64xbf16, #tpu.memory_space<vmem>>, vector<32x64xbf16>
    %cst = arith.constant dense<0.000000e+00> : vector<4096x64xf32>
    %2 = tpu.matmul %0, %1, %cst {dimension_numbers = #tpu.dot_dimension_numbers<[1], [0], [0], [1], [0, 0, 1, 1], [], []>} : vector<4096x32xbf16>, vector<32x64xbf16>, vector<4096x64xf32> -> vector<4096x64xf32>
    %c0_3 = arith.constant 0 : index
    %c0_4 = arith.constant 0 : index
    %3 = vector.load %arg2[%c0_3, %c0_4] : memref<1x64xf32, #tpu.memory_space<vmem>>, vector<1x64xf32>
    %4 = vector.broadcast %3 : vector<1x64xf32> to vector<4096x64xf32>
    %5 = arith.addf %2, %4 : vector<4096x64xf32>
    %cst_5 = arith.constant 0.000000e+00 : f32
    %6 = vector.broadcast %cst_5 : f32 to vector<4096x64xf32>
    %7 = arith.maximumf %5, %6 : vector<4096x64xf32>
    %c0_6 = arith.constant 0 : index
    %c0_7 = arith.constant 0 : index
    %8 = vector.load %arg3[%c0_6, %c0_7] : memref<16x4096xbf16, #tpu.memory_space<vmem>>, vector<16x4096xbf16>
    %9 = arith.truncf %7 : vector<4096x64xf32> to vector<4096x64xbf16>
    %cst_8 = arith.constant dense<0.000000e+00> : vector<16x64xf32>
    %10 = tpu.matmul %8, %9, %cst_8 {dimension_numbers = #tpu.dot_dimension_numbers<[1], [0], [0], [1], [0, 0, 1, 1], [], []>} : vector<16x4096xbf16>, vector<4096x64xbf16>, vector<16x64xf32> -> vector<16x64xf32>
    %11 = arith.truncf %10 : vector<16x64xf32> to vector<16x64xbf16>
    %c0_9 = arith.constant 0 : index
    %c0_10 = arith.constant 0 : index
    %12 = vector.load %arg4[%c0_9, %c0_10] : memref<64x32xbf16, #tpu.memory_space<vmem>>, vector<64x32xbf16>
    %cst_11 = arith.constant dense<0.000000e+00> : vector<16x32xf32>
    %13 = tpu.matmul %11, %12, %cst_11 {dimension_numbers = #tpu.dot_dimension_numbers<[1], [0], [0], [1], [0, 0, 1, 1], [], []>} : vector<16x64xbf16>, vector<64x32xbf16>, vector<16x32xf32> -> vector<16x32xf32>
    %c0_12 = arith.constant 0 : index
    %c0_13 = arith.constant 0 : index
    %14 = vector.load %arg5[%c0_12, %c0_13] : memref<1x32xf32, #tpu.memory_space<vmem>>, vector<1x32xf32>
    %15 = vector.broadcast %14 : vector<1x32xf32> to vector<16x32xf32>
    %16 = arith.addf %13, %15 : vector<16x32xf32>
    %17 = arith.truncf %16 : vector<16x32xf32> to vector<16x32xbf16>
    %c0_14 = arith.constant 0 : index
    %c0_15 = arith.constant 0 : index
    %18 = vector.load %arg6[%c0_14, %c0_15] : memref<32x128xbf16, #tpu.memory_space<vmem>>, vector<32x128xbf16>
    %cst_16 = arith.constant dense<0.000000e+00> : vector<16x128xf32>
    %19 = tpu.matmul %17, %18, %cst_16 {dimension_numbers = #tpu.dot_dimension_numbers<[1], [0], [0], [1], [0, 0, 1, 1], [], []>} : vector<16x32xbf16>, vector<32x128xbf16>, vector<16x128xf32> -> vector<16x128xf32>
    %c0_17 = arith.constant 0 : index
    %c0_18 = arith.constant 0 : index
    %20 = vector.load %arg8[%c0_17, %c0_18] : memref<1x128xf32, #tpu.memory_space<vmem>>, vector<1x128xf32>
    %21 = vector.broadcast %20 : vector<1x128xf32> to vector<16x128xf32>
    %22 = arith.addf %19, %21 : vector<16x128xf32>
    %23 = tpu.iota {dimensions = array<i32: 1>} : vector<8x128xi32>
    %c64_i32 = arith.constant 64 : i32
    %24 = vector.broadcast %c64_i32 : i32 to vector<8x128xi32>
    %25 = arith.cmpi sge, %23, %24 : vector<8x128xi32>
    %c96_i32 = arith.constant 96 : i32
    %26 = vector.broadcast %c96_i32 : i32 to vector<8x128xi32>
    %27 = arith.cmpi slt, %23, %26 : vector<8x128xi32>
    %28 = arith.andi %25, %27 : vector<8x128xi1>
    %cst_19 = arith.constant 0.000000e+00 : f32
    %29 = vector.broadcast %cst_19 : f32 to vector<8x32xf32>
    %30 = vector.extract_strided_slice %22 {offsets = [0, 0], sizes = [8, 128], strides = [1, 1]} : vector<16x128xf32> to vector<8x128xf32>
    %31 = math.tanh %30 : vector<8x128xf32>
    %32 = arith.negf %30 : vector<8x128xf32>
    %33 = math.exp %32 : vector<8x128xf32>
    %cst_20 = arith.constant 1.000000e+00 : f32
    %34 = vector.broadcast %cst_20 : f32 to vector<8x128xf32>
    %35 = arith.addf %34, %33 : vector<8x128xf32>
    %36 = arith.divf %34, %35 : vector<8x128xf32>
    %37 = arith.select %28, %31, %36 : vector<8x128xi1>, vector<8x128xf32>
    %38 = vector.extract_strided_slice %37 {offsets = [0, 0], sizes = [8, 32], strides = [1, 1]} : vector<8x128xf32> to vector<8x32xf32>
    %39 = vector.extract_strided_slice %37 {offsets = [0, 32], sizes = [8, 32], strides = [1, 1]} : vector<8x128xf32> to vector<8x32xf32>
    %40 = vector.extract_strided_slice %37 {offsets = [0, 64], sizes = [8, 32], strides = [1, 1]} : vector<8x128xf32> to vector<8x32xf32>
    %41 = vector.extract_strided_slice %37 {offsets = [0, 96], sizes = [8, 32], strides = [1, 1]} : vector<8x128xf32> to vector<8x32xf32>
    %42 = arith.mulf %39, %29 : vector<8x32xf32>
    %43 = arith.mulf %38, %40 : vector<8x32xf32>
    %44 = arith.addf %42, %43 : vector<8x32xf32>
    %45 = math.tanh %44 : vector<8x32xf32>
    %46 = arith.mulf %41, %45 : vector<8x32xf32>
    %47 = vector.extract_strided_slice %22 {offsets = [8, 0], sizes = [8, 128], strides = [1, 1]} : vector<16x128xf32> to vector<8x128xf32>
    %48 = arith.truncf %46 : vector<8x32xf32> to vector<8x32xbf16>
    %c0_21 = arith.constant 0 : index
    %c0_22 = arith.constant 0 : index
    %49 = vector.load %arg7[%c0_21, %c0_22] : memref<32x128xbf16, #tpu.memory_space<vmem>>, vector<32x128xbf16>
    %cst_23 = arith.constant dense<0.000000e+00> : vector<8x128xf32>
    %50 = tpu.matmul %48, %49, %cst_23 {dimension_numbers = #tpu.dot_dimension_numbers<[1], [0], [0], [1], [0, 0, 1, 1], [], []>} : vector<8x32xbf16>, vector<32x128xbf16>, vector<8x128xf32> -> vector<8x128xf32>
    %51 = arith.addf %47, %50 : vector<8x128xf32>
    %52 = math.tanh %51 : vector<8x128xf32>
    %53 = arith.negf %51 : vector<8x128xf32>
    %54 = math.exp %53 : vector<8x128xf32>
    %cst_24 = arith.constant 1.000000e+00 : f32
    %55 = vector.broadcast %cst_24 : f32 to vector<8x128xf32>
    %56 = arith.addf %55, %54 : vector<8x128xf32>
    %57 = arith.divf %55, %56 : vector<8x128xf32>
    %58 = arith.select %28, %52, %57 : vector<8x128xi1>, vector<8x128xf32>
    %59 = vector.extract_strided_slice %58 {offsets = [0, 0], sizes = [8, 32], strides = [1, 1]} : vector<8x128xf32> to vector<8x32xf32>
    %60 = vector.extract_strided_slice %58 {offsets = [0, 32], sizes = [8, 32], strides = [1, 1]} : vector<8x128xf32> to vector<8x32xf32>
    %61 = vector.extract_strided_slice %58 {offsets = [0, 64], sizes = [8, 32], strides = [1, 1]} : vector<8x128xf32> to vector<8x32xf32>
    %62 = vector.extract_strided_slice %58 {offsets = [0, 96], sizes = [8, 32], strides = [1, 1]} : vector<8x128xf32> to vector<8x32xf32>
    %63 = arith.mulf %60, %44 : vector<8x32xf32>
    %64 = arith.mulf %59, %61 : vector<8x32xf32>
    %65 = arith.addf %63, %64 : vector<8x32xf32>
    %66 = math.tanh %65 : vector<8x32xf32>
    %67 = arith.mulf %62, %66 : vector<8x32xf32>
    %68 = tpu.concatenate %46, %67 in 0 : vector<8x32xf32>, vector<8x32xf32> -> vector<16x32xf32>
    %69 = arith.truncf %68 : vector<16x32xf32> to vector<16x32xbf16>
    %c0_25 = arith.constant 0 : index
    %c0_26 = arith.constant 0 : index
    %70 = vector.load %arg9[%c0_25, %c0_26] : memref<32x8xbf16, #tpu.memory_space<vmem>>, vector<32x8xbf16>
    %cst_27 = arith.constant dense<0.000000e+00> : vector<16x8xf32>
    %71 = tpu.matmul %69, %70, %cst_27 {dimension_numbers = #tpu.dot_dimension_numbers<[1], [0], [0], [1], [0, 0, 1, 1], [], []>} : vector<16x32xbf16>, vector<32x8xbf16>, vector<16x8xf32> -> vector<16x8xf32>
    %c0_28 = arith.constant 0 : index
    %c0_29 = arith.constant 0 : index
    %72 = vector.load %arg10[%c0_28, %c0_29] : memref<1x8xf32, #tpu.memory_space<vmem>>, vector<1x8xf32>
    %73 = vector.broadcast %72 : vector<1x8xf32> to vector<16x8xf32>
    %74 = arith.addf %71, %73 : vector<16x8xf32>
    %c0_30 = arith.constant 0 : index
    %c0_31 = arith.constant 0 : index
    %75 = vector.load %arg11[%c0_30, %c0_31] : memref<16x8xf32, #tpu.memory_space<vmem>>, vector<16x8xf32>
    tpu.vector_store %arg11[%c0_30, %c0_31], %74 {strides = array<i32>} : memref<16x8xf32, #tpu.memory_space<vmem>>, vector<16x8xf32>,
    return
  }
}

</mosaic_0001>

<llo_original>
// kernel: clstm_forward.1
$region0: #{clstm_forward.1}
  #allocation0 [shape = 'u32[]', space=smem, size = 0x4, offset = 0x4, fixed_abs, tag = 'smem constant byte address 0x4 - core index']
  #allocation1 [shape = 'u32[144,128]{1,0:T(1,128)}', space=vmem, size = 0x12000, scoped, tag = 'internal scratch']
  %s0 = inlined_call_operand.vmem [shape: bf16[4096,32], index: 0, kind: input, shape index: {}]
  %s1 = inlined_call_operand.vmem [shape: bf16[32,64], index: 1, kind: input, shape index: {}]
  %s2 = inlined_call_operand.vmem [shape: f32[1,64], index: 2, kind: input, shape index: {}]
  %s3 = inlined_call_operand.vmem [shape: bf16[16,4096], index: 3, kind: input, shape index: {}]
  %s4 = inlined_call_operand.vmem [shape: bf16[64,32], index: 4, kind: input, shape index: {}]
  %s5 = inlined_call_operand.vmem [shape: f32[1,32], index: 5, kind: input, shape index: {}]
  %s6 = inlined_call_operand.vmem [shape: bf16[32,128], index: 6, kind: input, shape index: {}]
  %s7 = inlined_call_operand.vmem [shape: bf16[32,128], index: 7, kind: input, shape index: {}]
  %s8 = inlined_call_operand.vmem [shape: f32[1,128], index: 8, kind: input, shape index: {}]
  %s9 = inlined_call_operand.vmem [shape: bf16[32,8], index: 9, kind: input, shape index: {}]
  %s10 = inlined_call_operand.vmem [shape: f32[1,8], index: 10, kind: input, shape index: {}]
  %s11 = inlined_call_operand.vmem [shape: f32[16,8], index: 11, kind: output, shape index: {}]
  %s12 = sld [smem:[#allocation0]]
  $region54: #{clstm_forward.1} parent=0
    _
  %s14 = ssub.s32 1, %s12
  %s15 = scalar_select 0, %s14, %s12
  // Predicated region
  $region2: #{clstm_forward.1} parent=0 // pred_check
    _
  $region3: #{clstm_forward.1} parent=0 // pred_check_branch
    %17 = sbr.rel (0) target = $region5
  $region4: #{clstm_forward.1} parent=0 // pred_region
    _
  $region5: #{clstm_forward.1} parent=0 // pred_fallthru
    _
  // Predicated region
  $region6: #{clstm_forward.1} parent=0 // pred_check
    _
  $region7: #{clstm_forward.1} parent=0 // pred_check_branch
    %19 = sbr.rel (0) target = $region9
  $region8: #{clstm_forward.1} parent=0 // pred_region
    _
  $region9: #{clstm_forward.1} parent=0 // pred_fallthru
    _
  // Predicated region
  $region10: #{clstm_forward.1} parent=0 // pred_check
    _
  $region11: #{clstm_forward.1} parent=0 // pred_check_branch
    %21 = sbr.rel (0) target = $region13
  $region12: #{clstm_forward.1} parent=0 // pred_region
    _
  $region13: #{clstm_forward.1} parent=0 // pred_fallthru
    _
  // Predicated region
  $region14: #{clstm_forward.1} parent=0 // pred_check
    _
  $region15: #{clstm_forward.1} parent=0 // pred_check_branch
    %23 = sbr.rel (0) target = $region17
  $region16: #{clstm_forward.1} parent=0 // pred_region
    _
  $region17: #{clstm_forward.1} parent=0 // pred_fallthru
    _
  // Predicated region
  $region18: #{clstm_forward.1} parent=0 // pred_check
    _
  $region19: #{clstm_forward.1} parent=0 // pred_check_branch
    %25 = sbr.rel (0) target = $region21
  $region20: #{clstm_forward.1} parent=0 // pred_region
    _
  $region21: #{clstm_forward.1} parent=0 // pred_fallthru
    _
  // Predicated region
  $region22: #{clstm_forward.1} parent=0 // pred_check
    _
  $region23: #{clstm_forward.1} parent=0 // pred_check_branch
    %27 = sbr.rel (0) target = $region25
  $region24: #{clstm_forward.1} parent=0 // pred_region
    _
  $region25: #{clstm_forward.1} parent=0 // pred_fallthru
    _
  // Predicated region
  $region26: #{clstm_forward.1} parent=0 // pred_check
    _
  $region27: #{clstm_forward.1} parent=0 // pred_check_branch
    %29 = sbr.rel (0) target = $region29
  $region28: #{clstm_forward.1} parent=0 // pred_region
    _
  $region29: #{clstm_forward.1} parent=0 // pred_fallthru
    _
  // Predicated region
  $region30: #{clstm_forward.1} parent=0 // pred_check
    _
  $region31: #{clstm_forward.1} parent=0 // pred_check_branch
    %31 = sbr.rel (0) target = $region33
  $region32: #{clstm_forward.1} parent=0 // pred_region
    _
  $region33: #{clstm_forward.1} parent=0 // pred_fallthru
    _
  // Predicated region
  $region34: #{clstm_forward.1} parent=0 // pred_check
    _
  $region35: #{clstm_forward.1} parent=0 // pred_check_branch
    %33 = sbr.rel (0) target = $region37
  $region36: #{clstm_forward.1} parent=0 // pred_region
    _
  $region37: #{clstm_forward.1} parent=0 // pred_fallthru
    _
  // Predicated region
  $region38: #{clstm_forward.1} parent=0 // pred_check
    _
  $region39: #{clstm_forward.1} parent=0 // pred_check_branch
    %35 = sbr.rel (0) target = $region41
  $region40: #{clstm_forward.1} parent=0 // pred_region
    _
  $region41: #{clstm_forward.1} parent=0 // pred_fallthru
    _
  // Predicated region
  $region42: #{clstm_forward.1} parent=0 // pred_check
    _
  $region43: #{clstm_forward.1} parent=0 // pred_check_branch
    %37 = sbr.rel (0) target = $region45
  $region44: #{clstm_forward.1} parent=0 // pred_region
    _
  $region45: #{clstm_forward.1} parent=0 // pred_fallthru
    _
  %v39 = vld [vmem:[%s0] sm:$0xf]
  %v40 = vld [vmem:[%s0 + $0x4] sm:$0xf]
  %v41 = vld [vmem:[%s0 + $0x8] sm:$0xf]
  %v42 = vld [vmem:[%s0 + $0xc] sm:$0xf]
  %v43 = vld [vmem:[%s0 + $0x10] sm:$0xf]
  %v44 = vld [vmem:[%s0 + $0x14] sm:$0xf]
  %v45 = vld [vmem:[%s0 + $0x18] sm:$0xf]
  %v46 = vld [vmem:[%s0 + $0x1c] sm:$0xf]
  %v47 = vld [vmem:[%s0 + $0x20] sm:$0xf]
  %v48 = vld [vmem:[%s0 + $0x24] sm:$0xf]
  %v49 = vld [vmem:[%s0 + $0x28] sm:$0xf]
  %v50 = vld [vmem:[%s0 + $0x2c] sm:$0xf]
  %v51 = vld [vmem:[%s0 + $0x30] sm:$0xf]
  %v52 = vld [vmem:[%s0 + $0x34] sm:$0xf]
  %v53 = vld [vmem:[%s0 + $0x38] sm:$0xf]
  %v54 = vld [vmem:[%s0 + $0x3c] sm:$0xf]
  %v55 = vld [vmem:[%s0 + $0x40] sm:$0xf]
  %v56 = vld [vmem:[%s0 + $0x44] sm:$0xf]
  %v57 = vld [vmem:[%s0 + $0x48] sm:$0xf]
  %v58 = vld [vmem:[%s0 + $0x4c] sm:$0xf]
  %v59 = vld [vmem:[%s0 + $0x50] sm:$0xf]
  %v60 = vld [vmem:[%s0 + $0x54] sm:$0xf]
  %v61 = vld [vmem:[%s0 + $0x58] sm:$0xf]
  %v62 = vld [vmem:[%s0 + $0x5c] sm:$0xf]
  %v63 = vld [vmem:[%s0 + $0x60] sm:$0xf]
  %v64 = vld [vmem:[%s0 + $0x64] sm:$0xf]
  %v65 = vld [vmem:[%s0 + $0x68] sm:$0xf]
  %v66 = vld [vmem:[%s0 + $0x6c] sm:$0xf]
  %v67 = vld [vmem:[%s0 + $0x70] sm:$0xf]
  %v68 = vld [vmem:[%s0 + $0x74] sm:$0xf]
  %v69 = vld [vmem:[%s0 + $0x78] sm:$0xf]
  %v70 = vld [vmem:[%s0 + $0x7c] sm:$0xf]
  %v71 = vld [vmem:[%s0 + $0x80] sm:$0xf]
  %v72 = vld [vmem:[%s0 + $0x84] sm:$0xf]
  %v73 = vld [vmem:[%s0 + $0x88] sm:$0xf]
  %v74 = vld [vmem:[%s0 + $0x8c] sm:$0xf]
  %v75 = vld [vmem:[%s0 + $0x90] sm:$0xf]
  %v76 = vld [vmem:[%s0 + $0x94] sm:$0xf]
  %v77 = vld [vmem:[%s0 + $0x98] sm:$0xf]
  %v78 = vld [vmem:[%s0 + $0x9c] sm:$0xf]
  %v79 = vld [vmem:[%s0 + $0xa0] sm:$0xf]
  %v80 = vld [vmem:[%s0 + $0xa4] sm:$0xf]
  %v81 = vld [vmem:[%s0 + $0xa8] sm:$0xf]
  %v82 = vld [vmem:[%s0 + $0xac] sm:$0xf]
  %v83 = vld [vmem:[%s0 + $0xb0] sm:$0xf]
  %v84 = vld [vmem:[%s0 + $0xb4] sm:$0xf]
  %v85 = vld [vmem:[%s0 + $0xb8] sm:$0xf]
  %v86 = vld [vmem:[%s0 + $0xbc] sm:$0xf]
  %v87 = vld [vmem:[%s0 + $0xc0] sm:$0xf]
  %v88 = vld [vmem:[%s0 + $0xc4] sm:$0xf]
  %v89 = vld [vmem:[%s0 + $0xc8] sm:$0xf]
  %v90 = vld [vmem:[%s0 + $0xcc] sm:$0xf]
  %v91 = vld [vmem:[%s0 + $0xd0] sm:$0xf]
  %v92 = vld [vmem:[%s0 + $0xd4] sm:$0xf]
  %v93 = vld [vmem:[%s0 + $0xd8] sm:$0xf]
  %v94 = vld [vmem:[%s0 + $0xdc] sm:$0xf]
  %v95 = vld [vmem:[%s0 + $0xe0] sm:$0xf]
  %v96 = vld [vmem:[%s0 + $0xe4] sm:$0xf]
  %v97 = vld [vmem:[%s0 + $0xe8] sm:$0xf]
  %v98 = vld [vmem:[%s0 + $0xec] sm:$0xf]
  %v99 = vld [vmem:[%s0 + $0xf0] sm:$0xf]
  %v100 = vld [vmem:[%s0 + $0xf4] sm:$0xf]
  %v101 = vld [vmem:[%s0 + $0xf8] sm:$0xf]
  %v102 = vld [vmem:[%s0 + $0xfc] sm:$0xf]
  %v103 = vld [vmem:[%s0 + $0x100] sm:$0xf]
  %v104 = vld [vmem:[%s0 + $0x104] sm:$0xf]
  %v105 = vld [vmem:[%s0 + $0x108] sm:$0xf]
  %v106 = vld [vmem:[%s0 + $0x10c] sm:$0xf]
  %v107 = vld [vmem:[%s0 + $0x110] sm:$0xf]
  %v108 = vld [vmem:[%s0 + $0x114] sm:$0xf]
  %v109 = vld [vmem:[%s0 + $0x118] sm:$0xf]
  %v110 = vld [vmem:[%s0 + $0x11c] sm:$0xf]
  %v111 = vld [vmem:[%s0 + $0x120] sm:$0xf]
  %v112 = vld [vmem:[%s0 + $0x124] sm:$0xf]
  %v113 = vld [vmem:[%s0 + $0x128] sm:$0xf]
  %v114 = vld [vmem:[%s0 + $0x12c] sm:$0xf]
  %v115 = vld [vmem:[%s0 + $0x130] sm:$0xf]
  %v116 = vld [vmem:[%s0 + $0x134] sm:$0xf]
  %v117 = vld [vmem:[%s0 + $0x138] sm:$0xf]
  %v118 = vld [vmem:[%s0 + $0x13c] sm:$0xf]
  %v119 = vld [vmem:[%s0 + $0x140] sm:$0xf]
  %v120 = vld [vmem:[%s0 + $0x144] sm:$0xf]
  %v121 = vld [vmem:[%s0 + $0x148] sm:$0xf]
  %v122 = vld [vmem:[%s0 + $0x14c] sm:$0xf]
  %v123 = vld [vmem:[%s0 + $0x150] sm:$0xf]
  %v124 = vld [vmem:[%s0 + $0x154] sm:$0xf]
  %v125 = vld [vmem:[%s0 + $0x158] sm:$0xf]
  %v126 = vld [vmem:[%s0 + $0x15c] sm:$0xf]
  %v127 = vld [vmem:[%s0 + $0x160] sm:$0xf]
  %v128 = vld [vmem:[%s0 + $0x164] sm:$0xf]
  %v129 = vld [vmem:[%s0 + $0x168] sm:$0xf]
  %v130 = vld [vmem:[%s0 + $0x16c] sm:$0xf]
  %v131 = vld [vmem:[%s0 + $0x170] sm:$0xf]
  %v132 = vld [vmem:[%s0 + $0x174] sm:$0xf]
  %v133 = vld [vmem:[%s0 + $0x178] sm:$0xf]
  %v134 = vld [vmem:[%s0 + $0x17c] sm:$0xf]
  %v135 = vld [vmem:[%s0 + $0x180] sm:$0xf]
  %v136 = vld [vmem:[%s0 + $0x184] sm:$0xf]
  %v137 = vld [vmem:[%s0 + $0x188] sm:$0xf]
  %v138 = vld [vmem:[%s0 + $0x18c] sm:$0xf]
  %v139 = vld [vmem:[%s0 + $0x190] sm:$0xf]
  %v140 = vld [vmem:[%s0 + $0x194] sm:$0xf]
  %v141 = vld [vmem:[%s0 + $0x198] sm:$0xf]
  %v142 = vld [vmem:[%s0 + $0x19c] sm:$0xf]
  %v143 = vld [vmem:[%s0 + $0x1a0] sm:$0xf]
  %v144 = vld [vmem:[%s0 + $0x1a4] sm:$0xf]
  %v145 = vld [vmem:[%s0 + $0x1a8] sm:$0xf]
  %v146 = vld [vmem:[%s0 + $0x1ac] sm:$0xf]
  %v147 = vld [vmem:[%s0 + $0x1b0] sm:$0xf]
  %v148 = vld [vmem:[%s0 + $0x1b4] sm:$0xf]
  %v149 = vld [vmem:[%s0 + $0x1b8] sm:$0xf]
  %v150 = vld [vmem:[%s0 + $0x1bc] sm:$0xf]
  %v151 = vld [vmem:[%s0 + $0x1c0] sm:$0xf]
  %v152 = vld [vmem:[%s0 + $0x1c4] sm:$0xf]
  %v153 = vld [vmem:[%s0 + $0x1c8] sm:$0xf]
  %v154 = vld [vmem:[%s0 + $0x1cc] sm:$0xf]
  %v155 = vld [vmem:[%s0 + $0x1d0] sm:$0xf]
  %v156 = vld [vmem:[%s0 + $0x1d4] sm:$0xf]
  %v157 = vld [vmem:[%s0 + $0x1d8] sm:$0xf]
  %v158 = vld [vmem:[%s0 + $0x1dc] sm:$0xf]
  %v159 = vld [vmem:[%s0 + $0x1e0] sm:$0xf]
  %v160 = vld [vmem:[%s0 + $0x1e4] sm:$0xf]
  %v161 = vld [vmem:[%s0 + $0x1e8] sm:$0xf]
  %v162 = vld [vmem:[%s0 + $0x1ec] sm:$0xf]
  %v163 = vld [vmem:[%s0 + $0x1f0] sm:$0xf]
  %v164 = vld [vmem:[%s0 + $0x1f4] sm:$0xf]
  %v165 = vld [vmem:[%s0 + $0x1f8] sm:$0xf]
  %v166 = vld [vmem:[%s0 + $0x1fc] sm:$0xf]
  %v167 = vld [vmem:[%s0 + $0x200] sm:$0xf]
  %v168 = vld [vmem:[%s0 + $0x204] sm:$0xf]
  %v169 = vld [vmem:[%s0 + $0x208] sm:$0xf]
  %v170 = vld [vmem:[%s0 + $0x20c] sm:$0xf]
  %v171 = vld [vmem:[%s0 + $0x210] sm:$0xf]
  %v172 = vld [vmem:[%s0 + $0x214] sm:$0xf]
  %v173 = vld [vmem:[%s0 + $0x218] sm:$0xf]
  %v174 = vld [vmem:[%s0 + $0x21c] sm:$0xf]
  %v175 = vld [vmem:[%s0 + $0x220] sm:$0xf]
  %v176 = vld [vmem:[%s0 + $0x224] sm:$0xf]
  %v177 = vld [vmem:[%s0 + $0x228] sm:$0xf]
  %v178 = vld [vmem:[%s0 + $0x22c] sm:$0xf]
  %v179 = vld [vmem:[%s0 + $0x230] sm:$0xf]
  %v180 = vld [vmem:[%s0 + $0x234] sm:$0xf]
  %v181 = vld [vmem:[%s0 + $0x238] sm:$0xf]
  %v182 = vld [vmem:[%s0 + $0x23c] sm:$0xf]
  %v183 = vld [vmem:[%s0 + $0x240] sm:$0xf]
  %v184 = vld [vmem:[%s0 + $0x244] sm:$0xf]
  %v185 = vld [vmem:[%s0 + $0x248] sm:$0xf]
  %v186 = vld [vmem:[%s0 + $0x24c] sm:$0xf]
  %v187 = vld [vmem:[%s0 + $0x250] sm:$0xf]
  %v188 = vld [vmem:[%s0 + $0x254] sm:$0xf]
  %v189 = vld [vmem:[%s0 + $0x258] sm:$0xf]
  %v190 = vld [vmem:[%s0 + $0x25c] sm:$0xf]
  %v191 = vld [vmem:[%s0 + $0x260] sm:$0xf]
  %v192 = vld [vmem:[%s0 + $0x264] sm:$0xf]
  %v193 = vld [vmem:[%s0 + $0x268] sm:$0xf]
  %v194 = vld [vmem:[%s0 + $0x26c] sm:$0xf]
  %v195 = vld [vmem:[%s0 + $0x270] sm:$0xf]
  %v196 = vld [vmem:[%s0 + $0x274] sm:$0xf]
  %v197 = vld [vmem:[%s0 + $0x278] sm:$0xf]
  %v198 = vld [vmem:[%s0 + $0x27c] sm:$0xf]
  %v199 = vld [vmem:[%s0 + $0x280] sm:$0xf]
  %v200 = vld [vmem:[%s0 + $0x284] sm:$0xf]
  %v201 = vld [vmem:[%s0 + $0x288] sm:$0xf]
  %v202 = vld [vmem:[%s0 + $0x28c] sm:$0xf]
  %v203 = vld [vmem:[%s0 + $0x290] sm:$0xf]
  %v204 = vld [vmem:[%s0 + $0x294] sm:$0xf]
  %v205 = vld [vmem:[%s0 + $0x298] sm:$0xf]
  %v206 = vld [vmem:[%s0 + $0x29c] sm:$0xf]
  %v207 = vld [vmem:[%s0 + $0x2a0] sm:$0xf]
  %v208 = vld [vmem:[%s0 + $0x2a4] sm:$0xf]
  %v209 = vld [vmem:[%s0 + $0x2a8] sm:$0xf]
  %v210 = vld [vmem:[%s0 + $0x2ac] sm:$0xf]
  %v211 = vld [vmem:[%s0 + $0x2b0] sm:$0xf]
  %v212 = vld [vmem:[%s0 + $0x2b4] sm:$0xf]
  %v213 = vld [vmem:[%s0 + $0x2b8] sm:$0xf]
  %v214 = vld [vmem:[%s0 + $0x2bc] sm:$0xf]
  %v215 = vld [vmem:[%s0 + $0x2c0] sm:$0xf]
  %v216 = vld [vmem:[%s0 + $0x2c4] sm:$0xf]
  %v217 = vld [vmem:[%s0 + $0x2c8] sm:$0xf]
  %v218 = vld [vmem:[%s0 + $0x2cc] sm:$0xf]
  %v219 = vld [vmem:[%s0 + $0x2d0] sm:$0xf]
  %v220 = vld [vmem:[%s0 + $0x2d4] sm:$0xf]
  %v221 = vld [vmem:[%s0 + $0x2d8] sm:$0xf]
  %v222 = vld [vmem:[%s0 + $0x2dc] sm:$0xf]
  %v223 = vld [vmem:[%s0 + $0x2e0] sm:$0xf]
  %v224 = vld [vmem:[%s0 + $0x2e4] sm:$0xf]
  %v225 = vld [vmem:[%s0 + $0x2e8] sm:$0xf]
  %v226 = vld [vmem:[%s0 + $0x2ec] sm:$0xf]
  %v227 = vld [vmem:[%s0 + $0x2f0] sm:$0xf]
  %v228 = vld [vmem:[%s0 + $0x2f4] sm:$0xf]
  %v229 = vld [vmem:[%s0 + $0x2f8] sm:$0xf]
  %v230 = vld [vmem:[%s0 + $0x2fc] sm:$0xf]
  %v231 = vld [vmem:[%s0 + $0x300] sm:$0xf]
  %v232 = vld [vmem:[%s0 + $0x304] sm:$0xf]
  %v233 = vld [vmem:[%s0 + $0x308] sm:$0xf]
  %v234 = vld [vmem:[%s0 + $0x30c] sm:$0xf]
  %v235 = vld [vmem:[%s0 + $0x310] sm:$0xf]
  %v236 = vld [vmem:[%s0 + $0x314] sm:$0xf]
  %v237 = vld [vmem:[%s0 + $0x318] sm:$0xf]
  %v238 = vld [vmem:[%s0 + $0x31c] sm:$0xf]
  %v239 = vld [vmem:[%s0 + $0x320] sm:$0xf]
  %v240 = vld [vmem:[%s0 + $0x324] sm:$0xf]
  %v241 = vld [vmem:[%s0 + $0x328] sm:$0xf]
  %v242 = vld [vmem:[%s0 + $0x32c] sm:$0xf]
  %v243 = vld [vmem:[%s0 + $0x330] sm:$0xf]
  %v244 = vld [vmem:[%s0 + $0x334] sm:$0xf]
  %v245 = vld [vmem:[%s0 + $0x338] sm:$0xf]
  %v246 = vld [vmem:[%s0 + $0x33c] sm:$0xf]
  %v247 = vld [vmem:[%s0 + $0x340] sm:$0xf]
  %v248 = vld [vmem:[%s0 + $0x344] sm:$0xf]
  %v249 = vld [vmem:[%s0 + $0x348] sm:$0xf]
  %v250 = vld [vmem:[%s0 + $0x34c] sm:$0xf]
  %v251 = vld [vmem:[%s0 + $0x350] sm:$0xf]
  %v252 = vld [vmem:[%s0 + $0x354] sm:$0xf]
  %v253 = vld [vmem:[%s0 + $0x358] sm:$0xf]
  %v254 = vld [vmem:[%s0 + $0x35c] sm:$0xf]
  %v255 = vld [vmem:[%s0 + $0x360] sm:$0xf]
  %v256 = vld [vmem:[%s0 + $0x364] sm:$0xf]
  %v257 = vld [vmem:[%s0 + $0x368] sm:$0xf]
  %v258 = vld [vmem:[%s0 + $0x36c] sm:$0xf]
  %v259 = vld [vmem:[%s0 + $0x370] sm:$0xf]
  %v260 = vld [vmem:[%s0 + $0x374] sm:$0xf]
  %v261 = vld [vmem:[%s0 + $0x378] sm:$0xf]
  %v262 = vld [vmem:[%s0 + $0x37c] sm:$0xf]
  %v263 = vld [vmem:[%s0 + $0x380] sm:$0xf]
  %v264 = vld [vmem:[%s0 + $0x384] sm:$0xf]
  %v265 = vld [vmem:[%s0 + $0x388] sm:$0xf]
  %v266 = vld [vmem:[%s0 + $0x38c] sm:$0xf]
  %v267 = vld [vmem:[%s0 + $0x390] sm:$0xf]
  %v268 = vld [vmem:[%s0 + $0x394] sm:$0xf]
  %v269 = vld [vmem:[%s0 + $0x398] sm:$0xf]
  %v270 = vld [vmem:[%s0 + $0x39c] sm:$0xf]
  %v271 = vld [vmem:[%s0 + $0x3a0] sm:$0xf]
  %v272 = vld [vmem:[%s0 + $0x3a4] sm:$0xf]
  %v273 = vld [vmem:[%s0 + $0x3a8] sm:$0xf]
  %v274 = vld [vmem:[%s0 + $0x3ac] sm:$0xf]
  %v275 = vld [vmem:[%s0 + $0x3b0] sm:$0xf]
  %v276 = vld [vmem:[%s0 + $0x3b4] sm:$0xf]
  %v277 = vld [vmem:[%s0 + $0x3b8] sm:$0xf]
  %v278 = vld [vmem:[%s0 + $0x3bc] sm:$0xf]
  %v279 = vld [vmem:[%s0 + $0x3c0] sm:$0xf]
  %v280 = vld [vmem:[%s0 + $0x3c4] sm:$0xf]
  %v281 = vld [vmem:[%s0 + $0x3c8] sm:$0xf]
  %v282 = vld [vmem:[%s0 + $0x3cc] sm:$0xf]
  %v283 = vld [vmem:[%s0 + $0x3d0] sm:$0xf]
  %v284 = vld [vmem:[%s0 + $0x3d4] sm:$0xf]
  %v285 = vld [vmem:[%s0 + $0x3d8] sm:$0xf]
  %v286 = vld [vmem:[%s0 + $0x3dc] sm:$0xf]
  %v287 = vld [vmem:[%s0 + $0x3e0] sm:$0xf]
  %v288 = vld [vmem:[%s0 + $0x3e4] sm:$0xf]
  %v289 = vld [vmem:[%s0 + $0x3e8] sm:$0xf]
  %v290 = vld [vmem:[%s0 + $0x3ec] sm:$0xf]
  %v291 = vld [vmem:[%s0 + $0x3f0] sm:$0xf]
  %v292 = vld [vmem:[%s0 + $0x3f4] sm:$0xf]
  %v293 = vld [vmem:[%s0 + $0x3f8] sm:$0xf]
  %v294 = vld [vmem:[%s0 + $0x3fc] sm:$0xf]
  %v295 = vld [vmem:[%s0 + $0x400] sm:$0xf]
  %v296 = vld [vmem:[%s0 + $0x404] sm:$0xf]
  %v297 = vld [vmem:[%s0 + $0x408] sm:$0xf]
  %v298 = vld [vmem:[%s0 + $0x40c] sm:$0xf]
  %v299 = vld [vmem:[%s0 + $0x410] sm:$0xf]
  %v300 = vld [vmem:[%s0 + $0x414] sm:$0xf]
  %v301 = vld [vmem:[%s0 + $0x418] sm:$0xf]
  %v302 = vld [vmem:[%s0 + $0x41c] sm:$0xf]
  %v303 = vld [vmem:[%s0 + $0x420] sm:$0xf]
  %v304 = vld [vmem:[%s0 + $0x424] sm:$0xf]
  %v305 = vld [vmem:[%s0 + $0x428] sm:$0xf]
  %v306 = vld [vmem:[%s0 + $0x42c] sm:$0xf]
  %v307 = vld [vmem:[%s0 + $0x430] sm:$0xf]
  %v308 = vld [vmem:[%s0 + $0x434] sm:$0xf]
  %v309 = vld [vmem:[%s0 + $0x438] sm:$0xf]
  %v310 = vld [vmem:[%s0 + $0x43c] sm:$0xf]
  %v311 = vld [vmem:[%s0 + $0x440] sm:$0xf]
  %v312 = vld [vmem:[%s0 + $0x444] sm:$0xf]
  %v313 = vld [vmem:[%s0 + $0x448] sm:$0xf]
  %v314 = vld [vmem:[%s0 + $0x44c] sm:$0xf]
  %v315 = vld [vmem:[%s0 + $0x450] sm:$0xf]
  %v316 = vld [vmem:[%s0 + $0x454] sm:$0xf]
  %v317 = vld [vmem:[%s0 + $0x458] sm:$0xf]
  %v318 = vld [vmem:[%s0 + $0x45c] sm:$0xf]
  %v319 = vld [vmem:[%s0 + $0x460] sm:$0xf]
  %v320 = vld [vmem:[%s0 + $0x464] sm:$0xf]
  %v321 = vld [vmem:[%s0 + $0x468] sm:$0xf]
  %v322 = vld [vmem:[%s0 + $0x46c] sm:$0xf]
  %v323 = vld [vmem:[%s0 + $0x470] sm:$0xf]
  %v324 = vld [vmem:[%s0 + $0x474] sm:$0xf]
  %v325 = vld [vmem:[%s0 + $0x478] sm:$0xf]
  %v326 = vld [vmem:[%s0 + $0x47c] sm:$0xf]
  %v327 = vld [vmem:[%s0 + $0x480] sm:$0xf]
  %v328 = vld [vmem:[%s0 + $0x484] sm:$0xf]
  %v329 = vld [vmem:[%s0 + $0x488] sm:$0xf]
  %v330 = vld [vmem:[%s0 + $0x48c] sm:$0xf]
  %v331 = vld [vmem:[%s0 + $0x490] sm:$0xf]
  %v332 = vld [vmem:[%s0 + $0x494] sm:$0xf]
  %v333 = vld [vmem:[%s0 + $0x498] sm:$0xf]
  %v334 = vld [vmem:[%s0 + $0x49c] sm:$0xf]
  %v335 = vld [vmem:[%s0 + $0x4a0] sm:$0xf]
  %v336 = vld [vmem:[%s0 + $0x4a4] sm:$0xf]
  %v337 = vld [vmem:[%s0 + $0x4a8] sm:$0xf]
  %v338 = vld [vmem:[%s0 + $0x4ac] sm:$0xf]
  %v339 = vld [vmem:[%s0 + $0x4b0] sm:$0xf]
  %v340 = vld [vmem:[%s0 + $0x4b4] sm:$0xf]
  %v341 = vld [vmem:[%s0 + $0x4b8] sm:$0xf]
  %v342 = vld [vmem:[%s0 + $0x4bc] sm:$0xf]
  %v343 = vld [vmem:[%s0 + $0x4c0] sm:$0xf]
  %v344 = vld [vmem:[%s0 + $0x4c4] sm:$0xf]
  %v345 = vld [vmem:[%s0 + $0x4c8] sm:$0xf]
  %v346 = vld [vmem:[%s0 + $0x4cc] sm:$0xf]
  %v347 = vld [vmem:[%s0 + $0x4d0] sm:$0xf]
  %v348 = vld [vmem:[%s0 + $0x4d4] sm:$0xf]
  %v349 = vld [vmem:[%s0 + $0x4d8] sm:$0xf]
  %v350 = vld [vmem:[%s0 + $0x4dc] sm:$0xf]
  %v351 = vld [vmem:[%s0 + $0x4e0] sm:$0xf]
  %v352 = vld [vmem:[%s0 + $0x4e4] sm:$0xf]
  %v353 = vld [vmem:[%s0 + $0x4e8] sm:$0xf]
  %v354 = vld [vmem:[%s0 + $0x4ec] sm:$0xf]
  %v355 = vld [vmem:[%s0 + $0x4f0] sm:$0xf]
  %v356 = vld [vmem:[%s0 + $0x4f4] sm:$0xf]
  %v357 = vld [vmem:[%s0 + $0x4f8] sm:$0xf]
  %v358 = vld [vmem:[%s0 + $0x4fc] sm:$0xf]
  %v359 = vld [vmem:[%s0 + $0x500] sm:$0xf]
  %v360 = vld [vmem:[%s0 + $0x504] sm:$0xf]
  %v361 = vld [vmem:[%s0 + $0x508] sm:$0xf]
  %v362 = vld [vmem:[%s0 + $0x50c] sm:$0xf]
  %v363 = vld [vmem:[%s0 + $0x510] sm:$0xf]
  %v364 = vld [vmem:[%s0 + $0x514] sm:$0xf]
  %v365 = vld [vmem:[%s0 + $0x518] sm:$0xf]
  %v366 = vld [vmem:[%s0 + $0x51c] sm:$0xf]
  %v367 = vld [vmem:[%s0 + $0x520] sm:$0xf]
  %v368 = vld [vmem:[%s0 + $0x524] sm:$0xf]
  %v369 = vld [vmem:[%s0 + $0x528] sm:$0xf]
  %v370 = vld [vmem:[%s0 + $0x52c] sm:$0xf]
  %v371 = vld [vmem:[%s0 + $0x530] sm:$0xf]
  %v372 = vld [vmem:[%s0 + $0x534] sm:$0xf]
  %v373 = vld [vmem:[%s0 + $0x538] sm:$0xf]
  %v374 = vld [vmem:[%s0 + $0x53c] sm:$0xf]
  %v375 = vld [vmem:[%s0 + $0x540] sm:$0xf]
  %v376 = vld [vmem:[%s0 + $0x544] sm:$0xf]
  %v377 = vld [vmem:[%s0 + $0x548] sm:$0xf]
  %v378 = vld [vmem:[%s0 + $0x54c] sm:$0xf]
  %v379 = vld [vmem:[%s0 + $0x550] sm:$0xf]
  %v380 = vld [vmem:[%s0 + $0x554] sm:$0xf]
  %v381 = vld [vmem:[%s0 + $0x558] sm:$0xf]
  %v382 = vld [vmem:[%s0 + $0x55c] sm:$0xf]
  %v383 = vld [vmem:[%s0 + $0x560] sm:$0xf]
  %v384 = vld [vmem:[%s0 + $0x564] sm:$0xf]
  %v385 = vld [vmem:[%s0 + $0x568] sm:$0xf]
  %v386 = vld [vmem:[%s0 + $0x56c] sm:$0xf]
  %v387 = vld [vmem:[%s0 + $0x570] sm:$0xf]
  %v388 = vld [vmem:[%s0 + $0x574] sm:$0xf]
  %v389 = vld [vmem:[%s0 + $0x578] sm:$0xf]
  %v390 = vld [vmem:[%s0 + $0x57c] sm:$0xf]
  %v391 = vld [vmem:[%s0 + $0x580] sm:$0xf]
  %v392 = vld [vmem:[%s0 + $0x584] sm:$0xf]
  %v393 = vld [vmem:[%s0 + $0x588] sm:$0xf]
  %v394 = vld [vmem:[%s0 + $0x58c] sm:$0xf]
  %v395 = vld [vmem:[%s0 + $0x590] sm:$0xf]
  %v396 = vld [vmem:[%s0 + $0x594] sm:$0xf]
  %v397 = vld [vmem:[%s0 + $0x598] sm:$0xf]
  %v398 = vld [vmem:[%s0 + $0x59c] sm:$0xf]
  %v399 = vld [vmem:[%s0 + $0x5a0] sm:$0xf]
  %v400 = vld [vmem:[%s0 + $0x5a4] sm:$0xf]
  %v401 = vld [vmem:[%s0 + $0x5a8] sm:$0xf]
  %v402 = vld [vmem:[%s0 + $0x5ac] sm:$0xf]
  %v403 = vld [vmem:[%s0 + $0x5b0] sm:$0xf]
  %v404 = vld [vmem:[%s0 + $0x5b4] sm:$0xf]
  %v405 = vld [vmem:[%s0 + $0x5b8] sm:$0xf]
  %v406 = vld [vmem:[%s0 + $0x5bc] sm:$0xf]
  %v407 = vld [vmem:[%s0 + $0x5c0] sm:$0xf]
  %v408 = vld [vmem:[%s0 + $0x5c4] sm:$0xf]
  %v409 = vld [vmem:[%s0 + $0x5c8] sm:$0xf]
  %v410 = vld [vmem:[%s0 + $0x5cc] sm:$0xf]
  %v411 = vld [vmem:[%s0 + $0x5d0] sm:$0xf]
  %v412 = vld [vmem:[%s0 + $0x5d4] sm:$0xf]
  %v413 = vld [vmem:[%s0 + $0x5d8] sm:$0xf]
  %v414 = vld [vmem:[%s0 + $0x5dc] sm:$0xf]
  %v415 = vld [vmem:[%s0 + $0x5e0] sm:$0xf]
  %v416 = vld [vmem:[%s0 + $0x5e4] sm:$0xf]
  %v417 = vld [vmem:[%s0 + $0x5e8] sm:$0xf]
  %v418 = vld [vmem:[%s0 + $0x5ec] sm:$0xf]
  %v419 = vld [vmem:[%s0 + $0x5f0] sm:$0xf]
  %v420 = vld [vmem:[%s0 + $0x5f4] sm:$0xf]
  %v421 = vld [vmem:[%s0 + $0x5f8] sm:$0xf]
  %v422 = vld [vmem:[%s0 + $0x5fc] sm:$0xf]
  %v423 = vld [vmem:[%s0 + $0x600] sm:$0xf]
  %v424 = vld [vmem:[%s0 + $0x604] sm:$0xf]
  %v425 = vld [vmem:[%s0 + $0x608] sm:$0xf]
  %v426 = vld [vmem:[%s0 + $0x60c] sm:$0xf]
  %v427 = vld [vmem:[%s0 + $0x610] sm:$0xf]
  %v428 = vld [vmem:[%s0 + $0x614] sm:$0xf]
  %v429 = vld [vmem:[%s0 + $0x618] sm:$0xf]
  %v430 = vld [vmem:[%s0 + $0x61c] sm:$0xf]
  %v431 = vld [vmem:[%s0 + $0x620] sm:$0xf]
  %v432 = vld [vmem:[%s0 + $0x624] sm:$0xf]
  %v433 = vld [vmem:[%s0 + $0x628] sm:$0xf]
  %v434 = vld [vmem:[%s0 + $0x62c] sm:$0xf]
  %v435 = vld [vmem:[%s0 + $0x630] sm:$0xf]
  %v436 = vld [vmem:[%s0 + $0x634] sm:$0xf]
  %v437 = vld [vmem:[%s0 + $0x638] sm:$0xf]
  %v438 = vld [vmem:[%s0 + $0x63c] sm:$0xf]
  %v439 = vld [vmem:[%s0 + $0x640] sm:$0xf]
  %v440 = vld [vmem:[%s0 + $0x644] sm:$0xf]
  %v441 = vld [vmem:[%s0 + $0x648] sm:$0xf]
  %v442 = vld [vmem:[%s0 + $0x64c] sm:$0xf]
  %v443 = vld [vmem:[%s0 + $0x650] sm:$0xf]
  %v444 = vld [vmem:[%s0 + $0x654] sm:$0xf]
  %v445 = vld [vmem:[%s0 + $0x658] sm:$0xf]
  %v446 = vld [vmem:[%s0 + $0x65c] sm:$0xf]
  %v447 = vld [vmem:[%s0 + $0x660] sm:$0xf]
  %v448 = vld [vmem:[%s0 + $0x664] sm:$0xf]
  %v449 = vld [vmem:[%s0 + $0x668] sm:$0xf]
  %v450 = vld [vmem:[%s0 + $0x66c] sm:$0xf]
  %v451 = vld [vmem:[%s0 + $0x670] sm:$0xf]
  %v452 = vld [vmem:[%s0 + $0x674] sm:$0xf]
  %v453 = vld [vmem:[%s0 + $0x678] sm:$0xf]
  %v454 = vld [vmem:[%s0 + $0x67c] sm:$0xf]
  %v455 = vld [vmem:[%s0 + $0x680] sm:$0xf]
  %v456 = vld [vmem:[%s0 + $0x684] sm:$0xf]
  %v457 = vld [vmem:[%s0 + $0x688] sm:$0xf]
  %v458 = vld [vmem:[%s0 + $0x68c] sm:$0xf]
  %v459 = vld [vmem:[%s0 + $0x690] sm:$0xf]
  %v460 = vld [vmem:[%s0 + $0x694] sm:$0xf]
  %v461 = vld [vmem:[%s0 + $0x698] sm:$0xf]
  %v462 = vld [vmem:[%s0 + $0x69c] sm:$0xf]
  %v463 = vld [vmem:[%s0 + $0x6a0] sm:$0xf]
  %v464 = vld [vmem:[%s0 + $0x6a4] sm:$0xf]
  %v465 = vld [vmem:[%s0 + $0x6a8] sm:$0xf]
  %v466 = vld [vmem:[%s0 + $0x6ac] sm:$0xf]
  %v467 = vld [vmem:[%s0 + $0x6b0] sm:$0xf]
  %v468 = vld [vmem:[%s0 + $0x6b4] sm:$0xf]
  %v469 = vld [vmem:[%s0 + $0x6b8] sm:$0xf]
  %v470 = vld [vmem:[%s0 + $0x6bc] sm:$0xf]
  %v471 = vld [vmem:[%s0 + $0x6c0] sm:$0xf]
  %v472 = vld [vmem:[%s0 + $0x6c4] sm:$0xf]
  %v473 = vld [vmem:[%s0 + $0x6c8] sm:$0xf]
  %v474 = vld [vmem:[%s0 + $0x6cc] sm:$0xf]
  %v475 = vld [vmem:[%s0 + $0x6d0] sm:$0xf]
  %v476 = vld [vmem:[%s0 + $0x6d4] sm:$0xf]
  %v477 = vld [vmem:[%s0 + $0x6d8] sm:$0xf]
  %v478 = vld [vmem:[%s0 + $0x6dc] sm:$0xf]
  %v479 = vld [vmem:[%s0 + $0x6e0] sm:$0xf]
  %v480 = vld [vmem:[%s0 + $0x6e4] sm:$0xf]
  %v481 = vld [vmem:[%s0 + $0x6e8] sm:$0xf]
  %v482 = vld [vmem:[%s0 + $0x6ec] sm:$0xf]
  %v483 = vld [vmem:[%s0 + $0x6f0] sm:$0xf]
  %v484 = vld [vmem:[%s0 + $0x6f4] sm:$0xf]
  %v485 = vld [vmem:[%s0 + $0x6f8] sm:$0xf]
  %v486 = vld [vmem:[%s0 + $0x6fc] sm:$0xf]
  %v487 = vld [vmem:[%s0 + $0x700] sm:$0xf]
  %v488 = vld [vmem:[%s0 + $0x704] sm:$0xf]
  %v489 = vld [vmem:[%s0 + $0x708] sm:$0xf]
  %v490 = vld [vmem:[%s0 + $0x70c] sm:$0xf]
  %v491 = vld [vmem:[%s0 + $0x710] sm:$0xf]
  %v492 = vld [vmem:[%s0 + $0x714] sm:$0xf]
  %v493 = vld [vmem:[%s0 + $0x718] sm:$0xf]
  %v494 = vld [vmem:[%s0 + $0x71c] sm:$0xf]
  %v495 = vld [vmem:[%s0 + $0x720] sm:$0xf]
  %v496 = vld [vmem:[%s0 + $0x724] sm:$0xf]
  %v497 = vld [vmem:[%s0 + $0x728] sm:$0xf]
  %v498 = vld [vmem:[%s0 + $0x72c] sm:$0xf]
  %v499 = vld [vmem:[%s0 + $0x730] sm:$0xf]
  %v500 = vld [vmem:[%s0 + $0x734] sm:$0xf]
  %v501 = vld [vmem:[%s0 + $0x738] sm:$0xf]
  %v502 = vld [vmem:[%s0 + $0x73c] sm:$0xf]
  %v503 = vld [vmem:[%s0 + $0x740] sm:$0xf]
  %v504 = vld [vmem:[%s0 + $0x744] sm:$0xf]
  %v505 = vld [vmem:[%s0 + $0x748] sm:$0xf]
  %v506 = vld [vmem:[%s0 + $0x74c] sm:$0xf]
  %v507 = vld [vmem:[%s0 + $0x750] sm:$0xf]
  %v508 = vld [vmem:[%s0 + $0x754] sm:$0xf]
  %v509 = vld [vmem:[%s0 + $0x758] sm:$0xf]
  %v510 = vld [vmem:[%s0 + $0x75c] sm:$0xf]
  %v511 = vld [vmem:[%s0 + $0x760] sm:$0xf]
  %v512 = vld [vmem:[%s0 + $0x764] sm:$0xf]
  %v513 = vld [vmem:[%s0 + $0x768] sm:$0xf]
  %v514 = vld [vmem:[%s0 + $0x76c] sm:$0xf]
  %v515 = vld [vmem:[%s0 + $0x770] sm:$0xf]
  %v516 = vld [vmem:[%s0 + $0x774] sm:$0xf]
  %v517 = vld [vmem:[%s0 + $0x778] sm:$0xf]
  %v518 = vld [vmem:[%s0 + $0x77c] sm:$0xf]
  %v519 = vld [vmem:[%s0 + $0x780] sm:$0xf]
  %v520 = vld [vmem:[%s0 + $0x784] sm:$0xf]
  %v521 = vld [vmem:[%s0 + $0x788] sm:$0xf]
  %v522 = vld [vmem:[%s0 + $0x78c] sm:$0xf]
  %v523 = vld [vmem:[%s0 + $0x790] sm:$0xf]
  %v524 = vld [vmem:[%s0 + $0x794] sm:$0xf]
  %v525 = vld [vmem:[%s0 + $0x798] sm:$0xf]
  %v526 = vld [vmem:[%s0 + $0x79c] sm:$0xf]
  %v527 = vld [vmem:[%s0 + $0x7a0] sm:$0xf]
  %v528 = vld [vmem:[%s0 + $0x7a4] sm:$0xf]
  %v529 = vld [vmem:[%s0 + $0x7a8] sm:$0xf]
  %v530 = vld [vmem:[%s0 + $0x7ac] sm:$0xf]
  %v531 = vld [vmem:[%s0 + $0x7b0] sm:$0xf]
  %v532 = vld [vmem:[%s0 + $0x7b4] sm:$0xf]
  %v533 = vld [vmem:[%s0 + $0x7b8] sm:$0xf]
  %v534 = vld [vmem:[%s0 + $0x7bc] sm:$0xf]
  %v535 = vld [vmem:[%s0 + $0x7c0] sm:$0xf]
  %v536 = vld [vmem:[%s0 + $0x7c4] sm:$0xf]
  %v537 = vld [vmem:[%s0 + $0x7c8] sm:$0xf]
  %v538 = vld [vmem:[%s0 + $0x7cc] sm:$0xf]
  %v539 = vld [vmem:[%s0 + $0x7d0] sm:$0xf]
  %v540 = vld [vmem:[%s0 + $0x7d4] sm:$0xf]
  %v541 = vld [vmem:[%s0 + $0x7d8] sm:$0xf]
  %v542 = vld [vmem:[%s0 + $0x7dc] sm:$0xf]
  %v543 = vld [vmem:[%s0 + $0x7e0] sm:$0xf]
  %v544 = vld [vmem:[%s0 + $0x7e4] sm:$0xf]
  %v545 = vld [vmem:[%s0 + $0x7e8] sm:$0xf]
  %v546 = vld [vmem:[%s0 + $0x7ec] sm:$0xf]
  %v547 = vld [vmem:[%s0 + $0x7f0] sm:$0xf]
  %v548 = vld [vmem:[%s0 + $0x7f4] sm:$0xf]
  %v549 = vld [vmem:[%s0 + $0x7f8] sm:$0xf]
  %v550 = vld [vmem:[%s0 + $0x7fc] sm:$0xf]
  %v551 = vld [vmem:[%s1] sm:$0xf]
  %v552 = vld [vmem:[%s1 + $0x4] sm:$0xf]
  %v553 = vld [vmem:[%s1 + $0x8] sm:$0xf]
  %v554 = vld [vmem:[%s1 + $0xc] sm:$0xf]
  %v555 = vld [vmem:[%s2] sm:$0x1]
  %v557 = vlaneseq
  %v558 = vshrl.u32 %v557, 7
  %v559 = vsub.s32 0, %v558
  %v560 = vrot.slane %v555, %v559
  %v1074 = vunpack.c.l.b16 %v39
  %v1075 = vunpack.c.l.b16 %v40
  %v1076 = vunpack.c.l.b16 %v41
  %v1077 = vunpack.c.l.b16 %v42
  %v1078 = vunpack.c.l.b16 %v43
  %v1079 = vunpack.c.l.b16 %v44
  %v1080 = vunpack.c.l.b16 %v45
  %v1081 = vunpack.c.l.b16 %v46
  %v1082 = vunpack.c.l.b16 %v47
  %v1083 = vunpack.c.l.b16 %v48
  %v1084 = vunpack.c.l.b16 %v49
  %v1085 = vunpack.c.l.b16 %v50
  %v1086 = vunpack.c.l.b16 %v51
  %v1087 = vunpack.c.l.b16 %v52
  %v1088 = vunpack.c.l.b16 %v53
  %v1089 = vunpack.c.l.b16 %v54
  %v1090 = vunpack.c.l.b16 %v55
  %v1091 = vunpack.c.l.b16 %v56
  %v1092 = vunpack.c.l.b16 %v57
  %v1093 = vunpack.c.l.b16 %v58
  %v1094 = vunpack.c.l.b16 %v59
  %v1095 = vunpack.c.l.b16 %v60
  %v1096 = vunpack.c.l.b16 %v61
  %v1097 = vunpack.c.l.b16 %v62
  %v1098 = vunpack.c.l.b16 %v63
  %v1099 = vunpack.c.l.b16 %v64
  %v1100 = vunpack.c.l.b16 %v65
  %v1101 = vunpack.c.l.b16 %v66
  %v1102 = vunpack.c.l.b16 %v67
  %v1103 = vunpack.c.l.b16 %v68
  %v1104 = vunpack.c.l.b16 %v69
  %v1105 = vunpack.c.l.b16 %v70
  %v1106 = vunpack.c.l.b16 %v71
  %v1107 = vunpack.c.l.b16 %v72
  %v1108 = vunpack.c.l.b16 %v73
  %v1109 = vunpack.c.l.b16 %v74
  %v1110 = vunpack.c.l.b16 %v75
  %v1111 = vunpack.c.l.b16 %v76
  %v1112 = vunpack.c.l.b16 %v77
  %v1113 = vunpack.c.l.b16 %v78
  %v1114 = vunpack.c.l.b16 %v79
  %v1115 = vunpack.c.l.b16 %v80
  %v1116 = vunpack.c.l.b16 %v81
  %v1117 = vunpack.c.l.b16 %v82
  %v1118 = vunpack.c.l.b16 %v83
  %v1119 = vunpack.c.l.b16 %v84
  %v1120 = vunpack.c.l.b16 %v85
  %v1121 = vunpack.c.l.b16 %v86
  %v1122 = vunpack.c.l.b16 %v87
  %v1123 = vunpack.c.l.b16 %v88
  %v1124 = vunpack.c.l.b16 %v89
  %v1125 = vunpack.c.l.b16 %v90
  %v1126 = vunpack.c.l.b16 %v91
  %v1127 = vunpack.c.l.b16 %v92
  %v1128 = vunpack.c.l.b16 %v93
  %v1129 = vunpack.c.l.b16 %v94
  %v1130 = vunpack.c.l.b16 %v95
  %v1131 = vunpack.c.l.b16 %v96
  %v1132 = vunpack.c.l.b16 %v97
  %v1133 = vunpack.c.l.b16 %v98
  %v1134 = vunpack.c.l.b16 %v99
  %v1135 = vunpack.c.l.b16 %v100
  %v1136 = vunpack.c.l.b16 %v101
  %v1137 = vunpack.c.l.b16 %v102
  %v1138 = vunpack.c.l.b16 %v103
  %v1139 = vunpack.c.l.b16 %v104
  %v1140 = vunpack.c.l.b16 %v105
  %v1141 = vunpack.c.l.b16 %v106
  %v1142 = vunpack.c.l.b16 %v107
  %v1143 = vunpack.c.l.b16 %v108
  %v1144 = vunpack.c.l.b16 %v109
  %v1145 = vunpack.c.l.b16 %v110
  %v1146 = vunpack.c.l.b16 %v111
  %v1147 = vunpack.c.l.b16 %v112
  %v1148 = vunpack.c.l.b16 %v113
  %v1149 = vunpack.c.l.b16 %v114
  %v1150 = vunpack.c.l.b16 %v115
  %v1151 = vunpack.c.l.b16 %v116
  %v1152 = vunpack.c.l.b16 %v117
  %v1153 = vunpack.c.l.b16 %v118
  %v1154 = vunpack.c.l.b16 %v119
  %v1155 = vunpack.c.l.b16 %v120
  %v1156 = vunpack.c.l.b16 %v121
  %v1157 = vunpack.c.l.b16 %v122
  %v1158 = vunpack.c.l.b16 %v123
  %v1159 = vunpack.c.l.b16 %v124
  %v1160 = vunpack.c.l.b16 %v125
  %v1161 = vunpack.c.l.b16 %v126
  %v1162 = vunpack.c.l.b16 %v127
  %v1163 = vunpack.c.l.b16 %v128
  %v1164 = vunpack.c.l.b16 %v129
  %v1165 = vunpack.c.l.b16 %v130
  %v1166 = vunpack.c.l.b16 %v131
  %v1167 = vunpack.c.l.b16 %v132
  %v1168 = vunpack.c.l.b16 %v133
  %v1169 = vunpack.c.l.b16 %v134
  %v1170 = vunpack.c.l.b16 %v135
  %v1171 = vunpack.c.l.b16 %v136
  %v1172 = vunpack.c.l.b16 %v137
  %v1173 = vunpack.c.l.b16 %v138
  %v1174 = vunpack.c.l.b16 %v139
  %v1175 = vunpack.c.l.b16 %v140
  %v1176 = vunpack.c.l.b16 %v141
  %v1177 = vunpack.c.l.b16 %v142
  %v1178 = vunpack.c.l.b16 %v143
  %v1179 = vunpack.c.l.b16 %v144
  %v1180 = vunpack.c.l.b16 %v145
  %v1181 = vunpack.c.l.b16 %v146
  %v1182 = vunpack.c.l.b16 %v147
  %v1183 = vunpack.c.l.b16 %v148
  %v1184 = vunpack.c.l.b16 %v149
  %v1185 = vunpack.c.l.b16 %v150
  %v1186 = vunpack.c.l.b16 %v151
  %v1187 = vunpack.c.l.b16 %v152
  %v1188 = vunpack.c.l.b16 %v153
  %v1189 = vunpack.c.l.b16 %v154
  %v1190 = vunpack.c.l.b16 %v155
  %v1191 = vunpack.c.l.b16 %v156
  %v1192 = vunpack.c.l.b16 %v157
  %v1193 = vunpack.c.l.b16 %v158
  %v1194 = vunpack.c.l.b16 %v159
  %v1195 = vunpack.c.l.b16 %v160
  %v1196 = vunpack.c.l.b16 %v161
  %v1197 = vunpack.c.l.b16 %v162
  %v1198 = vunpack.c.l.b16 %v163
  %v1199 = vunpack.c.l.b16 %v164
  %v1200 = vunpack.c.l.b16 %v165
  %v1201 = vunpack.c.l.b16 %v166
  %v1202 = vunpack.c.l.b16 %v167
  %v1203 = vunpack.c.l.b16 %v168
  %v1204 = vunpack.c.l.b16 %v169
  %v1205 = vunpack.c.l.b16 %v170
  %v1206 = vunpack.c.l.b16 %v171
  %v1207 = vunpack.c.l.b16 %v172
  %v1208 = vunpack.c.l.b16 %v173
  %v1209 = vunpack.c.l.b16 %v174
  %v1210 = vunpack.c.l.b16 %v175
  %v1211 = vunpack.c.l.b16 %v176
  %v1212 = vunpack.c.l.b16 %v177
  %v1213 = vunpack.c.l.b16 %v178
  %v1214 = vunpack.c.l.b16 %v179
  %v1215 = vunpack.c.l.b16 %v180
  %v1216 = vunpack.c.l.b16 %v181
  %v1217 = vunpack.c.l.b16 %v182
  %v1218 = vunpack.c.l.b16 %v183
  %v1219 = vunpack.c.l.b16 %v184
  %v1220 = vunpack.c.l.b16 %v185
  %v1221 = vunpack.c.l.b16 %v186
  %v1222 = vunpack.c.l.b16 %v187
  %v1223 = vunpack.c.l.b16 %v188
  %v1224 = vunpack.c.l.b16 %v189
  %v1225 = vunpack.c.l.b16 %v190
  %v1226 = vunpack.c.l.b16 %v191
  %v1227 = vunpack.c.l.b16 %v192
  %v1228 = vunpack.c.l.b16 %v193
  %v1229 = vunpack.c.l.b16 %v194
  %v1230 = vunpack.c.l.b16 %v195
  %v1231 = vunpack.c.l.b16 %v196
  %v1232 = vunpack.c.l.b16 %v197
  %v1233 = vunpack.c.l.b16 %v198
  %v1234 = vunpack.c.l.b16 %v199
  %v1235 = vunpack.c.l.b16 %v200
  %v1236 = vunpack.c.l.b16 %v201
  %v1237 = vunpack.c.l.b16 %v202
  %v1238 = vunpack.c.l.b16 %v203
  %v1239 = vunpack.c.l.b16 %v204
  %v1240 = vunpack.c.l.b16 %v205
  %v1241 = vunpack.c.l.b16 %v206
  %v1242 = vunpack.c.l.b16 %v207
  %v1243 = vunpack.c.l.b16 %v208
  %v1244 = vunpack.c.l.b16 %v209
  %v1245 = vunpack.c.l.b16 %v210
  %v1246 = vunpack.c.l.b16 %v211
  %v1247 = vunpack.c.l.b16 %v212
  %v1248 = vunpack.c.l.b16 %v213
  %v1249 = vunpack.c.l.b16 %v214
  %v1250 = vunpack.c.l.b16 %v215
  %v1251 = vunpack.c.l.b16 %v216
  %v1252 = vunpack.c.l.b16 %v217
  %v1253 = vunpack.c.l.b16 %v218
  %v1254 = vunpack.c.l.b16 %v219
  %v1255 = vunpack.c.l.b16 %v220
  %v1256 = vunpack.c.l.b16 %v221
  %v1257 = vunpack.c.l.b16 %v222
  %v1258 = vunpack.c.l.b16 %v223
  %v1259 = vunpack.c.l.b16 %v224
  %v1260 = vunpack.c.l.b16 %v225
  %v1261 = vunpack.c.l.b16 %v226
  %v1262 = vunpack.c.l.b16 %v227
  %v1263 = vunpack.c.l.b16 %v228
  %v1264 = vunpack.c.l.b16 %v229
  %v1265 = vunpack.c.l.b16 %v230
  %v1266 = vunpack.c.l.b16 %v231
  %v1267 = vunpack.c.l.b16 %v232
  %v1268 = vunpack.c.l.b16 %v233
  %v1269 = vunpack.c.l.b16 %v234
  %v1270 = vunpack.c.l.b16 %v235
  %v1271 = vunpack.c.l.b16 %v236
  %v1272 = vunpack.c.l.b16 %v237
  %v1273 = vunpack.c.l.b16 %v238
  %v1274 = vunpack.c.l.b16 %v239
  %v1275 = vunpack.c.l.b16 %v240
  %v1276 = vunpack.c.l.b16 %v241
  %v1277 = vunpack.c.l.b16 %v242
  %v1278 = vunpack.c.l.b16 %v243
  %v1279 = vunpack.c.l.b16 %v244
  %v1280 = vunpack.c.l.b16 %v245
  %v1281 = vunpack.c.l.b16 %v246
  %v1282 = vunpack.c.l.b16 %v247
  %v1283 = vunpack.c.l.b16 %v248
  %v1284 = vunpack.c.l.b16 %v249
  %v1285 = vunpack.c.l.b16 %v250
  %v1286 = vunpack.c.l.b16 %v251
  %v1287 = vunpack.c.l.b16 %v252
  %v1288 = vunpack.c.l.b16 %v253
  %v1289 = vunpack.c.l.b16 %v254
  %v1290 = vunpack.c.l.b16 %v255
  %v1291 = vunpack.c.l.b16 %v256
  %v1292 = vunpack.c.l.b16 %v257
  %v1293 = vunpack.c.l.b16 %v258
  %v1294 = vunpack.c.l.b16 %v259
  %v1295 = vunpack.c.l.b16 %v260
  %v1296 = vunpack.c.l.b16 %v261
  %v1297 = vunpack.c.l.b16 %v262
  %v1298 = vunpack.c.l.b16 %v263
  %v1299 = vunpack.c.l.b16 %v264
  %v1300 = vunpack.c.l.b16 %v265
  %v1301 = vunpack.c.l.b16 %v266
  %v1302 = vunpack.c.l.b16 %v267
  %v1303 = vunpack.c.l.b16 %v268
  %v1304 = vunpack.c.l.b16 %v269
  %v1305 = vunpack.c.l.b16 %v270
  %v1306 = vunpack.c.l.b16 %v271
  %v1307 = vunpack.c.l.b16 %v272
  %v1308 = vunpack.c.l.b16 %v273
  %v1309 = vunpack.c.l.b16 %v274
  %v1310 = vunpack.c.l.b16 %v275
  %v1311 = vunpack.c.l.b16 %v276
  %v1312 = vunpack.c.l.b16 %v277
  %v1313 = vunpack.c.l.b16 %v278
  %v1314 = vunpack.c.l.b16 %v279
  %v1315 = vunpack.c.l.b16 %v280
  %v1316 = vunpack.c.l.b16 %v281
  %v1317 = vunpack.c.l.b16 %v282
  %v1318 = vunpack.c.l.b16 %v283
  %v1319 = vunpack.c.l.b16 %v284
  %v1320 = vunpack.c.l.b16 %v285
  %v1321 = vunpack.c.l.b16 %v286
  %v1322 = vunpack.c.l.b16 %v287
  %v1323 = vunpack.c.l.b16 %v288
  %v1324 = vunpack.c.l.b16 %v289
  %v1325 = vunpack.c.l.b16 %v290
  %v1326 = vunpack.c.l.b16 %v291
  %v1327 = vunpack.c.l.b16 %v292
  %v1328 = vunpack.c.l.b16 %v293
  %v1329 = vunpack.c.l.b16 %v294
  %v1330 = vunpack.c.l.b16 %v295
  %v1331 = vunpack.c.l.b16 %v296
  %v1332 = vunpack.c.l.b16 %v297
  %v1333 = vunpack.c.l.b16 %v298
  %v1334 = vunpack.c.l.b16 %v299
  %v1335 = vunpack.c.l.b16 %v300
  %v1336 = vunpack.c.l.b16 %v301
  %v1337 = vunpack.c.l.b16 %v302
  %v1338 = vunpack.c.l.b16 %v303
  %v1339 = vunpack.c.l.b16 %v304
  %v1340 = vunpack.c.l.b16 %v305
  %v1341 = vunpack.c.l.b16 %v306
  %v1342 = vunpack.c.l.b16 %v307
  %v1343 = vunpack.c.l.b16 %v308
  %v1344 = vunpack.c.l.b16 %v309
  %v1345 = vunpack.c.l.b16 %v310
  %v1346 = vunpack.c.l.b16 %v311
  %v1347 = vunpack.c.l.b16 %v312
  %v1348 = vunpack.c.l.b16 %v313
  %v1349 = vunpack.c.l.b16 %v314
  %v1350 = vunpack.c.l.b16 %v315
  %v1351 = vunpack.c.l.b16 %v316
  %v1352 = vunpack.c.l.b16 %v317
  %v1353 = vunpack.c.l.b16 %v318
  %v1354 = vunpack.c.l.b16 %v319
  %v1355 = vunpack.c.l.b16 %v320
  %v1356 = vunpack.c.l.b16 %v321
  %v1357 = vunpack.c.l.b16 %v322
  %v1358 = vunpack.c.l.b16 %v323
  %v1359 = vunpack.c.l.b16 %v324
  %v1360 = vunpack.c.l.b16 %v325
  %v1361 = vunpack.c.l.b16 %v326
  %v1362 = vunpack.c.l.b16 %v327
  %v1363 = vunpack.c.l.b16 %v328
  %v1364 = vunpack.c.l.b16 %v329
  %v1365 = vunpack.c.l.b16 %v330
  %v1366 = vunpack.c.l.b16 %v331
  %v1367 = vunpack.c.l.b16 %v332
  %v1368 = vunpack.c.l.b16 %v333
  %v1369 = vunpack.c.l.b16 %v334
  %v1370 = vunpack.c.l.b16 %v335
  %v1371 = vunpack.c.l.b16 %v336
  %v1372 = vunpack.c.l.b16 %v337
  %v1373 = vunpack.c.l.b16 %v338
  %v1374 = vunpack.c.l.b16 %v339
  %v1375 = vunpack.c.l.b16 %v340
  %v1376 = vunpack.c.l.b16 %v341
  %v1377 = vunpack.c.l.b16 %v342
  %v1378 = vunpack.c.l.b16 %v343
  %v1379 = vunpack.c.l.b16 %v344
  %v1380 = vunpack.c.l.b16 %v345
  %v1381 = vunpack.c.l.b16 %v346
  %v1382 = vunpack.c.l.b16 %v347
  %v1383 = vunpack.c.l.b16 %v348
  %v1384 = vunpack.c.l.b16 %v349
  %v1385 = vunpack.c.l.b16 %v350
  %v1386 = vunpack.c.l.b16 %v351
  %v1387 = vunpack.c.l.b16 %v352
  %v1388 = vunpack.c.l.b16 %v353
  %v1389 = vunpack.c.l.b16 %v354
  %v1390 = vunpack.c.l.b16 %v355
  %v1391 = vunpack.c.l.b16 %v356
  %v1392 = vunpack.c.l.b16 %v357
  %v1393 = vunpack.c.l.b16 %v358
  %v1394 = vunpack.c.l.b16 %v359
  %v1395 = vunpack.c.l.b16 %v360
  %v1396 = vunpack.c.l.b16 %v361
  %v1397 = vunpack.c.l.b16 %v362
  %v1398 = vunpack.c.l.b16 %v363
  %v1399 = vunpack.c.l.b16 %v364
  %v1400 = vunpack.c.l.b16 %v365
  %v1401 = vunpack.c.l.b16 %v366
  %v1402 = vunpack.c.l.b16 %v367
  %v1403 = vunpack.c.l.b16 %v368
  %v1404 = vunpack.c.l.b16 %v369
  %v1405 = vunpack.c.l.b16 %v370
  %v1406 = vunpack.c.l.b16 %v371
  %v1407 = vunpack.c.l.b16 %v372
  %v1408 = vunpack.c.l.b16 %v373
  %v1409 = vunpack.c.l.b16 %v374
  %v1410 = vunpack.c.l.b16 %v375
  %v1411 = vunpack.c.l.b16 %v376
  %v1412 = vunpack.c.l.b16 %v377
  %v1413 = vunpack.c.l.b16 %v378
  %v1414 = vunpack.c.l.b16 %v379
  %v1415 = vunpack.c.l.b16 %v380
  %v1416 = vunpack.c.l.b16 %v381
  %v1417 = vunpack.c.l.b16 %v382
  %v1418 = vunpack.c.l.b16 %v383
  %v1419 = vunpack.c.l.b16 %v384
  %v1420 = vunpack.c.l.b16 %v385
  %v1421 = vunpack.c.l.b16 %v386
  %v1422 = vunpack.c.l.b16 %v387
  %v1423 = vunpack.c.l.b16 %v388
  %v1424 = vunpack.c.l.b16 %v389
  %v1425 = vunpack.c.l.b16 %v390
  %v1426 = vunpack.c.l.b16 %v391
  %v1427 = vunpack.c.l.b16 %v392
  %v1428 = vunpack.c.l.b16 %v393
  %v1429 = vunpack.c.l.b16 %v394
  %v1430 = vunpack.c.l.b16 %v395
  %v1431 = vunpack.c.l.b16 %v396
  %v1432 = vunpack.c.l.b16 %v397
  %v1433 = vunpack.c.l.b16 %v398
  %v1434 = vunpack.c.l.b16 %v399
  %v1435 = vunpack.c.l.b16 %v400
  %v1436 = vunpack.c.l.b16 %v401
  %v1437 = vunpack.c.l.b16 %v402
  %v1438 = vunpack.c.l.b16 %v403
  %v1439 = vunpack.c.l.b16 %v404
  %v1440 = vunpack.c.l.b16 %v405
  %v1441 = vunpack.c.l.b16 %v406
  %v1442 = vunpack.c.l.b16 %v407
  %v1443 = vunpack.c.l.b16 %v408
  %v1444 = vunpack.c.l.b16 %v409
  %v1445 = vunpack.c.l.b16 %v410
  %v1446 = vunpack.c.l.b16 %v411
  %v1447 = vunpack.c.l.b16 %v412
  %v1448 = vunpack.c.l.b16 %v413
  %v1449 = vunpack.c.l.b16 %v414
  %v1450 = vunpack.c.l.b16 %v415
  %v1451 = vunpack.c.l.b16 %v416
  %v1452 = vunpack.c.l.b16 %v417
  %v1453 = vunpack.c.l.b16 %v418
  %v1454 = vunpack.c.l.b16 %v419
  %v1455 = vunpack.c.l.b16 %v420
  %v1456 = vunpack.c.l.b16 %v421
  %v1457 = vunpack.c.l.b16 %v422
  %v1458 = vunpack.c.l.b16 %v423
  %v1459 = vunpack.c.l.b16 %v424
  %v1460 = vunpack.c.l.b16 %v425
  %v1461 = vunpack.c.l.b16 %v426
  %v1462 = vunpack.c.l.b16 %v427
  %v1463 = vunpack.c.l.b16 %v428
  %v1464 = vunpack.c.l.b16 %v429
  %v1465 = vunpack.c.l.b16 %v430
  %v1466 = vunpack.c.l.b16 %v431
  %v1467 = vunpack.c.l.b16 %v432
  %v1468 = vunpack.c.l.b16 %v433
  %v1469 = vunpack.c.l.b16 %v434
  %v1470 = vunpack.c.l.b16 %v435
  %v1471 = vunpack.c.l.b16 %v436
  %v1472 = vunpack.c.l.b16 %v437
  %v1473 = vunpack.c.l.b16 %v438
  %v1474 = vunpack.c.l.b16 %v439
  %v1475 = vunpack.c.l.b16 %v440
  %v1476 = vunpack.c.l.b16 %v441
  %v1477 = vunpack.c.l.b16 %v442
  %v1478 = vunpack.c.l.b16 %v443
  %v1479 = vunpack.c.l.b16 %v444
  %v1480 = vunpack.c.l.b16 %v445
  %v1481 = vunpack.c.l.b16 %v446
  %v1482 = vunpack.c.l.b16 %v447
  %v1483 = vunpack.c.l.b16 %v448
  %v1484 = vunpack.c.l.b16 %v449
  %v1485 = vunpack.c.l.b16 %v450
  %v1486 = vunpack.c.l.b16 %v451
  %v1487 = vunpack.c.l.b16 %v452
  %v1488 = vunpack.c.l.b16 %v453
  %v1489 = vunpack.c.l.b16 %v454
  %v1490 = vunpack.c.l.b16 %v455
  %v1491 = vunpack.c.l.b16 %v456
  %v1492 = vunpack.c.l.b16 %v457
  %v1493 = vunpack.c.l.b16 %v458
  %v1494 = vunpack.c.l.b16 %v459
  %v1495 = vunpack.c.l.b16 %v460
  %v1496 = vunpack.c.l.b16 %v461
  %v1497 = vunpack.c.l.b16 %v462
  %v1498 = vunpack.c.l.b16 %v463
  %v1499 = vunpack.c.l.b16 %v464
  %v1500 = vunpack.c.l.b16 %v465
  %v1501 = vunpack.c.l.b16 %v466
  %v1502 = vunpack.c.l.b16 %v467
  %v1503 = vunpack.c.l.b16 %v468
  %v1504 = vunpack.c.l.b16 %v469
  %v1505 = vunpack.c.l.b16 %v470
  %v1506 = vunpack.c.l.b16 %v471
  %v1507 = vunpack.c.l.b16 %v472
  %v1508 = vunpack.c.l.b16 %v473
  %v1509 = vunpack.c.l.b16 %v474
  %v1510 = vunpack.c.l.b16 %v475
  %v1511 = vunpack.c.l.b16 %v476
  %v1512 = vunpack.c.l.b16 %v477
  %v1513 = vunpack.c.l.b16 %v478
  %v1514 = vunpack.c.l.b16 %v479
  %v1515 = vunpack.c.l.b16 %v480
  %v1516 = vunpack.c.l.b16 %v481
  %v1517 = vunpack.c.l.b16 %v482
  %v1518 = vunpack.c.l.b16 %v483
  %v1519 = vunpack.c.l.b16 %v484
  %v1520 = vunpack.c.l.b16 %v485
  %v1521 = vunpack.c.l.b16 %v486
  %v1522 = vunpack.c.l.b16 %v487
  %v1523 = vunpack.c.l.b16 %v488
  %v1524 = vunpack.c.l.b16 %v489
  %v1525 = vunpack.c.l.b16 %v490
  %v1526 = vunpack.c.l.b16 %v491
  %v1527 = vunpack.c.l.b16 %v492
  %v1528 = vunpack.c.l.b16 %v493
  %v1529 = vunpack.c.l.b16 %v494
  %v1530 = vunpack.c.l.b16 %v495
  %v1531 = vunpack.c.l.b16 %v496
  %v1532 = vunpack.c.l.b16 %v497
  %v1533 = vunpack.c.l.b16 %v498
  %v1534 = vunpack.c.l.b16 %v499
  %v1535 = vunpack.c.l.b16 %v500
  %v1536 = vunpack.c.l.b16 %v501
  %v1537 = vunpack.c.l.b16 %v502
  %v1538 = vunpack.c.l.b16 %v503
  %v1539 = vunpack.c.l.b16 %v504
  %v1540 = vunpack.c.l.b16 %v505
  %v1541 = vunpack.c.l.b16 %v506
  %v1542 = vunpack.c.l.b16 %v507
  %v1543 = vunpack.c.l.b16 %v508
  %v1544 = vunpack.c.l.b16 %v509
  %v1545 = vunpack.c.l.b16 %v510
  %v1546 = vunpack.c.l.b16 %v511
  %v1547 = vunpack.c.l.b16 %v512
  %v1548 = vunpack.c.l.b16 %v513
  %v1549 = vunpack.c.l.b16 %v514
  %v1550 = vunpack.c.l.b16 %v515
  %v1551 = vunpack.c.l.b16 %v516
  %v1552 = vunpack.c.l.b16 %v517
  %v1553 = vunpack.c.l.b16 %v518
  %v1554 = vunpack.c.l.b16 %v519
  %v1555 = vunpack.c.l.b16 %v520
  %v1556 = vunpack.c.l.b16 %v521
  %v1557 = vunpack.c.l.b16 %v522
  %v1558 = vunpack.c.l.b16 %v523
  %v1559 = vunpack.c.l.b16 %v524
  %v1560 = vunpack.c.l.b16 %v525
  %v1561 = vunpack.c.l.b16 %v526
  %v1562 = vunpack.c.l.b16 %v527
  %v1563 = vunpack.c.l.b16 %v528
  %v1564 = vunpack.c.l.b16 %v529
  %v1565 = vunpack.c.l.b16 %v530
  %v1566 = vunpack.c.l.b16 %v531
  %v1567 = vunpack.c.l.b16 %v532
  %v1568 = vunpack.c.l.b16 %v533
  %v1569 = vunpack.c.l.b16 %v534
  %v1570 = vunpack.c.l.b16 %v535
  %v1571 = vunpack.c.l.b16 %v536
  %v1572 = vunpack.c.l.b16 %v537
  %v1573 = vunpack.c.l.b16 %v538
  %v1574 = vunpack.c.l.b16 %v539
  %v1575 = vunpack.c.l.b16 %v540
  %v1576 = vunpack.c.l.b16 %v541
  %v1577 = vunpack.c.l.b16 %v542
  %v1578 = vunpack.c.l.b16 %v543
  %v1579 = vunpack.c.l.b16 %v544
  %v1580 = vunpack.c.l.b16 %v545
  %v1581 = vunpack.c.l.b16 %v546
  %v1582 = vunpack.c.l.b16 %v547
  %v1583 = vunpack.c.l.b16 %v548
  %v1584 = vunpack.c.l.b16 %v549
  %v1585 = vunpack.c.l.b16 %v550
  %v1586 = vpack.c.b16 %v1075, %v1074
  %v1587 = vpack.c.b16 %v1077, %v1076
  %v1588 = vpack.c.b16 %v1079, %v1078
  %v1589 = vpack.c.b16 %v1081, %v1080
  %v1590 = vpack.c.b16 %v1083, %v1082
  %v1591 = vpack.c.b16 %v1085, %v1084
  %v1592 = vpack.c.b16 %v1087, %v1086
  %v1593 = vpack.c.b16 %v1089, %v1088
  %v1594 = vpack.c.b16 %v1091, %v1090
  %v1595 = vpack.c.b16 %v1093, %v1092
  %v1596 = vpack.c.b16 %v1095, %v1094
  %v1597 = vpack.c.b16 %v1097, %v1096
  %v1598 = vpack.c.b16 %v1099, %v1098
  %v1599 = vpack.c.b16 %v1101, %v1100
  %v1600 = vpack.c.b16 %v1103, %v1102
  %v1601 = vpack.c.b16 %v1105, %v1104
  %v1602 = vpack.c.b16 %v1107, %v1106
  %v1603 = vpack.c.b16 %v1109, %v1108
  %v1604 = vpack.c.b16 %v1111, %v1110
  %v1605 = vpack.c.b16 %v1113, %v1112
  %v1606 = vpack.c.b16 %v1115, %v1114
  %v1607 = vpack.c.b16 %v1117, %v1116
  %v1608 = vpack.c.b16 %v1119, %v1118
  %v1609 = vpack.c.b16 %v1121, %v1120
  %v1610 = vpack.c.b16 %v1123, %v1122
  %v1611 = vpack.c.b16 %v1125, %v1124
  %v1612 = vpack.c.b16 %v1127, %v1126
  %v1613 = vpack.c.b16 %v1129, %v1128
  %v1614 = vpack.c.b16 %v1131, %v1130
  %v1615 = vpack.c.b16 %v1133, %v1132
  %v1616 = vpack.c.b16 %v1135, %v1134
  %v1617 = vpack.c.b16 %v1137, %v1136
  %v1618 = vpack.c.b16 %v1139, %v1138
  %v1619 = vpack.c.b16 %v1141, %v1140
  %v1620 = vpack.c.b16 %v1143, %v1142
  %v1621 = vpack.c.b16 %v1145, %v1144
  %v1622 = vpack.c.b16 %v1147, %v1146
  %v1623 = vpack.c.b16 %v1149, %v1148
  %v1624 = vpack.c.b16 %v1151, %v1150
  %v1625 = vpack.c.b16 %v1153, %v1152
  %v1626 = vpack.c.b16 %v1155, %v1154
  %v1627 = vpack.c.b16 %v1157, %v1156
  %v1628 = vpack.c.b16 %v1159, %v1158
  %v1629 = vpack.c.b16 %v1161, %v1160
  %v1630 = vpack.c.b16 %v1163, %v1162
  %v1631 = vpack.c.b16 %v1165, %v1164
  %v1632 = vpack.c.b16 %v1167, %v1166
  %v1633 = vpack.c.b16 %v1169, %v1168
  %v1634 = vpack.c.b16 %v1171, %v1170
  %v1635 = vpack.c.b16 %v1173, %v1172
  %v1636 = vpack.c.b16 %v1175, %v1174
  %v1637 = vpack.c.b16 %v1177, %v1176
  %v1638 = vpack.c.b16 %v1179, %v1178
  %v1639 = vpack.c.b16 %v1181, %v1180
  %v1640 = vpack.c.b16 %v1183, %v1182
  %v1641 = vpack.c.b16 %v1185, %v1184
  %v1642 = vpack.c.b16 %v1187, %v1186
  %v1643 = vpack.c.b16 %v1189, %v1188
  %v1644 = vpack.c.b16 %v1191, %v1190
  %v1645 = vpack.c.b16 %v1193, %v1192
  %v1646 = vpack.c.b16 %v1195, %v1194
  %v1647 = vpack.c.b16 %v1197, %v1196
  %v1648 = vpack.c.b16 %v1199, %v1198
  %v1649 = vpack.c.b16 %v1201, %v1200
  %v1650 = vpack.c.b16 %v1203, %v1202
  %v1651 = vpack.c.b16 %v1205, %v1204
  %v1652 = vpack.c.b16 %v1207, %v1206
  %v1653 = vpack.c.b16 %v1209, %v1208
  %v1654 = vpack.c.b16 %v1211, %v1210
  %v1655 = vpack.c.b16 %v1213, %v1212
  %v1656 = vpack.c.b16 %v1215, %v1214
  %v1657 = vpack.c.b16 %v1217, %v1216
  %v1658 = vpack.c.b16 %v1219, %v1218
  %v1659 = vpack.c.b16 %v1221, %v1220
  %v1660 = vpack.c.b16 %v1223, %v1222
  %v1661 = vpack.c.b16 %v1225, %v1224
  %v1662 = vpack.c.b16 %v1227, %v1226
  %v1663 = vpack.c.b16 %v1229, %v1228
  %v1664 = vpack.c.b16 %v1231, %v1230
  %v1665 = vpack.c.b16 %v1233, %v1232
  %v1666 = vpack.c.b16 %v1235, %v1234
  %v1667 = vpack.c.b16 %v1237, %v1236
  %v1668 = vpack.c.b16 %v1239, %v1238
  %v1669 = vpack.c.b16 %v1241, %v1240
  %v1670 = vpack.c.b16 %v1243, %v1242
  %v1671 = vpack.c.b16 %v1245, %v1244
  %v1672 = vpack.c.b16 %v1247, %v1246
  %v1673 = vpack.c.b16 %v1249, %v1248
  %v1674 = vpack.c.b16 %v1251, %v1250
  %v1675 = vpack.c.b16 %v1253, %v1252
  %v1676 = vpack.c.b16 %v1255, %v1254
  %v1677 = vpack.c.b16 %v1257, %v1256
  %v1678 = vpack.c.b16 %v1259, %v1258
  %v1679 = vpack.c.b16 %v1261, %v1260
  %v1680 = vpack.c.b16 %v1263, %v1262
  %v1681 = vpack.c.b16 %v1265, %v1264
  %v1682 = vpack.c.b16 %v1267, %v1266
  %v1683 = vpack.c.b16 %v1269, %v1268
  %v1684 = vpack.c.b16 %v1271, %v1270
  %v1685 = vpack.c.b16 %v1273, %v1272
  %v1686 = vpack.c.b16 %v1275, %v1274
  %v1687 = vpack.c.b16 %v1277, %v1276
  %v1688 = vpack.c.b16 %v1279, %v1278
  %v1689 = vpack.c.b16 %v1281, %v1280
  %v1690 = vpack.c.b16 %v1283, %v1282
  %v1691 = vpack.c.b16 %v1285, %v1284
  %v1692 = vpack.c.b16 %v1287, %v1286
  %v1693 = vpack.c.b16 %v1289, %v1288
  %v1694 = vpack.c.b16 %v1291, %v1290
  %v1695 = vpack.c.b16 %v1293, %v1292
  %v1696 = vpack.c.b16 %v1295, %v1294
  %v1697 = vpack.c.b16 %v1297, %v1296
  %v1698 = vpack.c.b16 %v1299, %v1298
  %v1699 = vpack.c.b16 %v1301, %v1300
  %v1700 = vpack.c.b16 %v1303, %v1302
  %v1701 = vpack.c.b16 %v1305, %v1304
  %v1702 = vpack.c.b16 %v1307, %v1306
  %v1703 = vpack.c.b16 %v1309, %v1308
  %v1704 = vpack.c.b16 %v1311, %v1310
  %v1705 = vpack.c.b16 %v1313, %v1312
  %v1706 = vpack.c.b16 %v1315, %v1314
  %v1707 = vpack.c.b16 %v1317, %v1316
  %v1708 = vpack.c.b16 %v1319, %v1318
  %v1709 = vpack.c.b16 %v1321, %v1320
  %v1710 = vpack.c.b16 %v1323, %v1322
  %v1711 = vpack.c.b16 %v1325, %v1324
  %v1712 = vpack.c.b16 %v1327, %v1326
  %v1713 = vpack.c.b16 %v1329, %v1328
  %v1714 = vpack.c.b16 %v1331, %v1330
  %v1715 = vpack.c.b16 %v1333, %v1332
  %v1716 = vpack.c.b16 %v1335, %v1334
  %v1717 = vpack.c.b16 %v1337, %v1336
  %v1718 = vpack.c.b16 %v1339, %v1338
  %v1719 = vpack.c.b16 %v1341, %v1340
  %v1720 = vpack.c.b16 %v1343, %v1342
  %v1721 = vpack.c.b16 %v1345, %v1344
  %v1722 = vpack.c.b16 %v1347, %v1346
  %v1723 = vpack.c.b16 %v1349, %v1348
  %v1724 = vpack.c.b16 %v1351, %v1350
  %v1725 = vpack.c.b16 %v1353, %v1352
  %v1726 = vpack.c.b16 %v1355, %v1354
  %v1727 = vpack.c.b16 %v1357, %v1356
  %v1728 = vpack.c.b16 %v1359, %v1358
  %v1729 = vpack.c.b16 %v1361, %v1360
  %v1730 = vpack.c.b16 %v1363, %v1362
  %v1731 = vpack.c.b16 %v1365, %v1364
  %v1732 = vpack.c.b16 %v1367, %v1366
  %v1733 = vpack.c.b16 %v1369, %v1368
  %v1734 = vpack.c.b16 %v1371, %v1370
  %v1735 = vpack.c.b16 %v1373, %v1372
  %v1736 = vpack.c.b16 %v1375, %v1374
  %v1737 = vpack.c.b16 %v1377, %v1376
  %v1738 = vpack.c.b16 %v1379, %v1378
  %v1739 = vpack.c.b16 %v1381, %v1380
  %v1740 = vpack.c.b16 %v1383, %v1382
  %v1741 = vpack.c.b16 %v1385, %v1384
  %v1742 = vpack.c.b16 %v1387, %v1386
  %v1743 = vpack.c.b16 %v1389, %v1388
  %v1744 = vpack.c.b16 %v1391, %v1390
  %v1745 = vpack.c.b16 %v1393, %v1392
  %v1746 = vpack.c.b16 %v1395, %v1394
  %v1747 = vpack.c.b16 %v1397, %v1396
  %v1748 = vpack.c.b16 %v1399, %v1398
  %v1749 = vpack.c.b16 %v1401, %v1400
  %v1750 = vpack.c.b16 %v1403, %v1402
  %v1751 = vpack.c.b16 %v1405, %v1404
  %v1752 = vpack.c.b16 %v1407, %v1406
  %v1753 = vpack.c.b16 %v1409, %v1408
  %v1754 = vpack.c.b16 %v1411, %v1410
  %v1755 = vpack.c.b16 %v1413, %v1412
  %v1756 = vpack.c.b16 %v1415, %v1414
  %v1757 = vpack.c.b16 %v1417, %v1416
  %v1758 = vpack.c.b16 %v1419, %v1418
  %v1759 = vpack.c.b16 %v1421, %v1420
  %v1760 = vpack.c.b16 %v1423, %v1422
  %v1761 = vpack.c.b16 %v1425, %v1424
  %v1762 = vpack.c.b16 %v1427, %v1426
  %v1763 = vpack.c.b16 %v1429, %v1428
  %v1764 = vpack.c.b16 %v1431, %v1430
  %v1765 = vpack.c.b16 %v1433, %v1432
  %v1766 = vpack.c.b16 %v1435, %v1434
  %v1767 = vpack.c.b16 %v1437, %v1436
  %v1768 = vpack.c.b16 %v1439, %v1438
  %v1769 = vpack.c.b16 %v1441, %v1440
  %v1770 = vpack.c.b16 %v1443, %v1442
  %v1771 = vpack.c.b16 %v1445, %v1444
  %v1772 = vpack.c.b16 %v1447, %v1446
  %v1773 = vpack.c.b16 %v1449, %v1448
  %v1774 = vpack.c.b16 %v1451, %v1450
  %v1775 = vpack.c.b16 %v1453, %v1452
  %v1776 = vpack.c.b16 %v1455, %v1454
  %v1777 = vpack.c.b16 %v1457, %v1456
  %v1778 = vpack.c.b16 %v1459, %v1458
  %v1779 = vpack.c.b16 %v1461, %v1460
  %v1780 = vpack.c.b16 %v1463, %v1462
  %v1781 = vpack.c.b16 %v1465, %v1464
  %v1782 = vpack.c.b16 %v1467, %v1466
  %v1783 = vpack.c.b16 %v1469, %v1468
  %v1784 = vpack.c.b16 %v1471, %v1470
  %v1785 = vpack.c.b16 %v1473, %v1472
  %v1786 = vpack.c.b16 %v1475, %v1474
  %v1787 = vpack.c.b16 %v1477, %v1476
  %v1788 = vpack.c.b16 %v1479, %v1478
  %v1789 = vpack.c.b16 %v1481, %v1480
  %v1790 = vpack.c.b16 %v1483, %v1482
  %v1791 = vpack.c.b16 %v1485, %v1484
  %v1792 = vpack.c.b16 %v1487, %v1486
  %v1793 = vpack.c.b16 %v1489, %v1488
  %v1794 = vpack.c.b16 %v1491, %v1490
  %v1795 = vpack.c.b16 %v1493, %v1492
  %v1796 = vpack.c.b16 %v1495, %v1494
  %v1797 = vpack.c.b16 %v1497, %v1496
  %v1798 = vpack.c.b16 %v1499, %v1498
  %v1799 = vpack.c.b16 %v1501, %v1500
  %v1800 = vpack.c.b16 %v1503, %v1502
  %v1801 = vpack.c.b16 %v1505, %v1504
  %v1802 = vpack.c.b16 %v1507, %v1506
  %v1803 = vpack.c.b16 %v1509, %v1508
  %v1804 = vpack.c.b16 %v1511, %v1510
  %v1805 = vpack.c.b16 %v1513, %v1512
  %v1806 = vpack.c.b16 %v1515, %v1514
  %v1807 = vpack.c.b16 %v1517, %v1516
  %v1808 = vpack.c.b16 %v1519, %v1518
  %v1809 = vpack.c.b16 %v1521, %v1520
  %v1810 = vpack.c.b16 %v1523, %v1522
  %v1811 = vpack.c.b16 %v1525, %v1524
  %v1812 = vpack.c.b16 %v1527, %v1526
  %v1813 = vpack.c.b16 %v1529, %v1528
  %v1814 = vpack.c.b16 %v1531, %v1530
  %v1815 = vpack.c.b16 %v1533, %v1532
  %v1816 = vpack.c.b16 %v1535, %v1534
  %v1817 = vpack.c.b16 %v1537, %v1536
  %v1818 = vpack.c.b16 %v1539, %v1538
  %v1819 = vpack.c.b16 %v1541, %v1540
  %v1820 = vpack.c.b16 %v1543, %v1542
  %v1821 = vpack.c.b16 %v1545, %v1544
  %v1822 = vpack.c.b16 %v1547, %v1546
  %v1823 = vpack.c.b16 %v1549, %v1548
  %v1824 = vpack.c.b16 %v1551, %v1550
  %v1825 = vpack.c.b16 %v1553, %v1552
  %v1826 = vpack.c.b16 %v1555, %v1554
  %v1827 = vpack.c.b16 %v1557, %v1556
  %v1828 = vpack.c.b16 %v1559, %v1558
  %v1829 = vpack.c.b16 %v1561, %v1560
  %v1830 = vpack.c.b16 %v1563, %v1562
  %v1831 = vpack.c.b16 %v1565, %v1564
  %v1832 = vpack.c.b16 %v1567, %v1566
  %v1833 = vpack.c.b16 %v1569, %v1568
  %v1834 = vpack.c.b16 %v1571, %v1570
  %v1835 = vpack.c.b16 %v1573, %v1572
  %v1836 = vpack.c.b16 %v1575, %v1574
  %v1837 = vpack.c.b16 %v1577, %v1576
  %v1838 = vpack.c.b16 %v1579, %v1578
  %v1839 = vpack.c.b16 %v1581, %v1580
  %v1840 = vpack.c.b16 %v1583, %v1582
  %v1841 = vpack.c.b16 %v1585, %v1584
  %v1846 = vunpack.c.l.b16 %v551
  %v1847 = vunpack.c.l.b16 %v552
  %v1848 = vunpack.c.l.b16 %v553
  %v1849 = vunpack.c.l.b16 %v554
  %v1850 = vpack.c.b16 %v1847, %v1846
  %v1851 = vpack.c.b16 %v1849, %v1848
  %vm1854 = vcmask 261120
  %v1856 = vsel %vm1854, %v1586, 0
  %v1859 = vsel %vm1854, %v1587, 0
  %v1862 = vsel %vm1854, %v1588, 0
  %v1865 = vsel %vm1854, %v1589, 0
  %v1868 = vsel %vm1854, %v1590, 0
  %v1871 = vsel %vm1854, %v1591, 0
  %v1874 = vsel %vm1854, %v1592, 0
  %v1877 = vsel %vm1854, %v1593, 0
  %v1880 = vsel %vm1854, %v1594, 0
  %v1883 = vsel %vm1854, %v1595, 0
  %v1886 = vsel %vm1854, %v1596, 0
  %v1889 = vsel %vm1854, %v1597, 0
  %v1892 = vsel %vm1854, %v1598, 0
  %v1895 = vsel %vm1854, %v1599, 0
  %v1898 = vsel %vm1854, %v1600, 0
  %v1901 = vsel %vm1854, %v1601, 0
  %v1904 = vsel %vm1854, %v1602, 0
  %v1907 = vsel %vm1854, %v1603, 0
  %v1910 = vsel %vm1854, %v1604, 0
  %v1913 = vsel %vm1854, %v1605, 0
  %v1916 = vsel %vm1854, %v1606, 0
  %v1919 = vsel %vm1854, %v1607, 0
  %v1922 = vsel %vm1854, %v1608, 0
  %v1925 = vsel %vm1854, %v1609, 0
  %v1928 = vsel %vm1854, %v1610, 0
  %v1931 = vsel %vm1854, %v1611, 0
  %v1934 = vsel %vm1854, %v1612, 0
  %v1937 = vsel %vm1854, %v1613, 0
  %v1940 = vsel %vm1854, %v1614, 0
  %v1943 = vsel %vm1854, %v1615, 0
  %v1946 = vsel %vm1854, %v1616, 0
  %v1949 = vsel %vm1854, %v1617, 0
  %v1952 = vsel %vm1854, %v1618, 0
  %v1955 = vsel %vm1854, %v1619, 0
  %v1958 = vsel %vm1854, %v1620, 0
  %v1961 = vsel %vm1854, %v1621, 0
  %v1964 = vsel %vm1854, %v1622, 0
  %v1967 = vsel %vm1854, %v1623, 0
  %v1970 = vsel %vm1854, %v1624, 0
  %v1973 = vsel %vm1854, %v1625, 0
  %v1976 = vsel %vm1854, %v1626, 0
  %v1979 = vsel %vm1854, %v1627, 0
  %v1982 = vsel %vm1854, %v1628, 0
  %v1985 = vsel %vm1854, %v1629, 0
  %v1988 = vsel %vm1854, %v1630, 0
  %v1991 = vsel %vm1854, %v1631, 0
  %v1994 = vsel %vm1854, %v1632, 0
  %v1997 = vsel %vm1854, %v1633, 0
  %v2000 = vsel %vm1854, %v1634, 0
  %v2003 = vsel %vm1854, %v1635, 0
  %v2006 = vsel %vm1854, %v1636, 0
  %v2009 = vsel %vm1854, %v1637, 0
  %v2012 = vsel %vm1854, %v1638, 0
  %v2015 = vsel %vm1854, %v1639, 0
  %v2018 = vsel %vm1854, %v1640, 0
  %v2021 = vsel %vm1854, %v1641, 0
  %v2024 = vsel %vm1854, %v1642, 0
  %v2027 = vsel %vm1854, %v1643, 0
  %v2030 = vsel %vm1854, %v1644, 0
  %v2033 = vsel %vm1854, %v1645, 0
  %v2036 = vsel %vm1854, %v1646, 0
  %v2039 = vsel %vm1854, %v1647, 0
  %v2042 = vsel %vm1854, %v1648, 0
  %v2045 = vsel %vm1854, %v1649, 0
  %v2048 = vsel %vm1854, %v1650, 0
  %v2051 = vsel %vm1854, %v1651, 0
  %v2054 = vsel %vm1854, %v1652, 0
  %v2057 = vsel %vm1854, %v1653, 0
  %v2060 = vsel %vm1854, %v1654, 0
  %v2063 = vsel %vm1854, %v1655, 0
  %v2066 = vsel %vm1854, %v1656, 0
  %v2069 = vsel %vm1854, %v1657, 0
  %v2072 = vsel %vm1854, %v1658, 0
  %v2075 = vsel %vm1854, %v1659, 0
  %v2078 = vsel %vm1854, %v1660, 0
  %v2081 = vsel %vm1854, %v1661, 0
  %v2084 = vsel %vm1854, %v1662, 0
  %v2087 = vsel %vm1854, %v1663, 0
  %v2090 = vsel %vm1854, %v1664, 0
  %v2093 = vsel %vm1854, %v1665, 0
  %v2096 = vsel %vm1854, %v1666, 0
  %v2099 = vsel %vm1854, %v1667, 0
  %v2102 = vsel %vm1854, %v1668, 0
  %v2105 = vsel %vm1854, %v1669, 0
  %v2108 = vsel %vm1854, %v1670, 0
  %v2111 = vsel %vm1854, %v1671, 0
  %v2114 = vsel %vm1854, %v1672, 0
  %v2117 = vsel %vm1854, %v1673, 0
  %v2120 = vsel %vm1854, %v1674, 0
  %v2123 = vsel %vm1854, %v1675, 0
  %v2126 = vsel %vm1854, %v1676, 0
  %v2129 = vsel %vm1854, %v1677, 0
  %v2132 = vsel %vm1854, %v1678, 0
  %v2135 = vsel %vm1854, %v1679, 0
  %v2138 = vsel %vm1854, %v1680, 0
  %v2141 = vsel %vm1854, %v1681, 0
  %v2144 = vsel %vm1854, %v1682, 0
  %v2147 = vsel %vm1854, %v1683, 0
  %v2150 = vsel %vm1854, %v1684, 0
  %v2153 = vsel %vm1854, %v1685, 0
  %v2156 = vsel %vm1854, %v1686, 0
  %v2159 = vsel %vm1854, %v1687, 0
  %v2162 = vsel %vm1854, %v1688, 0
  %v2165 = vsel %vm1854, %v1689, 0
  %v2168 = vsel %vm1854, %v1690, 0
  %v2171 = vsel %vm1854, %v1691, 0
  %v2174 = vsel %vm1854, %v1692, 0
  %v2177 = vsel %vm1854, %v1693, 0
  %v2180 = vsel %vm1854, %v1694, 0
  %v2183 = vsel %vm1854, %v1695, 0
  %v2186 = vsel %vm1854, %v1696, 0
  %v2189 = vsel %vm1854, %v1697, 0
  %v2192 = vsel %vm1854, %v1698, 0
  %v2195 = vsel %vm1854, %v1699, 0
  %v2198 = vsel %vm1854, %v1700, 0
  %v2201 = vsel %vm1854, %v1701, 0
  %v2204 = vsel %vm1854, %v1702, 0
  %v2207 = vsel %vm1854, %v1703, 0
  %v2210 = vsel %vm1854, %v1704, 0
  %v2213 = vsel %vm1854, %v1705, 0
  %v2216 = vsel %vm1854, %v1706, 0
  %v2219 = vsel %vm1854, %v1707, 0
  %v2222 = vsel %vm1854, %v1708, 0
  %v2225 = vsel %vm1854, %v1709, 0
  %v2228 = vsel %vm1854, %v1710, 0
  %v2231 = vsel %vm1854, %v1711, 0
  %v2234 = vsel %vm1854, %v1712, 0
  %v2237 = vsel %vm1854, %v1713, 0
  %v2240 = vsel %vm1854, %v1714, 0
  %v2243 = vsel %vm1854, %v1715, 0
  %v2246 = vsel %vm1854, %v1716, 0
  %v2249 = vsel %vm1854, %v1717, 0
  %v2252 = vsel %vm1854, %v1718, 0
  %v2255 = vsel %vm1854, %v1719, 0
  %v2258 = vsel %vm1854, %v1720, 0
  %v2261 = vsel %vm1854, %v1721, 0
  %v2264 = vsel %vm1854, %v1722, 0
  %v2267 = vsel %vm1854, %v1723, 0
  %v2270 = vsel %vm1854, %v1724, 0
  %v2273 = vsel %vm1854, %v1725, 0
  %v2276 = vsel %vm1854, %v1726, 0
  %v2279 = vsel %vm1854, %v1727, 0
  %v2282 = vsel %vm1854, %v1728, 0
  %v2285 = vsel %vm1854, %v1729, 0
  %v2288 = vsel %vm1854, %v1730, 0
  %v2291 = vsel %vm1854, %v1731, 0
  %v2294 = vsel %vm1854, %v1732, 0
  %v2297 = vsel %vm1854, %v1733, 0
  %v2300 = vsel %vm1854, %v1734, 0
  %v2303 = vsel %vm1854, %v1735, 0
  %v2306 = vsel %vm1854, %v1736, 0
  %v2309 = vsel %vm1854, %v1737, 0
  %v2312 = vsel %vm1854, %v1738, 0
  %v2315 = vsel %vm1854, %v1739, 0
  %v2318 = vsel %vm1854, %v1740, 0
  %v2321 = vsel %vm1854, %v1741, 0
  %v2324 = vsel %vm1854, %v1742, 0
  %v2327 = vsel %vm1854, %v1743, 0
  %v2330 = vsel %vm1854, %v1744, 0
  %v2333 = vsel %vm1854, %v1745, 0
  %v2336 = vsel %vm1854, %v1746, 0
  %v2339 = vsel %vm1854, %v1747, 0
  %v2342 = vsel %vm1854, %v1748, 0
  %v2345 = vsel %vm1854, %v1749, 0
  %v2348 = vsel %vm1854, %v1750, 0
  %v2351 = vsel %vm1854, %v1751, 0
  %v2354 = vsel %vm1854, %v1752, 0
  %v2357 = vsel %vm1854, %v1753, 0
  %v2360 = vsel %vm1854, %v1754, 0
  %v2363 = vsel %vm1854, %v1755, 0
  %v2366 = vsel %vm1854, %v1756, 0
  %v2369 = vsel %vm1854, %v1757, 0
  %v2372 = vsel %vm1854, %v1758, 0
  %v2375 = vsel %vm1854, %v1759, 0
  %v2378 = vsel %vm1854, %v1760, 0
  %v2381 = vsel %vm1854, %v1761, 0
  %v2384 = vsel %vm1854, %v1762, 0
  %v2387 = vsel %vm1854, %v1763, 0
  %v2390 = vsel %vm1854, %v1764, 0
  %v2393 = vsel %vm1854, %v1765, 0
  %v2396 = vsel %vm1854, %v1766, 0
  %v2399 = vsel %vm1854, %v1767, 0
  %v2402 = vsel %vm1854, %v1768, 0
  %v2405 = vsel %vm1854, %v1769, 0
  %v2408 = vsel %vm1854, %v1770, 0
  %v2411 = vsel %vm1854, %v1771, 0
  %v2414 = vsel %vm1854, %v1772, 0
  %v2417 = vsel %vm1854, %v1773, 0
  %v2420 = vsel %vm1854, %v1774, 0
  %v2423 = vsel %vm1854, %v1775, 0
  %v2426 = vsel %vm1854, %v1776, 0
  %v2429 = vsel %vm1854, %v1777, 0
  %v2432 = vsel %vm1854, %v1778, 0
  %v2435 = vsel %vm1854, %v1779, 0
  %v2438 = vsel %vm1854, %v1780, 0
  %v2441 = vsel %vm1854, %v1781, 0
  %v2444 = vsel %vm1854, %v1782, 0
  %v2447 = vsel %vm1854, %v1783, 0
  %v2450 = vsel %vm1854, %v1784, 0
  %v2453 = vsel %vm1854, %v1785, 0
  %v2456 = vsel %vm1854, %v1786, 0
  %v2459 = vsel %vm1854, %v1787, 0
  %v2462 = vsel %vm1854, %v1788, 0
  %v2465 = vsel %vm1854, %v1789, 0
  %v2468 = vsel %vm1854, %v1790, 0
  %v2471 = vsel %vm1854, %v1791, 0
  %v2474 = vsel %vm1854, %v1792, 0
  %v2477 = vsel %vm1854, %v1793, 0
  %v2480 = vsel %vm1854, %v1794, 0
  %v2483 = vsel %vm1854, %v1795, 0
  %v2486 = vsel %vm1854, %v1796, 0
  %v2489 = vsel %vm1854, %v1797, 0
  %v2492 = vsel %vm1854, %v1798, 0
  %v2495 = vsel %vm1854, %v1799, 0
  %v2498 = vsel %vm1854, %v1800, 0
  %v2501 = vsel %vm1854, %v1801, 0
  %v2504 = vsel %vm1854, %v1802, 0
  %v2507 = vsel %vm1854, %v1803, 0
  %v2510 = vsel %vm1854, %v1804, 0
  %v2513 = vsel %vm1854, %v1805, 0
  %v2516 = vsel %vm1854, %v1806, 0
  %v2519 = vsel %vm1854, %v1807, 0
  %v2522 = vsel %vm1854, %v1808, 0
  %v2525 = vsel %vm1854, %v1809, 0
  %v2528 = vsel %vm1854, %v1810, 0
  %v2531 = vsel %vm1854, %v1811, 0
  %v2534 = vsel %vm1854, %v1812, 0
  %v2537 = vsel %vm1854, %v1813, 0
  %v2540 = vsel %vm1854, %v1814, 0
  %v2543 = vsel %vm1854, %v1815, 0
  %v2546 = vsel %vm1854, %v1816, 0
  %v2549 = vsel %vm1854, %v1817, 0
  %v2552 = vsel %vm1854, %v1818, 0
  %v2555 = vsel %vm1854, %v1819, 0
  %v2558 = vsel %vm1854, %v1820, 0
  %v2561 = vsel %vm1854, %v1821, 0
  %v2564 = vsel %vm1854, %v1822, 0
  %v2567 = vsel %vm1854, %v1823, 0
  %v2570 = vsel %vm1854, %v1824, 0
  %v2573 = vsel %vm1854, %v1825, 0
  %v2576 = vsel %vm1854, %v1826, 0
  %v2579 = vsel %vm1854, %v1827, 0
  %v2582 = vsel %vm1854, %v1828, 0
  %v2585 = vsel %vm1854, %v1829, 0
  %v2588 = vsel %vm1854, %v1830, 0
  %v2591 = vsel %vm1854, %v1831, 0
  %v2594 = vsel %vm1854, %v1832, 0
  %v2597 = vsel %vm1854, %v1833, 0
  %v2600 = vsel %vm1854, %v1834, 0
  %v2603 = vsel %vm1854, %v1835, 0
  %v2606 = vsel %vm1854, %v1836, 0
  %v2609 = vsel %vm1854, %v1837, 0
  %v2612 = vsel %vm1854, %v1838, 0
  %v2615 = vsel %vm1854, %v1839, 0
  %v2618 = vsel %vm1854, %v1840, 0
  %v2621 = vsel %vm1854, %v1841, 0
  %2623 = vmatprep.subr.bf16.mxu0 0
  %2624 = vmatpush1.bf16.msra.mxu0 %v1850
  %2625 = vmatprep.subr.bf16.mxu0 0
  %2626 = vmatpush1.bf16.msra.mxu0 %v1851
  %2627 = vmatprep.subr.bf16.mxu0 0
  %2628 = vmatpush1.bf16.msra.mxu0 0
  %2629 = vmatprep.subr.bf16.mxu0 0
  %2630 = vmatpush1.bf16.msra.mxu0 0
  %2631 = vmatprep.subr.bf16.mxu0 0
  %2632 = vmatpush1.bf16.msra.mxu0 0
  %2633 = vmatprep.subr.bf16.mxu0 0
  %2634 = vmatpush1.bf16.msra.mxu0 0
  %2635 = vmatprep.subr.bf16.mxu0 0
  %2636 = vmatpush1.bf16.msra.mxu0 0
  %2637 = vmatprep.subr.bf16.mxu0 0
  %2638 = vmatpush1.bf16.msra.mxu0 0
  %2639 = vmatprep.subr.bf16.mxu0 0
  %2640 = vmatpush1.bf16.msra.mxu0 0
  %2641 = vmatprep.subr.bf16.mxu0 0
  %2642 = vmatpush1.bf16.msra.mxu0 0
  %2643 = vmatprep.subr.bf16.mxu0 0
  %2644 = vmatpush1.bf16.msra.mxu0 0
  %2645 = vmatprep.subr.bf16.mxu0 0
  %2646 = vmatpush1.bf16.msra.mxu0 0
  %2647 = vmatprep.subr.bf16.mxu0 0
  %2648 = vmatpush1.bf16.msra.mxu0 0
  %2649 = vmatprep.subr.bf16.mxu0 0
  %2650 = vmatpush1.bf16.msra.mxu0 0
  %2651 = vmatprep.subr.bf16.mxu0 0
  %2652 = vmatpush1.bf16.msra.mxu0 0
  %2653 = vmatprep.subr.bf16.mxu0 0
  %2654 = vmatpush1.bf16.msra.mxu0 0
  %2655 = vmatprep.mubr.bf16.mxu0 0
  %2656 = vmatmul.mubr.bf16.gmra.mrb[0].mxu0 %v1856
  %v2657 = vpop.f32.mrb[0].mxu0
  %v2658 = vadd.f32 %v560, %v2657
  %v2659 = vpop.f32.mrb[0].mxu0
  %v2660 = vpop.f32.mrb[0].mxu0
  %v2661 = vadd.f32 %v560, %v2660
  %v2662 = vpop.f32.mrb[0].mxu0
  %2663 = vmatprep.mubr.bf16.mxu0 0
  %2664 = vmatmul.mubr.bf16.gmra.mrb[0].mxu0 %v1859
  %v2665 = vpop.f32.mrb[0].mxu0
  %v2666 = vadd.f32 %v560, %v2665
  %v2667 = vpop.f32.mrb[0].mxu0
  %v2668 = vpop.f32.mrb[0].mxu0
  %v2669 = vadd.f32 %v560, %v2668
  %v2670 = vpop.f32.mrb[0].mxu0
  %2671 = vmatprep.mubr.bf16.mxu0 0
  %2672 = vmatmul.mubr.bf16.gmra.mrb[0].mxu0 %v1862
  %v2673 = vpop.f32.mrb[0].mxu0
  %v2674 = vadd.f32 %v560, %v2673
  %v2675 = vpop.f32.mrb[0].mxu0
  %v2676 = vpop.f32.mrb[0].mxu0
  %v2677 = vadd.f32 %v560, %v2676
  %v2678 = vpop.f32.mrb[0].mxu0
  %2679 = vmatprep.mubr.bf16.mxu0 0
  %2680 = vmatmul.mubr.bf16.gmra.mrb[0].mxu0 %v1865
  %v2681 = vpop.f32.mrb[0].mxu0
  %v2682 = vadd.f32 %v560, %v2681
  %v2683 = vpop.f32.mrb[0].mxu0
  %v2684 = vpop.f32.mrb[0].mxu0
  %v2685 = vadd.f32 %v560, %v2684
  %v2686 = vpop.f32.mrb[0].mxu0
  %2687 = vmatprep.mubr.bf16.mxu0 0
  %2688 = vmatmul.mubr.bf16.gmra.mrb[0].mxu0 %v1868
  %v2689 = vpop.f32.mrb[0].mxu0
  %v2690 = vadd.f32 %v560, %v2689
  %v2691 = vpop.f32.mrb[0].mxu0
  %v2692 = vpop.f32.mrb[0].mxu0
  %v2693 = vadd.f32 %v560, %v2692
  %v2694 = vpop.f32.mrb[0].mxu0
  %2695 = vmatprep.mubr.bf16.mxu0 0
  %2696 = vmatmul.mubr.bf16.gmra.mrb[0].mxu0 %v1871
  %v2697 = vpop.f32.mrb[0].mxu0
  %v2698 = vadd.f32 %v560, %v2697
  %v2699 = vpop.f32.mrb[0].mxu0
  %v2700 = vpop.f32.mrb[0].mxu0
  %v2701 = vadd.f32 %v560, %v2700
  %v2702 = vpop.f32.mrb[0].mxu0
  %2703 = vmatprep.mubr.bf16.mxu0 0
  %2704 = vmatmul.mubr.bf16.gmra.mrb[0].mxu0 %v1874
  %v2705 = vpop.f32.mrb[0].mxu0
  %v2706 = vadd.f32 %v560, %v2705
  %v2707 = vpop.f32.mrb[0].mxu0
  %v2708 = vpop.f32.mrb[0].mxu0
  %v2709 = vadd.f32 %v560, %v2708
  %v2710 = vpop.f32.mrb[0].mxu0
  %2711 = vmatprep.mubr.bf16.mxu0 0
  %2712 = vmatmul.mubr.bf16.gmra.mrb[0].mxu0 %v1877
  %v2713 = vpop.f32.mrb[0].mxu0
  %v2714 = vadd.f32 %v560, %v2713
  %v2715 = vpop.f32.mrb[0].mxu0
  %v2716 = vpop.f32.mrb[0].mxu0
  %v2717 = vadd.f32 %v560, %v2716
  %v2718 = vpop.f32.mrb[0].mxu0
  %2719 = vmatprep.mubr.bf16.mxu0 0
  %2720 = vmatmul.mubr.bf16.gmra.mrb[0].mxu0 %v1880
  %v2721 = vpop.f32.mrb[0].mxu0
  %v2722 = vadd.f32 %v560, %v2721
  %v2723 = vpop.f32.mrb[0].mxu0
  %v2724 = vpop.f32.mrb[0].mxu0
  %v2725 = vadd.f32 %v560, %v2724
  %v2726 = vpop.f32.mrb[0].mxu0
  %2727 = vmatprep.mubr.bf16.mxu0 0
  %2728 = vmatmul.mubr.bf16.gmra.mrb[0].mxu0 %v1883
  %v2729 = vpop.f32.mrb[0].mxu0
  %v2730 = vadd.f32 %v560, %v2729
  %v2731 = vpop.f32.mrb[0].mxu0
  %v2732 = vpop.f32.mrb[0].mxu0
  %v2733 = vadd.f32 %v560, %v2732
  %v2734 = vpop.f32.mrb[0].mxu0
  %2735 = vmatprep.mubr.bf16.mxu0 0
  %2736 = vmatmul.mubr.bf16.gmra.mrb[0].mxu0 %v1886
  %v2737 = vpop.f32.mrb[0].mxu0
  %v2738 = vadd.f32 %v560, %v2737
  %v2739 = vpop.f32.mrb[0].mxu0
  %v2740 = vpop.f32.mrb[0].mxu0
  %v2741 = vadd.f32 %v560, %v2740
  %v2742 = vpop.f32.mrb[0].mxu0
  %2743 = vmatprep.mubr.bf16.mxu0 0
  %2744 = vmatmul.mubr.bf16.gmra.mrb[0].mxu0 %v1889
  %v2745 = vpop.f32.mrb[0].mxu0
  %v2746 = vadd.f32 %v560, %v2745
  %v2747 = vpop.f32.mrb[0].mxu0
  %v2748 = vpop.f32.mrb[0].mxu0
  %v2749 = vadd.f32 %v560, %v2748
  %v2750 = vpop.f32.mrb[0].mxu0
  %2751 = vmatprep.mubr.bf16.mxu0 0
  %2752 = vmatmul.mubr.bf16.gmra.mrb[0].mxu0 %v1892
  %v2753 = vpop.f32.mrb[0].mxu0
  %v2754 = vadd.f32 %v560, %v2753
  %v2755 = vpop.f32.mrb[0].mxu0
  %v2756 = vpop.f32.mrb[0].mxu0
  %v2757 = vadd.f32 %v560, %v2756
  %v2758 = vpop.f32.mrb[0].mxu0
  %2759 = vmatprep.mubr.bf16.mxu0 0
  %2760 = vmatmul.mubr.bf16.gmra.mrb[0].mxu0 %v1895
  %v2761 = vpop.f32.mrb[0].mxu0
  %v2762 = vadd.f32 %v560, %v2761
  %v2763 = vpop.f32.mrb[0].mxu0
  %v2764 = vpop.f32.mrb[0].mxu0
  %v2765 = vadd.f32 %v560, %v2764
  %v2766 = vpop.f32.mrb[0].mxu0
  %2767 = vmatprep.mubr.bf16.mxu0 0
  %2768 = vmatmul.mubr.bf16.gmra.mrb[0].mxu0 %v1898
  %v2769 = vpop.f32.mrb[0].mxu0
  %v2770 = vadd.f32 %v560, %v2769
  %v2771 = vpop.f32.mrb[0].mxu0
  %v2772 = vpop.f32.mrb[0].mxu0
  %v2773 = vadd.f32 %v560, %v2772
  %v2774 = vpop.f32.mrb[0].mxu0
  %2775 = vmatprep.mubr.bf16.mxu0 0
  %2776 = vmatmul.mubr.bf16.gmra.mrb[0].mxu0 %v1901
  %v2777 = vpop.f32.mrb[0].mxu0
  %v2778 = vadd.f32 %v560, %v2777
  %v2779 = vpop.f32.mrb[0].mxu0
  %v2780 = vpop.f32.mrb[0].mxu0
  %v2781 = vadd.f32 %v560, %v2780
  %v2782 = vpop.f32.mrb[0].mxu0
  %2783 = vmatprep.mubr.bf16.mxu0 0
  %2784 = vmatmul.mubr.bf16.gmra.mrb[0].mxu0 %v1904
  %v2785 = vpop.f32.mrb[0].mxu0
  %v2786 = vadd.f32 %v560, %v2785
  %v2787 = vpop.f32.mrb[0].mxu0
  %v2788 = vpop.f32.mrb[0].mxu0
  %v2789 = vadd.f32 %v560, %v2788
  %v2790 = vpop.f32.mrb[0].mxu0
  %2791 = vmatprep.mubr.bf16.mxu0 0
  %2792 = vmatmul.mubr.bf16.gmra.mrb[0].mxu0 %v1907
  %v2793 = vpop.f32.mrb[0].mxu0
  %v2794 = vadd.f32 %v560, %v2793
  %v2795 = vpop.f32.mrb[0].mxu0
  %v2796 = vpop.f32.mrb[0].mxu0
  %v2797 = vadd.f32 %v560, %v2796
  %v2798 = vpop.f32.mrb[0].mxu0
  %2799 = vmatprep.mubr.bf16.mxu0 0
  %2800 = vmatmul.mubr.bf16.gmra.mrb[0].mxu0 %v1910
  %v2801 = vpop.f32.mrb[0].mxu0
  %v2802 = vadd.f32 %v560, %v2801
  %v2803 = vpop.f32.mrb[0].mxu0
  %v2804 = vpop.f32.mrb[0].mxu0
  %v2805 = vadd.f32 %v560, %v2804
  %v2806 = vpop.f32.mrb[0].mxu0
  %2807 = vmatprep.mubr.bf16.mxu0 0
  %2808 = vmatmul.mubr.bf16.gmra.mrb[0].mxu0 %v1913
  %v2809 = vpop.f32.mrb[0].mxu0
  %v2810 = vadd.f32 %v560, %v2809
  %v2811 = vpop.f32.mrb[0].mxu0
  %v2812 = vpop.f32.mrb[0].mxu0
  %v2813 = vadd.f32 %v560, %v2812
  %v2814 = vpop.f32.mrb[0].mxu0
  %2815 = vmatprep.mubr.bf16.mxu0 0
  %2816 = vmatmul.mubr.bf16.gmra.mrb[0].mxu0 %v1916
  %v2817 = vpop.f32.mrb[0].mxu0
  %v2818 = vadd.f32 %v560, %v2817
  %v2819 = vpop.f32.mrb[0].mxu0
  %v2820 = vpop.f32.mrb[0].mxu0
  %v2821 = vadd.f32 %v560, %v2820
  %v2822 = vpop.f32.mrb[0].mxu0
  %2823 = vmatprep.mubr.bf16.mxu0 0
  %2824 = vmatmul.mubr.bf16.gmra.mrb[0].mxu0 %v1919
  %v2825 = vpop.f32.mrb[0].mxu0
  %v2826 = vadd.f32 %v560, %v2825
  %v2827 = vpop.f32.mrb[0].mxu0
  %v2828 = vpop.f32.mrb[0].mxu0
  %v2829 = vadd.f32 %v560, %v2828
  %v2830 = vpop.f32.mrb[0].mxu0
  %2831 = vmatprep.mubr.bf16.mxu0 0
  %2832 = vmatmul.mubr.bf16.gmra.mrb[0].mxu0 %v1922
  %v2833 = vpop.f32.mrb[0].mxu0
  %v2834 = vadd.f32 %v560, %v2833
  %v2835 = vpop.f32.mrb[0].mxu0
  %v2836 = vpop.f32.mrb[0].mxu0
  %v2837 = vadd.f32 %v560, %v2836
  %v2838 = vpop.f32.mrb[0].mxu0
  %2839 = vmatprep.mubr.bf16.mxu0 0
  %2840 = vmatmul.mubr.bf16.gmra.mrb[0].mxu0 %v1925
  %v2841 = vpop.f32.mrb[0].mxu0
  %v2842 = vadd.f32 %v560, %v2841
  %v2843 = vpop.f32.mrb[0].mxu0
  %v2844 = vpop.f32.mrb[0].mxu0
  %v2845 = vadd.f32 %v560, %v2844
  %v2846 = vpop.f32.mrb[0].mxu0
  %2847 = vmatprep.mubr.bf16.mxu0 0
  %2848 = vmatmul.mubr.bf16.gmra.mrb[0].mxu0 %v1928
  %v2849 = vpop.f32.mrb[0].mxu0
  %v2850 = vadd.f32 %v560, %v2849
  %v2851 = vpop.f32.mrb[0].mxu0
  %v2852 = vpop.f32.mrb[0].mxu0
  %v2853 = vadd.f32 %v560, %v2852
  %v2854 = vpop.f32.mrb[0].mxu0
  %2855 = vmatprep.mubr.bf16.mxu0 0
  %2856 = vmatmul.mubr.bf16.gmra.mrb[0].mxu0 %v1931
  %v2857 = vpop.f32.mrb[0].mxu0
  %v2858 = vadd.f32 %v560, %v2857
  %v2859 = vpop.f32.mrb[0].mxu0
  %v2860 = vpop.f32.mrb[0].mxu0
  %v2861 = vadd.f32 %v560, %v2860
  %v2862 = vpop.f32.mrb[0].mxu0
  %2863 = vmatprep.mubr.bf16.mxu0 0
  %2864 = vmatmul.mubr.bf16.gmra.mrb[0].mxu0 %v1934
  %v2865 = vpop.f32.mrb[0].mxu0
  %v2866 = vadd.f32 %v560, %v2865
  %v2867 = vpop.f32.mrb[0].mxu0
  %v2868 = vpop.f32.mrb[0].mxu0
  %v2869 = vadd.f32 %v560, %v2868
  %v2870 = vpop.f32.mrb[0].mxu0
  %2871 = vmatprep.mubr.bf16.mxu0 0
  %2872 = vmatmul.mubr.bf16.gmra.mrb[0].mxu0 %v1937
  %v2873 = vpop.f32.mrb[0].mxu0
  %v2874 = vadd.f32 %v560, %v2873
  %v2875 = vpop.f32.mrb[0].mxu0
  %v2876 = vpop.f32.mrb[0].mxu0
  %v2877 = vadd.f32 %v560, %v2876
  %v2878 = vpop.f32.mrb[0].mxu0
  %2879 = vmatprep.mubr.bf16.mxu0 0
  %2880 = vmatmul.mubr.bf16.gmra.mrb[0].mxu0 %v1940
  %v2881 = vpop.f32.mrb[0].mxu0
  %v2882 = vadd.f32 %v560, %v2881
  %v2883 = vpop.f32.mrb[0].mxu0
  %v2884 = vpop.f32.mrb[0].mxu0
  %v2885 = vadd.f32 %v560, %v2884
  %v2886 = vpop.f32.mrb[0].mxu0
  %2887 = vmatprep.mubr.bf16.mxu0 0
  %2888 = vmatmul.mubr.bf16.gmra.mrb[0].mxu0 %v1943
  %v2889 = vpop.f32.mrb[0].mxu0
  %v2890 = vadd.f32 %v560, %v2889
  %v2891 = vpop.f32.mrb[0].mxu0
  %v2892 = vpop.f32.mrb[0].mxu0
  %v2893 = vadd.f32 %v560, %v2892
  %v2894 = vpop.f32.mrb[0].mxu0
  %2895 = vmatprep.mubr.bf16.mxu0 0
  %2896 = vmatmul.mubr.bf16.gmra.mrb[0].mxu0 %v1946
  %v2897 = vpop.f32.mrb[0].mxu0
  %v2898 = vadd.f32 %v560, %v2897
  %v2899 = vpop.f32.mrb[0].mxu0
  %v2900 = vpop.f32.mrb[0].mxu0
  %v2901 = vadd.f32 %v560, %v2900
  %v2902 = vpop.f32.mrb[0].mxu0
  %2903 = vmatprep.mubr.bf16.mxu0 0
  %2904 = vmatmul.mubr.bf16.gmra.mrb[0].mxu0 %v1949
  %v2905 = vpop.f32.mrb[0].mxu0
  %v2906 = vadd.f32 %v560, %v2905
  %v2907 = vpop.f32.mrb[0].mxu0
  %v2908 = vpop.f32.mrb[0].mxu0
  %v2909 = vadd.f32 %v560, %v2908
  %v2910 = vpop.f32.mrb[0].mxu0
  %2911 = vmatprep.mubr.bf16.mxu0 0
  %2912 = vmatmul.mubr.bf16.gmra.mrb[0].mxu0 %v1952
  %v2913 = vpop.f32.mrb[0].mxu0
  %v2914 = vadd.f32 %v560, %v2913
  %v2915 = vpop.f32.mrb[0].mxu0
  %v2916 = vpop.f32.mrb[0].mxu0
  %v2917 = vadd.f32 %v560, %v2916
  %v2918 = vpop.f32.mrb[0].mxu0
  %2919 = vmatprep.mubr.bf16.mxu0 0
  %2920 = vmatmul.mubr.bf16.gmra.mrb[0].mxu0 %v1955
  %v2921 = vpop.f32.mrb[0].mxu0
  %v2922 = vadd.f32 %v560, %v2921
  %v2923 = vpop.f32.mrb[0].mxu0
  %v2924 = vpop.f32.mrb[0].mxu0
  %v2925 = vadd.f32 %v560, %v2924
  %v2926 = vpop.f32.mrb[0].mxu0
  %2927 = vmatprep.mubr.bf16.mxu0 0
  %2928 = vmatmul.mubr.bf16.gmra.mrb[0].mxu0 %v1958
  %v2929 = vpop.f32.mrb[0].mxu0
  %v2930 = vadd.f32 %v560, %v2929
  %v2931 = vpop.f32.mrb[0].mxu0
  %v2932 = vpop.f32.mrb[0].mxu0
  %v2933 = vadd.f32 %v560, %v2932
  %v2934 = vpop.f32.mrb[0].mxu0
  %2935 = vmatprep.mubr.bf16.mxu0 0
  %2936 = vmatmul.mubr.bf16.gmra.mrb[0].mxu0 %v1961
  %v2937 = vpop.f32.mrb[0].mxu0
  %v2938 = vadd.f32 %v560, %v2937
  %v2939 = vpop.f32.mrb[0].mxu0
  %v2940 = vpop.f32.mrb[0].mxu0
  %v2941 = vadd.f32 %v560, %v2940
  %v2942 = vpop.f32.mrb[0].mxu0
  %2943 = vmatprep.mubr.bf16.mxu0 0
  %2944 = vmatmul.mubr.bf16.gmra.mrb[0].mxu0 %v1964
  %v2945 = vpop.f32.mrb[0].mxu0
  %v2946 = vadd.f32 %v560, %v2945
  %v2947 = vpop.f32.mrb[0].mxu0
  %v2948 = vpop.f32.mrb[0].mxu0
  %v2949 = vadd.f32 %v560, %v2948
  %v2950 = vpop.f32.mrb[0].mxu0
  %2951 = vmatprep.mubr.bf16.mxu0 0
  %2952 = vmatmul.mubr.bf16.gmra.mrb[0].mxu0 %v1967
  %v2953 = vpop.f32.mrb[0].mxu0
  %v2954 = vadd.f32 %v560, %v2953
  %v2955 = vpop.f32.mrb[0].mxu0
  %v2956 = vpop.f32.mrb[0].mxu0
  %v2957 = vadd.f32 %v560, %v2956
  %v2958 = vpop.f32.mrb[0].mxu0
  %2959 = vmatprep.mubr.bf16.mxu0 0
  %2960 = vmatmul.mubr.bf16.gmra.mrb[0].mxu0 %v1970
  %v2961 = vpop.f32.mrb[0].mxu0
  %v2962 = vadd.f32 %v560, %v2961
  %v2963 = vpop.f32.mrb[0].mxu0
  %v2964 = vpop.f32.mrb[0].mxu0
  %v2965 = vadd.f32 %v560, %v2964
  %v2966 = vpop.f32.mrb[0].mxu0
  %2967 = vmatprep.mubr.bf16.mxu0 0
  %2968 = vmatmul.mubr.bf16.gmra.mrb[0].mxu0 %v1973
  %v2969 = vpop.f32.mrb[0].mxu0
  %v2970 = vadd.f32 %v560, %v2969
  %v2971 = vpop.f32.mrb[0].mxu0
  %v2972 = vpop.f32.mrb[0].mxu0
  %v2973 = vadd.f32 %v560, %v2972
  %v2974 = vpop.f32.mrb[0].mxu0
  %2975 = vmatprep.mubr.bf16.mxu0 0
  %2976 = vmatmul.mubr.bf16.gmra.mrb[0].mxu0 %v1976
  %v2977 = vpop.f32.mrb[0].mxu0
  %v2978 = vadd.f32 %v560, %v2977
  %v2979 = vpop.f32.mrb[0].mxu0
  %v2980 = vpop.f32.mrb[0].mxu0
  %v2981 = vadd.f32 %v560, %v2980
  %v2982 = vpop.f32.mrb[0].mxu0
  %2983 = vmatprep.mubr.bf16.mxu0 0
  %2984 = vmatmul.mubr.bf16.gmra.mrb[0].mxu0 %v1979
  %v2985 = vpop.f32.mrb[0].mxu0
  %v2986 = vadd.f32 %v560, %v2985
  %v2987 = vpop.f32.mrb[0].mxu0
  %v2988 = vpop.f32.mrb[0].mxu0
  %v2989 = vadd.f32 %v560, %v2988
  %v2990 = vpop.f32.mrb[0].mxu0
  %2991 = vmatprep.mubr.bf16.mxu0 0
  %2992 = vmatmul.mubr.bf16.gmra.mrb[0].mxu0 %v1982
  %v2993 = vpop.f32.mrb[0].mxu0
  %v2994 = vadd.f32 %v560, %v2993
  %v2995 = vpop.f32.mrb[0].mxu0
  %v2996 = vpop.f32.mrb[0].mxu0
  %v2997 = vadd.f32 %v560, %v2996
  %v2998 = vpop.f32.mrb[0].mxu0
  %2999 = vmatprep.mubr.bf16.mxu0 0
  %3000 = vmatmul.mubr.bf16.gmra.mrb[0].mxu0 %v1985
  %v3001 = vpop.f32.mrb[0].mxu0
  %v3002 = vadd.f32 %v560, %v3001
  %v3003 = vpop.f32.mrb[0].mxu0
  %v3004 = vpop.f32.mrb[0].mxu0
  %v3005 = vadd.f32 %v560, %v3004
  %v3006 = vpop.f32.mrb[0].mxu0
  %3007 = vmatprep.mubr.bf16.mxu0 0
  %3008 = vmatmul.mubr.bf16.gmra.mrb[0].mxu0 %v1988
  %v3009 = vpop.f32.mrb[0].mxu0
  %v3010 = vadd.f32 %v560, %v3009
  %v3011 = vpop.f32.mrb[0].mxu0
  %v3012 = vpop.f32.mrb[0].mxu0
  %v3013 = vadd.f32 %v560, %v3012
  %v3014 = vpop.f32.mrb[0].mxu0
  %3015 = vmatprep.mubr.bf16.mxu0 0
  %3016 = vmatmul.mubr.bf16.gmra.mrb[0].mxu0 %v1991
  %v3017 = vpop.f32.mrb[0].mxu0
  %v3018 = vadd.f32 %v560, %v3017
  %v3019 = vpop.f32.mrb[0].mxu0
  %v3020 = vpop.f32.mrb[0].mxu0
  %v3021 = vadd.f32 %v560, %v3020
  %v3022 = vpop.f32.mrb[0].mxu0
  %3023 = vmatprep.mubr.bf16.mxu0 0
  %3024 = vmatmul.mubr.bf16.gmra.mrb[0].mxu0 %v1994
  %v3025 = vpop.f32.mrb[0].mxu0
  %v3026 = vadd.f32 %v560, %v3025
  %v3027 = vpop.f32.mrb[0].mxu0
  %v3028 = vpop.f32.mrb[0].mxu0
  %v3029 = vadd.f32 %v560, %v3028
  %v3030 = vpop.f32.mrb[0].mxu0
  %3031 = vmatprep.mubr.bf16.mxu0 0
  %3032 = vmatmul.mubr.bf16.gmra.mrb[0].mxu0 %v1997
  %v3033 = vpop.f32.mrb[0].mxu0
  %v3034 = vadd.f32 %v560, %v3033
  %v3035 = vpop.f32.mrb[0].mxu0
  %v3036 = vpop.f32.mrb[0].mxu0
  %v3037 = vadd.f32 %v560, %v3036
  %v3038 = vpop.f32.mrb[0].mxu0
  %3039 = vmatprep.mubr.bf16.mxu0 0
  %3040 = vmatmul.mubr.bf16.gmra.mrb[0].mxu0 %v2000
  %v3041 = vpop.f32.mrb[0].mxu0
  %v3042 = vadd.f32 %v560, %v3041
  %v3043 = vpop.f32.mrb[0].mxu0
  %v3044 = vpop.f32.mrb[0].mxu0
  %v3045 = vadd.f32 %v560, %v3044
  %v3046 = vpop.f32.mrb[0].mxu0
  %3047 = vmatprep.mubr.bf16.mxu0 0
  %3048 = vmatmul.mubr.bf16.gmra.mrb[0].mxu0 %v2003
  %v3049 = vpop.f32.mrb[0].mxu0
  %v3050 = vadd.f32 %v560, %v3049
  %v3051 = vpop.f32.mrb[0].mxu0
  %v3052 = vpop.f32.mrb[0].mxu0
  %v3053 = vadd.f32 %v560, %v3052
  %v3054 = vpop.f32.mrb[0].mxu0
  %3055 = vmatprep.mubr.bf16.mxu0 0
  %3056 = vmatmul.mubr.bf16.gmra.mrb[0].mxu0 %v2006
  %v3057 = vpop.f32.mrb[0].mxu0
  %v3058 = vadd.f32 %v560, %v3057
  %v3059 = vpop.f32.mrb[0].mxu0
  %v3060 = vpop.f32.mrb[0].mxu0
  %v3061 = vadd.f32 %v560, %v3060
  %v3062 = vpop.f32.mrb[0].mxu0
  %3063 = vmatprep.mubr.bf16.mxu0 0
  %3064 = vmatmul.mubr.bf16.gmra.mrb[0].mxu0 %v2009
  %v3065 = vpop.f32.mrb[0].mxu0
  %v3066 = vadd.f32 %v560, %v3065
  %v3067 = vpop.f32.mrb[0].mxu0
  %v3068 = vpop.f32.mrb[0].mxu0
  %v3069 = vadd.f32 %v560, %v3068
  %v3070 = vpop.f32.mrb[0].mxu0
  %3071 = vmatprep.mubr.bf16.mxu0 0
  %3072 = vmatmul.mubr.bf16.gmra.mrb[0].mxu0 %v2012
  %v3073 = vpop.f32.mrb[0].mxu0
  %v3074 = vadd.f32 %v560, %v3073
  %v3075 = vpop.f32.mrb[0].mxu0
  %v3076 = vpop.f32.mrb[0].mxu0
  %v3077 = vadd.f32 %v560, %v3076
  %v3078 = vpop.f32.mrb[0].mxu0
  %3079 = vmatprep.mubr.bf16.mxu0 0
  %3080 = vmatmul.mubr.bf16.gmra.mrb[0].mxu0 %v2015
  %v3081 = vpop.f32.mrb[0].mxu0
  %v3082 = vadd.f32 %v560, %v3081
  %v3083 = vpop.f32.mrb[0].mxu0
  %v3084 = vpop.f32.mrb[0].mxu0
  %v3085 = vadd.f32 %v560, %v3084
  %v3086 = vpop.f32.mrb[0].mxu0
  %3087 = vmatprep.mubr.bf16.mxu0 0
  %3088 = vmatmul.mubr.bf16.gmra.mrb[0].mxu0 %v2018
  %v3089 = vpop.f32.mrb[0].mxu0
  %v3090 = vadd.f32 %v560, %v3089
  %v3091 = vpop.f32.mrb[0].mxu0
  %v3092 = vpop.f32.mrb[0].mxu0
  %v3093 = vadd.f32 %v560, %v3092
  %v3094 = vpop.f32.mrb[0].mxu0
  %3095 = vmatprep.mubr.bf16.mxu0 0
  %3096 = vmatmul.mubr.bf16.gmra.mrb[0].mxu0 %v2021
  %v3097 = vpop.f32.mrb[0].mxu0
  %v3098 = vadd.f32 %v560, %v3097
  %v3099 = vpop.f32.mrb[0].mxu0
  %v3100 = vpop.f32.mrb[0].mxu0
  %v3101 = vadd.f32 %v560, %v3100
  %v3102 = vpop.f32.mrb[0].mxu0
  %3103 = vmatprep.mubr.bf16.mxu0 0
  %3104 = vmatmul.mubr.bf16.gmra.mrb[0].mxu0 %v2024
  %v3105 = vpop.f32.mrb[0].mxu0
  %v3106 = vadd.f32 %v560, %v3105
  %v3107 = vpop.f32.mrb[0].mxu0
  %v3108 = vpop.f32.mrb[0].mxu0
  %v3109 = vadd.f32 %v560, %v3108
  %v3110 = vpop.f32.mrb[0].mxu0
  %3111 = vmatprep.mubr.bf16.mxu0 0
  %3112 = vmatmul.mubr.bf16.gmra.mrb[0].mxu0 %v2027
  %v3113 = vpop.f32.mrb[0].mxu0
  %v3114 = vadd.f32 %v560, %v3113
  %v3115 = vpop.f32.mrb[0].mxu0
  %v3116 = vpop.f32.mrb[0].mxu0
  %v3117 = vadd.f32 %v560, %v3116
  %v3118 = vpop.f32.mrb[0].mxu0
  %3119 = vmatprep.mubr.bf16.mxu0 0
  %3120 = vmatmul.mubr.bf16.gmra.mrb[0].mxu0 %v2030
  %v3121 = vpop.f32.mrb[0].mxu0
  %v3122 = vadd.f32 %v560, %v3121
  %v3123 = vpop.f32.mrb[0].mxu0
  %v3124 = vpop.f32.mrb[0].mxu0
  %v3125 = vadd.f32 %v560, %v3124
  %v3126 = vpop.f32.mrb[0].mxu0
  %3127 = vmatprep.mubr.bf16.mxu0 0
  %3128 = vmatmul.mubr.bf16.gmra.mrb[0].mxu0 %v2033
  %v3129 = vpop.f32.mrb[0].mxu0
  %v3130 = vadd.f32 %v560, %v3129
  %v3131 = vpop.f32.mrb[0].mxu0
  %v3132 = vpop.f32.mrb[0].mxu0
  %v3133 = vadd.f32 %v560, %v3132
  %v3134 = vpop.f32.mrb[0].mxu0
  %3135 = vmatprep.mubr.bf16.mxu0 0
  %3136 = vmatmul.mubr.bf16.gmra.mrb[0].mxu0 %v2036
  %v3137 = vpop.f32.mrb[0].mxu0
  %v3138 = vadd.f32 %v560, %v3137
  %v3139 = vpop.f32.mrb[0].mxu0
  %v3140 = vpop.f32.mrb[0].mxu0
  %v3141 = vadd.f32 %v560, %v3140
  %v3142 = vpop.f32.mrb[0].mxu0
  %3143 = vmatprep.mubr.bf16.mxu0 0
  %3144 = vmatmul.mubr.bf16.gmra.mrb[0].mxu0 %v2039
  %v3145 = vpop.f32.mrb[0].mxu0
  %v3146 = vadd.f32 %v560, %v3145
  %v3147 = vpop.f32.mrb[0].mxu0
  %v3148 = vpop.f32.mrb[0].mxu0
  %v3149 = vadd.f32 %v560, %v3148
  %v3150 = vpop.f32.mrb[0].mxu0
  %3151 = vmatprep.mubr.bf16.mxu0 0
  %3152 = vmatmul.mubr.bf16.gmra.mrb[0].mxu0 %v2042
  %v3153 = vpop.f32.mrb[0].mxu0
  %v3154 = vadd.f32 %v560, %v3153
  %v3155 = vpop.f32.mrb[0].mxu0
  %v3156 = vpop.f32.mrb[0].mxu0
  %v3157 = vadd.f32 %v560, %v3156
  %v3158 = vpop.f32.mrb[0].mxu0
  %3159 = vmatprep.mubr.bf16.mxu0 0
  %3160 = vmatmul.mubr.bf16.gmra.mrb[0].mxu0 %v2045
  %v3161 = vpop.f32.mrb[0].mxu0
  %v3162 = vadd.f32 %v560, %v3161
  %v3163 = vpop.f32.mrb[0].mxu0
  %v3164 = vpop.f32.mrb[0].mxu0
  %v3165 = vadd.f32 %v560, %v3164
  %v3166 = vpop.f32.mrb[0].mxu0
  %3167 = vmatprep.mubr.bf16.mxu0 0
  %3168 = vmatmul.mubr.bf16.gmra.mrb[0].mxu0 %v2048
  %v3169 = vpop.f32.mrb[0].mxu0
  %v3170 = vadd.f32 %v560, %v3169
  %v3171 = vpop.f32.mrb[0].mxu0
  %v3172 = vpop.f32.mrb[0].mxu0
  %v3173 = vadd.f32 %v560, %v3172
  %v3174 = vpop.f32.mrb[0].mxu0
  %3175 = vmatprep.mubr.bf16.mxu0 0
  %3176 = vmatmul.mubr.bf16.gmra.mrb[0].mxu0 %v2051
  %v3177 = vpop.f32.mrb[0].mxu0
  %v3178 = vadd.f32 %v560, %v3177
  %v3179 = vpop.f32.mrb[0].mxu0
  %v3180 = vpop.f32.mrb[0].mxu0
  %v3181 = vadd.f32 %v560, %v3180
  %v3182 = vpop.f32.mrb[0].mxu0
  %3183 = vmatprep.mubr.bf16.mxu0 0
  %3184 = vmatmul.mubr.bf16.gmra.mrb[0].mxu0 %v2054
  %v3185 = vpop.f32.mrb[0].mxu0
  %v3186 = vadd.f32 %v560, %v3185
  %v3187 = vpop.f32.mrb[0].mxu0
  %v3188 = vpop.f32.mrb[0].mxu0
  %v3189 = vadd.f32 %v560, %v3188
  %v3190 = vpop.f32.mrb[0].mxu0
  %3191 = vmatprep.mubr.bf16.mxu0 0
  %3192 = vmatmul.mubr.bf16.gmra.mrb[0].mxu0 %v2057
  %v3193 = vpop.f32.mrb[0].mxu0
  %v3194 = vadd.f32 %v560, %v3193
  %v3195 = vpop.f32.mrb[0].mxu0
  %v3196 = vpop.f32.mrb[0].mxu0
  %v3197 = vadd.f32 %v560, %v3196
  %v3198 = vpop.f32.mrb[0].mxu0
  %3199 = vmatprep.mubr.bf16.mxu0 0
  %3200 = vmatmul.mubr.bf16.gmra.mrb[0].mxu0 %v2060
  %v3201 = vpop.f32.mrb[0].mxu0
  %v3202 = vadd.f32 %v560, %v3201
  %v3203 = vpop.f32.mrb[0].mxu0
  %v3204 = vpop.f32.mrb[0].mxu0
  %v3205 = vadd.f32 %v560, %v3204
  %v3206 = vpop.f32.mrb[0].mxu0
  %3207 = vmatprep.mubr.bf16.mxu0 0
  %3208 = vmatmul.mubr.bf16.gmra.mrb[0].mxu0 %v2063
  %v3209 = vpop.f32.mrb[0].mxu0
  %v3210 = vadd.f32 %v560, %v3209
  %v3211 = vpop.f32.mrb[0].mxu0
  %v3212 = vpop.f32.mrb[0].mxu0
  %v3213 = vadd.f32 %v560, %v3212
  %v3214 = vpop.f32.mrb[0].mxu0
  %3215 = vmatprep.mubr.bf16.mxu0 0
  %3216 = vmatmul.mubr.bf16.gmra.mrb[0].mxu0 %v2066
  %v3217 = vpop.f32.mrb[0].mxu0
  %v3218 = vadd.f32 %v560, %v3217
  %v3219 = vpop.f32.mrb[0].mxu0
  %v3220 = vpop.f32.mrb[0].mxu0
  %v3221 = vadd.f32 %v560, %v3220
  %v3222 = vpop.f32.mrb[0].mxu0
  %3223 = vmatprep.mubr.bf16.mxu0 0
  %3224 = vmatmul.mubr.bf16.gmra.mrb[0].mxu0 %v2069
  %v3225 = vpop.f32.mrb[0].mxu0
  %v3226 = vadd.f32 %v560, %v3225
  %v3227 = vpop.f32.mrb[0].mxu0
  %v3228 = vpop.f32.mrb[0].mxu0
  %v3229 = vadd.f32 %v560, %v3228
  %v3230 = vpop.f32.mrb[0].mxu0
  %3231 = vmatprep.mubr.bf16.mxu0 0
  %3232 = vmatmul.mubr.bf16.gmra.mrb[0].mxu0 %v2072
  %v3233 = vpop.f32.mrb[0].mxu0
  %v3234 = vadd.f32 %v560, %v3233
  %v3235 = vpop.f32.mrb[0].mxu0
  %v3236 = vpop.f32.mrb[0].mxu0
  %v3237 = vadd.f32 %v560, %v3236
  %v3238 = vpop.f32.mrb[0].mxu0
  %3239 = vmatprep.mubr.bf16.mxu0 0
  %3240 = vmatmul.mubr.bf16.gmra.mrb[0].mxu0 %v2075
  %v3241 = vpop.f32.mrb[0].mxu0
  %v3242 = vadd.f32 %v560, %v3241
  %v3243 = vpop.f32.mrb[0].mxu0
  %v3244 = vpop.f32.mrb[0].mxu0
  %v3245 = vadd.f32 %v560, %v3244
  %v3246 = vpop.f32.mrb[0].mxu0
  %3247 = vmatprep.mubr.bf16.mxu0 0
  %3248 = vmatmul.mubr.bf16.gmra.mrb[0].mxu0 %v2078
  %v3249 = vpop.f32.mrb[0].mxu0
  %v3250 = vadd.f32 %v560, %v3249
  %v3251 = vpop.f32.mrb[0].mxu0
  %v3252 = vpop.f32.mrb[0].mxu0
  %v3253 = vadd.f32 %v560, %v3252
  %v3254 = vpop.f32.mrb[0].mxu0
  %3255 = vmatprep.mubr.bf16.mxu0 0
  %3256 = vmatmul.mubr.bf16.gmra.mrb[0].mxu0 %v2081
  %v3257 = vpop.f32.mrb[0].mxu0
  %v3258 = vadd.f32 %v560, %v3257
  %v3259 = vpop.f32.mrb[0].mxu0
  %v3260 = vpop.f32.mrb[0].mxu0
  %v3261 = vadd.f32 %v560, %v3260
  %v3262 = vpop.f32.mrb[0].mxu0
  %3263 = vmatprep.mubr.bf16.mxu0 0
  %3264 = vmatmul.mubr.bf16.gmra.mrb[0].mxu0 %v2084
  %v3265 = vpop.f32.mrb[0].mxu0
  %v3266 = vadd.f32 %v560, %v3265
  %v3267 = vpop.f32.mrb[0].mxu0
  %v3268 = vpop.f32.mrb[0].mxu0
  %v3269 = vadd.f32 %v560, %v3268
  %v3270 = vpop.f32.mrb[0].mxu0
  %3271 = vmatprep.mubr.bf16.mxu0 0
  %3272 = vmatmul.mubr.bf16.gmra.mrb[0].mxu0 %v2087
  %v3273 = vpop.f32.mrb[0].mxu0
  %v3274 = vadd.f32 %v560, %v3273
  %v3275 = vpop.f32.mrb[0].mxu0
  %v3276 = vpop.f32.mrb[0].mxu0
  %v3277 = vadd.f32 %v560, %v3276
  %v3278 = vpop.f32.mrb[0].mxu0
  %3279 = vmatprep.mubr.bf16.mxu0 0
  %3280 = vmatmul.mubr.bf16.gmra.mrb[0].mxu0 %v2090
  %v3281 = vpop.f32.mrb[0].mxu0
  %v3282 = vadd.f32 %v560, %v3281
  %v3283 = vpop.f32.mrb[0].mxu0
  %v3284 = vpop.f32.mrb[0].mxu0
  %v3285 = vadd.f32 %v560, %v3284
  %v3286 = vpop.f32.mrb[0].mxu0
  %3287 = vmatprep.mubr.bf16.mxu0 0
  %3288 = vmatmul.mubr.bf16.gmra.mrb[0].mxu0 %v2093
  %v3289 = vpop.f32.mrb[0].mxu0
  %v3290 = vadd.f32 %v560, %v3289
  %v3291 = vpop.f32.mrb[0].mxu0
  %v3292 = vpop.f32.mrb[0].mxu0
  %v3293 = vadd.f32 %v560, %v3292
  %v3294 = vpop.f32.mrb[0].mxu0
  %3295 = vmatprep.mubr.bf16.mxu0 0
  %3296 = vmatmul.mubr.bf16.gmra.mrb[0].mxu0 %v2096
  %v3297 = vpop.f32.mrb[0].mxu0
  %v3298 = vadd.f32 %v560, %v3297
  %v3299 = vpop.f32.mrb[0].mxu0
  %v3300 = vpop.f32.mrb[0].mxu0
  %v3301 = vadd.f32 %v560, %v3300
  %v3302 = vpop.f32.mrb[0].mxu0
  %3303 = vmatprep.mubr.bf16.mxu0 0
  %3304 = vmatmul.mubr.bf16.gmra.mrb[0].mxu0 %v2099
  %v3305 = vpop.f32.mrb[0].mxu0
  %v3306 = vadd.f32 %v560, %v3305
  %v3307 = vpop.f32.mrb[0].mxu0
  %v3308 = vpop.f32.mrb[0].mxu0
  %v3309 = vadd.f32 %v560, %v3308
  %v3310 = vpop.f32.mrb[0].mxu0
  %3311 = vmatprep.mubr.bf16.mxu0 0
  %3312 = vmatmul.mubr.bf16.gmra.mrb[0].mxu0 %v2102
  %v3313 = vpop.f32.mrb[0].mxu0
  %v3314 = vadd.f32 %v560, %v3313
  %v3315 = vpop.f32.mrb[0].mxu0
  %v3316 = vpop.f32.mrb[0].mxu0
  %v3317 = vadd.f32 %v560, %v3316
  %v3318 = vpop.f32.mrb[0].mxu0
  %3319 = vmatprep.mubr.bf16.mxu0 0
  %3320 = vmatmul.mubr.bf16.gmra.mrb[0].mxu0 %v2105
  %v3321 = vpop.f32.mrb[0].mxu0
  %v3322 = vadd.f32 %v560, %v3321
  %v3323 = vpop.f32.mrb[0].mxu0
  %v3324 = vpop.f32.mrb[0].mxu0
  %v3325 = vadd.f32 %v560, %v3324
  %v3326 = vpop.f32.mrb[0].mxu0
  %3327 = vmatprep.mubr.bf16.mxu0 0
  %3328 = vmatmul.mubr.bf16.gmra.mrb[0].mxu0 %v2108
  %v3329 = vpop.f32.mrb[0].mxu0
  %v3330 = vadd.f32 %v560, %v3329
  %v3331 = vpop.f32.mrb[0].mxu0
  %v3332 = vpop.f32.mrb[0].mxu0
  %v3333 = vadd.f32 %v560, %v3332
  %v3334 = vpop.f32.mrb[0].mxu0
  %3335 = vmatprep.mubr.bf16.mxu0 0
  %3336 = vmatmul.mubr.bf16.gmra.mrb[0].mxu0 %v2111
  %v3337 = vpop.f32.mrb[0].mxu0
  %v3338 = vadd.f32 %v560, %v3337
  %v3339 = vpop.f32.mrb[0].mxu0
  %v3340 = vpop.f32.mrb[0].mxu0
  %v3341 = vadd.f32 %v560, %v3340
  %v3342 = vpop.f32.mrb[0].mxu0
  %3343 = vmatprep.mubr.bf16.mxu0 0
  %3344 = vmatmul.mubr.bf16.gmra.mrb[0].mxu0 %v2114
  %v3345 = vpop.f32.mrb[0].mxu0
  %v3346 = vadd.f32 %v560, %v3345
  %v3347 = vpop.f32.mrb[0].mxu0
  %v3348 = vpop.f32.mrb[0].mxu0
  %v3349 = vadd.f32 %v560, %v3348
  %v3350 = vpop.f32.mrb[0].mxu0
  %3351 = vmatprep.mubr.bf16.mxu0 0
  %3352 = vmatmul.mubr.bf16.gmra.mrb[0].mxu0 %v2117
  %v3353 = vpop.f32.mrb[0].mxu0
  %v3354 = vadd.f32 %v560, %v3353
  %v3355 = vpop.f32.mrb[0].mxu0
  %v3356 = vpop.f32.mrb[0].mxu0
  %v3357 = vadd.f32 %v560, %v3356
  %v3358 = vpop.f32.mrb[0].mxu0
  %3359 = vmatprep.mubr.bf16.mxu0 0
  %3360 = vmatmul.mubr.bf16.gmra.mrb[0].mxu0 %v2120
  %v3361 = vpop.f32.mrb[0].mxu0
  %v3362 = vadd.f32 %v560, %v3361
  %v3363 = vpop.f32.mrb[0].mxu0
  %v3364 = vpop.f32.mrb[0].mxu0
  %v3365 = vadd.f32 %v560, %v3364
  %v3366 = vpop.f32.mrb[0].mxu0
  %3367 = vmatprep.mubr.bf16.mxu0 0
  %3368 = vmatmul.mubr.bf16.gmra.mrb[0].mxu0 %v2123
  %v3369 = vpop.f32.mrb[0].mxu0
  %v3370 = vadd.f32 %v560, %v3369
  %v3371 = vpop.f32.mrb[0].mxu0
  %v3372 = vpop.f32.mrb[0].mxu0
  %v3373 = vadd.f32 %v560, %v3372
  %v3374 = vpop.f32.mrb[0].mxu0
  %3375 = vmatprep.mubr.bf16.mxu0 0
  %3376 = vmatmul.mubr.bf16.gmra.mrb[0].mxu0 %v2126
  %v3377 = vpop.f32.mrb[0].mxu0
  %v3378 = vadd.f32 %v560, %v3377
  %v3379 = vpop.f32.mrb[0].mxu0
  %v3380 = vpop.f32.mrb[0].mxu0
  %v3381 = vadd.f32 %v560, %v3380
  %v3382 = vpop.f32.mrb[0].mxu0
  %3383 = vmatprep.mubr.bf16.mxu0 0
  %3384 = vmatmul.mubr.bf16.gmra.mrb[0].mxu0 %v2129
  %v3385 = vpop.f32.mrb[0].mxu0
  %v3386 = vadd.f32 %v560, %v3385
  %v3387 = vpop.f32.mrb[0].mxu0
  %v3388 = vpop.f32.mrb[0].mxu0
  %v3389 = vadd.f32 %v560, %v3388
  %v3390 = vpop.f32.mrb[0].mxu0
  %3391 = vmatprep.mubr.bf16.mxu0 0
  %3392 = vmatmul.mubr.bf16.gmra.mrb[0].mxu0 %v2132
  %v3393 = vpop.f32.mrb[0].mxu0
  %v3394 = vadd.f32 %v560, %v3393
  %v3395 = vpop.f32.mrb[0].mxu0
  %v3396 = vpop.f32.mrb[0].mxu0
  %v3397 = vadd.f32 %v560, %v3396
  %v3398 = vpop.f32.mrb[0].mxu0
  %3399 = vmatprep.mubr.bf16.mxu0 0
  %3400 = vmatmul.mubr.bf16.gmra.mrb[0].mxu0 %v2135
  %v3401 = vpop.f32.mrb[0].mxu0
  %v3402 = vadd.f32 %v560, %v3401
  %v3403 = vpop.f32.mrb[0].mxu0
  %v3404 = vpop.f32.mrb[0].mxu0
  %v3405 = vadd.f32 %v560, %v3404
  %v3406 = vpop.f32.mrb[0].mxu0
  %3407 = vmatprep.mubr.bf16.mxu0 0
  %3408 = vmatmul.mubr.bf16.gmra.mrb[0].mxu0 %v2138
  %v3409 = vpop.f32.mrb[0].mxu0
  %v3410 = vadd.f32 %v560, %v3409
  %v3411 = vpop.f32.mrb[0].mxu0
  %v3412 = vpop.f32.mrb[0].mxu0
  %v3413 = vadd.f32 %v560, %v3412
  %v3414 = vpop.f32.mrb[0].mxu0
  %3415 = vmatprep.mubr.bf16.mxu0 0
  %3416 = vmatmul.mubr.bf16.gmra.mrb[0].mxu0 %v2141
  %v3417 = vpop.f32.mrb[0].mxu0
  %v3418 = vadd.f32 %v560, %v3417
  %v3419 = vpop.f32.mrb[0].mxu0
  %v3420 = vpop.f32.mrb[0].mxu0
  %v3421 = vadd.f32 %v560, %v3420
  %v3422 = vpop.f32.mrb[0].mxu0
  %3423 = vmatprep.mubr.bf16.mxu0 0
  %3424 = vmatmul.mubr.bf16.gmra.mrb[0].mxu0 %v2144
  %v3425 = vpop.f32.mrb[0].mxu0
  %v3426 = vadd.f32 %v560, %v3425
  %v3427 = vpop.f32.mrb[0].mxu0
  %v3428 = vpop.f32.mrb[0].mxu0
  %v3429 = vadd.f32 %v560, %v3428
  %v3430 = vpop.f32.mrb[0].mxu0
  %3431 = vmatprep.mubr.bf16.mxu0 0
  %3432 = vmatmul.mubr.bf16.gmra.mrb[0].mxu0 %v2147
  %v3433 = vpop.f32.mrb[0].mxu0
  %v3434 = vadd.f32 %v560, %v3433
  %v3435 = vpop.f32.mrb[0].mxu0
  %v3436 = vpop.f32.mrb[0].mxu0
  %v3437 = vadd.f32 %v560, %v3436
  %v3438 = vpop.f32.mrb[0].mxu0
  %3439 = vmatprep.mubr.bf16.mxu0 0
  %3440 = vmatmul.mubr.bf16.gmra.mrb[0].mxu0 %v2150
  %v3441 = vpop.f32.mrb[0].mxu0
  %v3442 = vadd.f32 %v560, %v3441
  %v3443 = vpop.f32.mrb[0].mxu0
  %v3444 = vpop.f32.mrb[0].mxu0
  %v3445 = vadd.f32 %v560, %v3444
  %v3446 = vpop.f32.mrb[0].mxu0
  %3447 = vmatprep.mubr.bf16.mxu0 0
  %3448 = vmatmul.mubr.bf16.gmra.mrb[0].mxu0 %v2153
  %v3449 = vpop.f32.mrb[0].mxu0
  %v3450 = vadd.f32 %v560, %v3449
  %v3451 = vpop.f32.mrb[0].mxu0
  %v3452 = vpop.f32.mrb[0].mxu0
  %v3453 = vadd.f32 %v560, %v3452
  %v3454 = vpop.f32.mrb[0].mxu0
  %3455 = vmatprep.mubr.bf16.mxu0 0
  %3456 = vmatmul.mubr.bf16.gmra.mrb[0].mxu0 %v2156
  %v3457 = vpop.f32.mrb[0].mxu0
  %v3458 = vadd.f32 %v560, %v3457
  %v3459 = vpop.f32.mrb[0].mxu0
  %v3460 = vpop.f32.mrb[0].mxu0
  %v3461 = vadd.f32 %v560, %v3460
  %v3462 = vpop.f32.mrb[0].mxu0
  %3463 = vmatprep.mubr.bf16.mxu0 0
  %3464 = vmatmul.mubr.bf16.gmra.mrb[0].mxu0 %v2159
  %v3465 = vpop.f32.mrb[0].mxu0
  %v3466 = vadd.f32 %v560, %v3465
  %v3467 = vpop.f32.mrb[0].mxu0
  %v3468 = vpop.f32.mrb[0].mxu0
  %v3469 = vadd.f32 %v560, %v3468
  %v3470 = vpop.f32.mrb[0].mxu0
  %3471 = vmatprep.mubr.bf16.mxu0 0
  %3472 = vmatmul.mubr.bf16.gmra.mrb[0].mxu0 %v2162
  %v3473 = vpop.f32.mrb[0].mxu0
  %v3474 = vadd.f32 %v560, %v3473
  %v3475 = vpop.f32.mrb[0].mxu0
  %v3476 = vpop.f32.mrb[0].mxu0
  %v3477 = vadd.f32 %v560, %v3476
  %v3478 = vpop.f32.mrb[0].mxu0
  %3479 = vmatprep.mubr.bf16.mxu0 0
  %3480 = vmatmul.mubr.bf16.gmra.mrb[0].mxu0 %v2165
  %v3481 = vpop.f32.mrb[0].mxu0
  %v3482 = vadd.f32 %v560, %v3481
  %v3483 = vpop.f32.mrb[0].mxu0
  %v3484 = vpop.f32.mrb[0].mxu0
  %v3485 = vadd.f32 %v560, %v3484
  %v3486 = vpop.f32.mrb[0].mxu0
  %3487 = vmatprep.mubr.bf16.mxu0 0
  %3488 = vmatmul.mubr.bf16.gmra.mrb[0].mxu0 %v2168
  %v3489 = vpop.f32.mrb[0].mxu0
  %v3490 = vadd.f32 %v560, %v3489
  %v3491 = vpop.f32.mrb[0].mxu0
  %v3492 = vpop.f32.mrb[0].mxu0
  %v3493 = vadd.f32 %v560, %v3492
  %v3494 = vpop.f32.mrb[0].mxu0
  %3495 = vmatprep.mubr.bf16.mxu0 0
  %3496 = vmatmul.mubr.bf16.gmra.mrb[0].mxu0 %v2171
  %v3497 = vpop.f32.mrb[0].mxu0
  %v3498 = vadd.f32 %v560, %v3497
  %v3499 = vpop.f32.mrb[0].mxu0
  %v3500 = vpop.f32.mrb[0].mxu0
  %v3501 = vadd.f32 %v560, %v3500
  %v3502 = vpop.f32.mrb[0].mxu0
  %3503 = vmatprep.mubr.bf16.mxu0 0
  %3504 = vmatmul.mubr.bf16.gmra.mrb[0].mxu0 %v2174
  %v3505 = vpop.f32.mrb[0].mxu0
  %v3506 = vadd.f32 %v560, %v3505
  %v3507 = vpop.f32.mrb[0].mxu0
  %v3508 = vpop.f32.mrb[0].mxu0
  %v3509 = vadd.f32 %v560, %v3508
  %v3510 = vpop.f32.mrb[0].mxu0
  %3511 = vmatprep.mubr.bf16.mxu0 0
  %3512 = vmatmul.mubr.bf16.gmra.mrb[0].mxu0 %v2177
  %v3513 = vpop.f32.mrb[0].mxu0
  %v3514 = vadd.f32 %v560, %v3513
  %v3515 = vpop.f32.mrb[0].mxu0
  %v3516 = vpop.f32.mrb[0].mxu0
  %v3517 = vadd.f32 %v560, %v3516
  %v3518 = vpop.f32.mrb[0].mxu0
  %3519 = vmatprep.mubr.bf16.mxu0 0
  %3520 = vmatmul.mubr.bf16.gmra.mrb[0].mxu0 %v2180
  %v3521 = vpop.f32.mrb[0].mxu0
  %v3522 = vadd.f32 %v560, %v3521
  %v3523 = vpop.f32.mrb[0].mxu0
  %v3524 = vpop.f32.mrb[0].mxu0
  %v3525 = vadd.f32 %v560, %v3524
  %v3526 = vpop.f32.mrb[0].mxu0
  %3527 = vmatprep.mubr.bf16.mxu0 0
  %3528 = vmatmul.mubr.bf16.gmra.mrb[0].mxu0 %v2183
  %v3529 = vpop.f32.mrb[0].mxu0
  %v3530 = vadd.f32 %v560, %v3529
  %v3531 = vpop.f32.mrb[0].mxu0
  %v3532 = vpop.f32.mrb[0].mxu0
  %v3533 = vadd.f32 %v560, %v3532
  %v3534 = vpop.f32.mrb[0].mxu0
  %3535 = vmatprep.mubr.bf16.mxu0 0
  %3536 = vmatmul.mubr.bf16.gmra.mrb[0].mxu0 %v2186
  %v3537 = vpop.f32.mrb[0].mxu0
  %v3538 = vadd.f32 %v560, %v3537
  %v3539 = vpop.f32.mrb[0].mxu0
  %v3540 = vpop.f32.mrb[0].mxu0
  %v3541 = vadd.f32 %v560, %v3540
  %v3542 = vpop.f32.mrb[0].mxu0
  %3543 = vmatprep.mubr.bf16.mxu0 0
  %3544 = vmatmul.mubr.bf16.gmra.mrb[0].mxu0 %v2189
  %v3545 = vpop.f32.mrb[0].mxu0
  %v3546 = vadd.f32 %v560, %v3545
  %v3547 = vpop.f32.mrb[0].mxu0
  %v3548 = vpop.f32.mrb[0].mxu0
  %v3549 = vadd.f32 %v560, %v3548
  %v3550 = vpop.f32.mrb[0].mxu0
  %3551 = vmatprep.mubr.bf16.mxu0 0
  %3552 = vmatmul.mubr.bf16.gmra.mrb[0].mxu0 %v2192
  %v3553 = vpop.f32.mrb[0].mxu0
  %v3554 = vadd.f32 %v560, %v3553
  %v3555 = vpop.f32.mrb[0].mxu0
  %v3556 = vpop.f32.mrb[0].mxu0
  %v3557 = vadd.f32 %v560, %v3556
  %v3558 = vpop.f32.mrb[0].mxu0
  %3559 = vmatprep.mubr.bf16.mxu0 0
  %3560 = vmatmul.mubr.bf16.gmra.mrb[0].mxu0 %v2195
  %v3561 = vpop.f32.mrb[0].mxu0
  %v3562 = vadd.f32 %v560, %v3561
  %v3563 = vpop.f32.mrb[0].mxu0
  %v3564 = vpop.f32.mrb[0].mxu0
  %v3565 = vadd.f32 %v560, %v3564
  %v3566 = vpop.f32.mrb[0].mxu0
  %3567 = vmatprep.mubr.bf16.mxu0 0
  %3568 = vmatmul.mubr.bf16.gmra.mrb[0].mxu0 %v2198
  %v3569 = vpop.f32.mrb[0].mxu0
  %v3570 = vadd.f32 %v560, %v3569
  %v3571 = vpop.f32.mrb[0].mxu0
  %v3572 = vpop.f32.mrb[0].mxu0
  %v3573 = vadd.f32 %v560, %v3572
  %v3574 = vpop.f32.mrb[0].mxu0
  %3575 = vmatprep.mubr.bf16.mxu0 0
  %3576 = vmatmul.mubr.bf16.gmra.mrb[0].mxu0 %v2201
  %v3577 = vpop.f32.mrb[0].mxu0
  %v3578 = vadd.f32 %v560, %v3577
  %v3579 = vpop.f32.mrb[0].mxu0
  %v3580 = vpop.f32.mrb[0].mxu0
  %v3581 = vadd.f32 %v560, %v3580
  %v3582 = vpop.f32.mrb[0].mxu0
  %3583 = vmatprep.mubr.bf16.mxu0 0
  %3584 = vmatmul.mubr.bf16.gmra.mrb[0].mxu0 %v2204
  %v3585 = vpop.f32.mrb[0].mxu0
  %v3586 = vadd.f32 %v560, %v3585
  %v3587 = vpop.f32.mrb[0].mxu0
  %v3588 = vpop.f32.mrb[0].mxu0
  %v3589 = vadd.f32 %v560, %v3588
  %v3590 = vpop.f32.mrb[0].mxu0
  %3591 = vmatprep.mubr.bf16.mxu0 0
  %3592 = vmatmul.mubr.bf16.gmra.mrb[0].mxu0 %v2207
  %v3593 = vpop.f32.mrb[0].mxu0
  %v3594 = vadd.f32 %v560, %v3593
  %v3595 = vpop.f32.mrb[0].mxu0
  %v3596 = vpop.f32.mrb[0].mxu0
  %v3597 = vadd.f32 %v560, %v3596
  %v3598 = vpop.f32.mrb[0].mxu0
  %3599 = vmatprep.mubr.bf16.mxu0 0
  %3600 = vmatmul.mubr.bf16.gmra.mrb[0].mxu0 %v2210
  %v3601 = vpop.f32.mrb[0].mxu0
  %v3602 = vadd.f32 %v560, %v3601
  %v3603 = vpop.f32.mrb[0].mxu0
  %v3604 = vpop.f32.mrb[0].mxu0
  %v3605 = vadd.f32 %v560, %v3604
  %v3606 = vpop.f32.mrb[0].mxu0
  %3607 = vmatprep.mubr.bf16.mxu0 0
  %3608 = vmatmul.mubr.bf16.gmra.mrb[0].mxu0 %v2213
  %v3609 = vpop.f32.mrb[0].mxu0
  %v3610 = vadd.f32 %v560, %v3609
  %v3611 = vpop.f32.mrb[0].mxu0
  %v3612 = vpop.f32.mrb[0].mxu0
  %v3613 = vadd.f32 %v560, %v3612
  %v3614 = vpop.f32.mrb[0].mxu0
  %3615 = vmatprep.mubr.bf16.mxu0 0
  %3616 = vmatmul.mubr.bf16.gmra.mrb[0].mxu0 %v2216
  %v3617 = vpop.f32.mrb[0].mxu0
  %v3618 = vadd.f32 %v560, %v3617
  %v3619 = vpop.f32.mrb[0].mxu0
  %v3620 = vpop.f32.mrb[0].mxu0
  %v3621 = vadd.f32 %v560, %v3620
  %v3622 = vpop.f32.mrb[0].mxu0
  %3623 = vmatprep.mubr.bf16.mxu0 0
  %3624 = vmatmul.mubr.bf16.gmra.mrb[0].mxu0 %v2219
  %v3625 = vpop.f32.mrb[0].mxu0
  %v3626 = vadd.f32 %v560, %v3625
  %v3627 = vpop.f32.mrb[0].mxu0
  %v3628 = vpop.f32.mrb[0].mxu0
  %v3629 = vadd.f32 %v560, %v3628
  %v3630 = vpop.f32.mrb[0].mxu0
  %3631 = vmatprep.mubr.bf16.mxu0 0
  %3632 = vmatmul.mubr.bf16.gmra.mrb[0].mxu0 %v2222
  %v3633 = vpop.f32.mrb[0].mxu0
  %v3634 = vadd.f32 %v560, %v3633
  %v3635 = vpop.f32.mrb[0].mxu0
  %v3636 = vpop.f32.mrb[0].mxu0
  %v3637 = vadd.f32 %v560, %v3636
  %v3638 = vpop.f32.mrb[0].mxu0
  %3639 = vmatprep.mubr.bf16.mxu0 0
  %3640 = vmatmul.mubr.bf16.gmra.mrb[0].mxu0 %v2225
  %v3641 = vpop.f32.mrb[0].mxu0
  %v3642 = vadd.f32 %v560, %v3641
  %v3643 = vpop.f32.mrb[0].mxu0
  %v3644 = vpop.f32.mrb[0].mxu0
  %v3645 = vadd.f32 %v560, %v3644
  %v3646 = vpop.f32.mrb[0].mxu0
  %3647 = vmatprep.mubr.bf16.mxu0 0
  %3648 = vmatmul.mubr.bf16.gmra.mrb[0].mxu0 %v2228
  %v3649 = vpop.f32.mrb[0].mxu0
  %v3650 = vadd.f32 %v560, %v3649
  %v3651 = vpop.f32.mrb[0].mxu0
  %v3652 = vpop.f32.mrb[0].mxu0
  %v3653 = vadd.f32 %v560, %v3652
  %v3654 = vpop.f32.mrb[0].mxu0
  %3655 = vmatprep.mubr.bf16.mxu0 0
  %3656 = vmatmul.mubr.bf16.gmra.mrb[0].mxu0 %v2231
  %v3657 = vpop.f32.mrb[0].mxu0
  %v3658 = vadd.f32 %v560, %v3657
  %v3659 = vpop.f32.mrb[0].mxu0
  %v3660 = vpop.f32.mrb[0].mxu0
  %v3661 = vadd.f32 %v560, %v3660
  %v3662 = vpop.f32.mrb[0].mxu0
  %3663 = vmatprep.mubr.bf16.mxu0 0
  %3664 = vmatmul.mubr.bf16.gmra.mrb[0].mxu0 %v2234
  %v3665 = vpop.f32.mrb[0].mxu0
  %v3666 = vadd.f32 %v560, %v3665
  %v3667 = vpop.f32.mrb[0].mxu0
  %v3668 = vpop.f32.mrb[0].mxu0
  %v3669 = vadd.f32 %v560, %v3668
  %v3670 = vpop.f32.mrb[0].mxu0
  %3671 = vmatprep.mubr.bf16.mxu0 0
  %3672 = vmatmul.mubr.bf16.gmra.mrb[0].mxu0 %v2237
  %v3673 = vpop.f32.mrb[0].mxu0
  %v3674 = vadd.f32 %v560, %v3673
  %v3675 = vpop.f32.mrb[0].mxu0
  %v3676 = vpop.f32.mrb[0].mxu0
  %v3677 = vadd.f32 %v560, %v3676
  %v3678 = vpop.f32.mrb[0].mxu0
  %3679 = vmatprep.mubr.bf16.mxu0 0
  %3680 = vmatmul.mubr.bf16.gmra.mrb[0].mxu0 %v2240
  %v3681 = vpop.f32.mrb[0].mxu0
  %v3682 = vadd.f32 %v560, %v3681
  %v3683 = vpop.f32.mrb[0].mxu0
  %v3684 = vpop.f32.mrb[0].mxu0
  %v3685 = vadd.f32 %v560, %v3684
  %v3686 = vpop.f32.mrb[0].mxu0
  %3687 = vmatprep.mubr.bf16.mxu0 0
  %3688 = vmatmul.mubr.bf16.gmra.mrb[0].mxu0 %v2243
  %v3689 = vpop.f32.mrb[0].mxu0
  %v3690 = vadd.f32 %v560, %v3689
  %v3691 = vpop.f32.mrb[0].mxu0
  %v3692 = vpop.f32.mrb[0].mxu0
  %v3693 = vadd.f32 %v560, %v3692
  %v3694 = vpop.f32.mrb[0].mxu0
  %3695 = vmatprep.mubr.bf16.mxu0 0
  %3696 = vmatmul.mubr.bf16.gmra.mrb[0].mxu0 %v2246
  %v3697 = vpop.f32.mrb[0].mxu0
  %v3698 = vadd.f32 %v560, %v3697
  %v3699 = vpop.f32.mrb[0].mxu0
  %v3700 = vpop.f32.mrb[0].mxu0
  %v3701 = vadd.f32 %v560, %v3700
  %v3702 = vpop.f32.mrb[0].mxu0
  %3703 = vmatprep.mubr.bf16.mxu0 0
  %3704 = vmatmul.mubr.bf16.gmra.mrb[0].mxu0 %v2249
  %v3705 = vpop.f32.mrb[0].mxu0
  %v3706 = vadd.f32 %v560, %v3705
  %v3707 = vpop.f32.mrb[0].mxu0
  %v3708 = vpop.f32.mrb[0].mxu0
  %v3709 = vadd.f32 %v560, %v3708
  %v3710 = vpop.f32.mrb[0].mxu0
  %3711 = vmatprep.mubr.bf16.mxu0 0
  %3712 = vmatmul.mubr.bf16.gmra.mrb[0].mxu0 %v2252
  %v3713 = vpop.f32.mrb[0].mxu0
  %v3714 = vadd.f32 %v560, %v3713
  %v3715 = vpop.f32.mrb[0].mxu0
  %v3716 = vpop.f32.mrb[0].mxu0
  %v3717 = vadd.f32 %v560, %v3716
  %v3718 = vpop.f32.mrb[0].mxu0
  %3719 = vmatprep.mubr.bf16.mxu0 0
  %3720 = vmatmul.mubr.bf16.gmra.mrb[0].mxu0 %v2255
  %v3721 = vpop.f32.mrb[0].mxu0
  %v3722 = vadd.f32 %v560, %v3721
  %v3723 = vpop.f32.mrb[0].mxu0
  %v3724 = vpop.f32.mrb[0].mxu0
  %v3725 = vadd.f32 %v560, %v3724
  %v3726 = vpop.f32.mrb[0].mxu0
  %3727 = vmatprep.mubr.bf16.mxu0 0
  %3728 = vmatmul.mubr.bf16.gmra.mrb[0].mxu0 %v2258
  %v3729 = vpop.f32.mrb[0].mxu0
  %v3730 = vadd.f32 %v560, %v3729
  %v3731 = vpop.f32.mrb[0].mxu0
  %v3732 = vpop.f32.mrb[0].mxu0
  %v3733 = vadd.f32 %v560, %v3732
  %v3734 = vpop.f32.mrb[0].mxu0
  %3735 = vmatprep.mubr.bf16.mxu0 0
  %3736 = vmatmul.mubr.bf16.gmra.mrb[0].mxu0 %v2261
  %v3737 = vpop.f32.mrb[0].mxu0
  %v3738 = vadd.f32 %v560, %v3737
  %v3739 = vpop.f32.mrb[0].mxu0
  %v3740 = vpop.f32.mrb[0].mxu0
  %v3741 = vadd.f32 %v560, %v3740
  %v3742 = vpop.f32.mrb[0].mxu0
  %3743 = vmatprep.mubr.bf16.mxu0 0
  %3744 = vmatmul.mubr.bf16.gmra.mrb[0].mxu0 %v2264
  %v3745 = vpop.f32.mrb[0].mxu0
  %v3746 = vadd.f32 %v560, %v3745
  %v3747 = vpop.f32.mrb[0].mxu0
  %v3748 = vpop.f32.mrb[0].mxu0
  %v3749 = vadd.f32 %v560, %v3748
  %v3750 = vpop.f32.mrb[0].mxu0
  %3751 = vmatprep.mubr.bf16.mxu0 0
  %3752 = vmatmul.mubr.bf16.gmra.mrb[0].mxu0 %v2267
  %v3753 = vpop.f32.mrb[0].mxu0
  %v3754 = vadd.f32 %v560, %v3753
  %v3755 = vpop.f32.mrb[0].mxu0
  %v3756 = vpop.f32.mrb[0].mxu0
  %v3757 = vadd.f32 %v560, %v3756
  %v3758 = vpop.f32.mrb[0].mxu0
  %3759 = vmatprep.mubr.bf16.mxu0 0
  %3760 = vmatmul.mubr.bf16.gmra.mrb[0].mxu0 %v2270
  %v3761 = vpop.f32.mrb[0].mxu0
  %v3762 = vadd.f32 %v560, %v3761
  %v3763 = vpop.f32.mrb[0].mxu0
  %v3764 = vpop.f32.mrb[0].mxu0
  %v3765 = vadd.f32 %v560, %v3764
  %v3766 = vpop.f32.mrb[0].mxu0
  %3767 = vmatprep.mubr.bf16.mxu0 0
  %3768 = vmatmul.mubr.bf16.gmra.mrb[0].mxu0 %v2273
  %v3769 = vpop.f32.mrb[0].mxu0
  %v3770 = vadd.f32 %v560, %v3769
  %v3771 = vpop.f32.mrb[0].mxu0
  %v3772 = vpop.f32.mrb[0].mxu0
  %v3773 = vadd.f32 %v560, %v3772
  %v3774 = vpop.f32.mrb[0].mxu0
  %3775 = vmatprep.mubr.bf16.mxu0 0
  %3776 = vmatmul.mubr.bf16.gmra.mrb[0].mxu0 %v2276
  %v3777 = vpop.f32.mrb[0].mxu0
  %v3778 = vadd.f32 %v560, %v3777
  %v3779 = vpop.f32.mrb[0].mxu0
  %v3780 = vpop.f32.mrb[0].mxu0
  %v3781 = vadd.f32 %v560, %v3780
  %v3782 = vpop.f32.mrb[0].mxu0
  %3783 = vmatprep.mubr.bf16.mxu0 0
  %3784 = vmatmul.mubr.bf16.gmra.mrb[0].mxu0 %v2279
  %v3785 = vpop.f32.mrb[0].mxu0
  %v3786 = vadd.f32 %v560, %v3785
  %v3787 = vpop.f32.mrb[0].mxu0
  %v3788 = vpop.f32.mrb[0].mxu0
  %v3789 = vadd.f32 %v560, %v3788
  %v3790 = vpop.f32.mrb[0].mxu0
  %3791 = vmatprep.mubr.bf16.mxu0 0
  %3792 = vmatmul.mubr.bf16.gmra.mrb[0].mxu0 %v2282
  %v3793 = vpop.f32.mrb[0].mxu0
  %v3794 = vadd.f32 %v560, %v3793
  %v3795 = vpop.f32.mrb[0].mxu0
  %v3796 = vpop.f32.mrb[0].mxu0
  %v3797 = vadd.f32 %v560, %v3796
  %v3798 = vpop.f32.mrb[0].mxu0
  %3799 = vmatprep.mubr.bf16.mxu0 0
  %3800 = vmatmul.mubr.bf16.gmra.mrb[0].mxu0 %v2285
  %v3801 = vpop.f32.mrb[0].mxu0
  %v3802 = vadd.f32 %v560, %v3801
  %v3803 = vpop.f32.mrb[0].mxu0
  %v3804 = vpop.f32.mrb[0].mxu0
  %v3805 = vadd.f32 %v560, %v3804
  %v3806 = vpop.f32.mrb[0].mxu0
  %3807 = vmatprep.mubr.bf16.mxu0 0
  %3808 = vmatmul.mubr.bf16.gmra.mrb[0].mxu0 %v2288
  %v3809 = vpop.f32.mrb[0].mxu0
  %v3810 = vadd.f32 %v560, %v3809
  %v3811 = vpop.f32.mrb[0].mxu0
  %v3812 = vpop.f32.mrb[0].mxu0
  %v3813 = vadd.f32 %v560, %v3812
  %v3814 = vpop.f32.mrb[0].mxu0
  %3815 = vmatprep.mubr.bf16.mxu0 0
  %3816 = vmatmul.mubr.bf16.gmra.mrb[0].mxu0 %v2291
  %v3817 = vpop.f32.mrb[0].mxu0
  %v3818 = vadd.f32 %v560, %v3817
  %v3819 = vpop.f32.mrb[0].mxu0
  %v3820 = vpop.f32.mrb[0].mxu0
  %v3821 = vadd.f32 %v560, %v3820
  %v3822 = vpop.f32.mrb[0].mxu0
  %3823 = vmatprep.mubr.bf16.mxu0 0
  %3824 = vmatmul.mubr.bf16.gmra.mrb[0].mxu0 %v2294
  %v3825 = vpop.f32.mrb[0].mxu0
  %v3826 = vadd.f32 %v560, %v3825
  %v3827 = vpop.f32.mrb[0].mxu0
  %v3828 = vpop.f32.mrb[0].mxu0
  %v3829 = vadd.f32 %v560, %v3828
  %v3830 = vpop.f32.mrb[0].mxu0
  %3831 = vmatprep.mubr.bf16.mxu0 0
  %3832 = vmatmul.mubr.bf16.gmra.mrb[0].mxu0 %v2297
  %v3833 = vpop.f32.mrb[0].mxu0
  %v3834 = vadd.f32 %v560, %v3833
  %v3835 = vpop.f32.mrb[0].mxu0
  %v3836 = vpop.f32.mrb[0].mxu0
  %v3837 = vadd.f32 %v560, %v3836
  %v3838 = vpop.f32.mrb[0].mxu0
  %3839 = vmatprep.mubr.bf16.mxu0 0
  %3840 = vmatmul.mubr.bf16.gmra.mrb[0].mxu0 %v2300
  %v3841 = vpop.f32.mrb[0].mxu0
  %v3842 = vadd.f32 %v560, %v3841
  %v3843 = vpop.f32.mrb[0].mxu0
  %v3844 = vpop.f32.mrb[0].mxu0
  %v3845 = vadd.f32 %v560, %v3844
  %v3846 = vpop.f32.mrb[0].mxu0
  %3847 = vmatprep.mubr.bf16.mxu0 0
  %3848 = vmatmul.mubr.bf16.gmra.mrb[0].mxu0 %v2303
  %v3849 = vpop.f32.mrb[0].mxu0
  %v3850 = vadd.f32 %v560, %v3849
  %v3851 = vpop.f32.mrb[0].mxu0
  %v3852 = vpop.f32.mrb[0].mxu0
  %v3853 = vadd.f32 %v560, %v3852
  %v3854 = vpop.f32.mrb[0].mxu0
  %3855 = vmatprep.mubr.bf16.mxu0 0
  %3856 = vmatmul.mubr.bf16.gmra.mrb[0].mxu0 %v2306
  %v3857 = vpop.f32.mrb[0].mxu0
  %v3858 = vadd.f32 %v560, %v3857
  %v3859 = vpop.f32.mrb[0].mxu0
  %v3860 = vpop.f32.mrb[0].mxu0
  %v3861 = vadd.f32 %v560, %v3860
  %v3862 = vpop.f32.mrb[0].mxu0
  %3863 = vmatprep.mubr.bf16.mxu0 0
  %3864 = vmatmul.mubr.bf16.gmra.mrb[0].mxu0 %v2309
  %v3865 = vpop.f32.mrb[0].mxu0
  %v3866 = vadd.f32 %v560, %v3865
  %v3867 = vpop.f32.mrb[0].mxu0
  %v3868 = vpop.f32.mrb[0].mxu0
  %v3869 = vadd.f32 %v560, %v3868
  %v3870 = vpop.f32.mrb[0].mxu0
  %3871 = vmatprep.mubr.bf16.mxu0 0
  %3872 = vmatmul.mubr.bf16.gmra.mrb[0].mxu0 %v2312
  %v3873 = vpop.f32.mrb[0].mxu0
  %v3874 = vadd.f32 %v560, %v3873
  %v3875 = vpop.f32.mrb[0].mxu0
  %v3876 = vpop.f32.mrb[0].mxu0
  %v3877 = vadd.f32 %v560, %v3876
  %v3878 = vpop.f32.mrb[0].mxu0
  %3879 = vmatprep.mubr.bf16.mxu0 0
  %3880 = vmatmul.mubr.bf16.gmra.mrb[0].mxu0 %v2315
  %v3881 = vpop.f32.mrb[0].mxu0
  %v3882 = vadd.f32 %v560, %v3881
  %v3883 = vpop.f32.mrb[0].mxu0
  %v3884 = vpop.f32.mrb[0].mxu0
  %v3885 = vadd.f32 %v560, %v3884
  %v3886 = vpop.f32.mrb[0].mxu0
  %3887 = vmatprep.mubr.bf16.mxu0 0
  %3888 = vmatmul.mubr.bf16.gmra.mrb[0].mxu0 %v2318
  %v3889 = vpop.f32.mrb[0].mxu0
  %v3890 = vadd.f32 %v560, %v3889
  %v3891 = vpop.f32.mrb[0].mxu0
  %v3892 = vpop.f32.mrb[0].mxu0
  %v3893 = vadd.f32 %v560, %v3892
  %v3894 = vpop.f32.mrb[0].mxu0
  %3895 = vmatprep.mubr.bf16.mxu0 0
  %3896 = vmatmul.mubr.bf16.gmra.mrb[0].mxu0 %v2321
  %v3897 = vpop.f32.mrb[0].mxu0
  %v3898 = vadd.f32 %v560, %v3897
  %v3899 = vpop.f32.mrb[0].mxu0
  %v3900 = vpop.f32.mrb[0].mxu0
  %v3901 = vadd.f32 %v560, %v3900
  %v3902 = vpop.f32.mrb[0].mxu0
  %3903 = vmatprep.mubr.bf16.mxu0 0
  %3904 = vmatmul.mubr.bf16.gmra.mrb[0].mxu0 %v2324
  %v3905 = vpop.f32.mrb[0].mxu0
  %v3906 = vadd.f32 %v560, %v3905
  %v3907 = vpop.f32.mrb[0].mxu0
  %v3908 = vpop.f32.mrb[0].mxu0
  %v3909 = vadd.f32 %v560, %v3908
  %v3910 = vpop.f32.mrb[0].mxu0
  %3911 = vmatprep.mubr.bf16.mxu0 0
  %3912 = vmatmul.mubr.bf16.gmra.mrb[0].mxu0 %v2327
  %v3913 = vpop.f32.mrb[0].mxu0
  %v3914 = vadd.f32 %v560, %v3913
  %v3915 = vpop.f32.mrb[0].mxu0
  %v3916 = vpop.f32.mrb[0].mxu0
  %v3917 = vadd.f32 %v560, %v3916
  %v3918 = vpop.f32.mrb[0].mxu0
  %3919 = vmatprep.mubr.bf16.mxu0 0
  %3920 = vmatmul.mubr.bf16.gmra.mrb[0].mxu0 %v2330
  %v3921 = vpop.f32.mrb[0].mxu0
  %v3922 = vadd.f32 %v560, %v3921
  %v3923 = vpop.f32.mrb[0].mxu0
  %v3924 = vpop.f32.mrb[0].mxu0
  %v3925 = vadd.f32 %v560, %v3924
  %v3926 = vpop.f32.mrb[0].mxu0
  %3927 = vmatprep.mubr.bf16.mxu0 0
  %3928 = vmatmul.mubr.bf16.gmra.mrb[0].mxu0 %v2333
  %v3929 = vpop.f32.mrb[0].mxu0
  %v3930 = vadd.f32 %v560, %v3929
  %v3931 = vpop.f32.mrb[0].mxu0
  %v3932 = vpop.f32.mrb[0].mxu0
  %v3933 = vadd.f32 %v560, %v3932
  %v3934 = vpop.f32.mrb[0].mxu0
  %3935 = vmatprep.mubr.bf16.mxu0 0
  %3936 = vmatmul.mubr.bf16.gmra.mrb[0].mxu0 %v2336
  %v3937 = vpop.f32.mrb[0].mxu0
  %v3938 = vadd.f32 %v560, %v3937
  %v3939 = vpop.f32.mrb[0].mxu0
  %v3940 = vpop.f32.mrb[0].mxu0
  %v3941 = vadd.f32 %v560, %v3940
  %v3942 = vpop.f32.mrb[0].mxu0
  %3943 = vmatprep.mubr.bf16.mxu0 0
  %3944 = vmatmul.mubr.bf16.gmra.mrb[0].mxu0 %v2339
  %v3945 = vpop.f32.mrb[0].mxu0
  %v3946 = vadd.f32 %v560, %v3945
  %v3947 = vpop.f32.mrb[0].mxu0
  %v3948 = vpop.f32.mrb[0].mxu0
  %v3949 = vadd.f32 %v560, %v3948
  %v3950 = vpop.f32.mrb[0].mxu0
  %3951 = vmatprep.mubr.bf16.mxu0 0
  %3952 = vmatmul.mubr.bf16.gmra.mrb[0].mxu0 %v2342
  %v3953 = vpop.f32.mrb[0].mxu0
  %v3954 = vadd.f32 %v560, %v3953
  %v3955 = vpop.f32.mrb[0].mxu0
  %v3956 = vpop.f32.mrb[0].mxu0
  %v3957 = vadd.f32 %v560, %v3956
  %v3958 = vpop.f32.mrb[0].mxu0
  %3959 = vmatprep.mubr.bf16.mxu0 0
  %3960 = vmatmul.mubr.bf16.gmra.mrb[0].mxu0 %v2345
  %v3961 = vpop.f32.mrb[0].mxu0
  %v3962 = vadd.f32 %v560, %v3961
  %v3963 = vpop.f32.mrb[0].mxu0
  %v3964 = vpop.f32.mrb[0].mxu0
  %v3965 = vadd.f32 %v560, %v3964
  %v3966 = vpop.f32.mrb[0].mxu0
  %3967 = vmatprep.mubr.bf16.mxu0 0
  %3968 = vmatmul.mubr.bf16.gmra.mrb[0].mxu0 %v2348
  %v3969 = vpop.f32.mrb[0].mxu0
  %v3970 = vadd.f32 %v560, %v3969
  %v3971 = vpop.f32.mrb[0].mxu0
  %v3972 = vpop.f32.mrb[0].mxu0
  %v3973 = vadd.f32 %v560, %v3972
  %v3974 = vpop.f32.mrb[0].mxu0
  %3975 = vmatprep.mubr.bf16.mxu0 0
  %3976 = vmatmul.mubr.bf16.gmra.mrb[0].mxu0 %v2351
  %v3977 = vpop.f32.mrb[0].mxu0
  %v3978 = vadd.f32 %v560, %v3977
  %v3979 = vpop.f32.mrb[0].mxu0
  %v3980 = vpop.f32.mrb[0].mxu0
  %v3981 = vadd.f32 %v560, %v3980
  %v3982 = vpop.f32.mrb[0].mxu0
  %3983 = vmatprep.mubr.bf16.mxu0 0
  %3984 = vmatmul.mubr.bf16.gmra.mrb[0].mxu0 %v2354
  %v3985 = vpop.f32.mrb[0].mxu0
  %v3986 = vadd.f32 %v560, %v3985
  %v3987 = vpop.f32.mrb[0].mxu0
  %v3988 = vpop.f32.mrb[0].mxu0
  %v3989 = vadd.f32 %v560, %v3988
  %v3990 = vpop.f32.mrb[0].mxu0
  %3991 = vmatprep.mubr.bf16.mxu0 0
  %3992 = vmatmul.mubr.bf16.gmra.mrb[0].mxu0 %v2357
  %v3993 = vpop.f32.mrb[0].mxu0
  %v3994 = vadd.f32 %v560, %v3993
  %v3995 = vpop.f32.mrb[0].mxu0
  %v3996 = vpop.f32.mrb[0].mxu0
  %v3997 = vadd.f32 %v560, %v3996
  %v3998 = vpop.f32.mrb[0].mxu0
  %3999 = vmatprep.mubr.bf16.mxu0 0
  %4000 = vmatmul.mubr.bf16.gmra.mrb[0].mxu0 %v2360
  %v4001 = vpop.f32.mrb[0].mxu0
  %v4002 = vadd.f32 %v560, %v4001
  %v4003 = vpop.f32.mrb[0].mxu0
  %v4004 = vpop.f32.mrb[0].mxu0
  %v4005 = vadd.f32 %v560, %v4004
  %v4006 = vpop.f32.mrb[0].mxu0
  %4007 = vmatprep.mubr.bf16.mxu0 0
  %4008 = vmatmul.mubr.bf16.gmra.mrb[0].mxu0 %v2363
  %v4009 = vpop.f32.mrb[0].mxu0
  %v4010 = vadd.f32 %v560, %v4009
  %v4011 = vpop.f32.mrb[0].mxu0
  %v4012 = vpop.f32.mrb[0].mxu0
  %v4013 = vadd.f32 %v560, %v4012
  %v4014 = vpop.f32.mrb[0].mxu0
  %4015 = vmatprep.mubr.bf16.mxu0 0
  %4016 = vmatmul.mubr.bf16.gmra.mrb[0].mxu0 %v2366
  %v4017 = vpop.f32.mrb[0].mxu0
  %v4018 = vadd.f32 %v560, %v4017
  %v4019 = vpop.f32.mrb[0].mxu0
  %v4020 = vpop.f32.mrb[0].mxu0
  %v4021 = vadd.f32 %v560, %v4020
  %v4022 = vpop.f32.mrb[0].mxu0
  %4023 = vmatprep.mubr.bf16.mxu0 0
  %4024 = vmatmul.mubr.bf16.gmra.mrb[0].mxu0 %v2369
  %v4025 = vpop.f32.mrb[0].mxu0
  %v4026 = vadd.f32 %v560, %v4025
  %v4027 = vpop.f32.mrb[0].mxu0
  %v4028 = vpop.f32.mrb[0].mxu0
  %v4029 = vadd.f32 %v560, %v4028
  %v4030 = vpop.f32.mrb[0].mxu0
  %4031 = vmatprep.mubr.bf16.mxu0 0
  %4032 = vmatmul.mubr.bf16.gmra.mrb[0].mxu0 %v2372
  %v4033 = vpop.f32.mrb[0].mxu0
  %v4034 = vadd.f32 %v560, %v4033
  %v4035 = vpop.f32.mrb[0].mxu0
  %v4036 = vpop.f32.mrb[0].mxu0
  %v4037 = vadd.f32 %v560, %v4036
  %v4038 = vpop.f32.mrb[0].mxu0
  %4039 = vmatprep.mubr.bf16.mxu0 0
  %4040 = vmatmul.mubr.bf16.gmra.mrb[0].mxu0 %v2375
  %v4041 = vpop.f32.mrb[0].mxu0
  %v4042 = vadd.f32 %v560, %v4041
  %v4043 = vpop.f32.mrb[0].mxu0
  %v4044 = vpop.f32.mrb[0].mxu0
  %v4045 = vadd.f32 %v560, %v4044
  %v4046 = vpop.f32.mrb[0].mxu0
  %4047 = vmatprep.mubr.bf16.mxu0 0
  %4048 = vmatmul.mubr.bf16.gmra.mrb[0].mxu0 %v2378
  %v4049 = vpop.f32.mrb[0].mxu0
  %v4050 = vadd.f32 %v560, %v4049
  %v4051 = vpop.f32.mrb[0].mxu0
  %v4052 = vpop.f32.mrb[0].mxu0
  %v4053 = vadd.f32 %v560, %v4052
  %v4054 = vpop.f32.mrb[0].mxu0
  %4055 = vmatprep.mubr.bf16.mxu0 0
  %4056 = vmatmul.mubr.bf16.gmra.mrb[0].mxu0 %v2381
  %v4057 = vpop.f32.mrb[0].mxu0
  %v4058 = vadd.f32 %v560, %v4057
  %v4059 = vpop.f32.mrb[0].mxu0
  %v4060 = vpop.f32.mrb[0].mxu0
  %v4061 = vadd.f32 %v560, %v4060
  %v4062 = vpop.f32.mrb[0].mxu0
  %4063 = vmatprep.mubr.bf16.mxu0 0
  %4064 = vmatmul.mubr.bf16.gmra.mrb[0].mxu0 %v2384
  %v4065 = vpop.f32.mrb[0].mxu0
  %v4066 = vadd.f32 %v560, %v4065
  %v4067 = vpop.f32.mrb[0].mxu0
  %v4068 = vpop.f32.mrb[0].mxu0
  %v4069 = vadd.f32 %v560, %v4068
  %v4070 = vpop.f32.mrb[0].mxu0
  %4071 = vmatprep.mubr.bf16.mxu0 0
  %4072 = vmatmul.mubr.bf16.gmra.mrb[0].mxu0 %v2387
  %v4073 = vpop.f32.mrb[0].mxu0
  %v4074 = vadd.f32 %v560, %v4073
  %v4075 = vpop.f32.mrb[0].mxu0
  %v4076 = vpop.f32.mrb[0].mxu0
  %v4077 = vadd.f32 %v560, %v4076
  %v4078 = vpop.f32.mrb[0].mxu0
  %4079 = vmatprep.mubr.bf16.mxu0 0
  %4080 = vmatmul.mubr.bf16.gmra.mrb[0].mxu0 %v2390
  %v4081 = vpop.f32.mrb[0].mxu0
  %v4082 = vadd.f32 %v560, %v4081
  %v4083 = vpop.f32.mrb[0].mxu0
  %v4084 = vpop.f32.mrb[0].mxu0
  %v4085 = vadd.f32 %v560, %v4084
  %v4086 = vpop.f32.mrb[0].mxu0
  %4087 = vmatprep.mubr.bf16.mxu0 0
  %4088 = vmatmul.mubr.bf16.gmra.mrb[0].mxu0 %v2393
  %v4089 = vpop.f32.mrb[0].mxu0
  %v4090 = vadd.f32 %v560, %v4089
  %v4091 = vpop.f32.mrb[0].mxu0
  %v4092 = vpop.f32.mrb[0].mxu0
  %v4093 = vadd.f32 %v560, %v4092
  %v4094 = vpop.f32.mrb[0].mxu0
  %4095 = vmatprep.mubr.bf16.mxu0 0
  %4096 = vmatmul.mubr.bf16.gmra.mrb[0].mxu0 %v2396
  %v4097 = vpop.f32.mrb[0].mxu0
  %v4098 = vadd.f32 %v560, %v4097
  %v4099 = vpop.f32.mrb[0].mxu0
  %v4100 = vpop.f32.mrb[0].mxu0
  %v4101 = vadd.f32 %v560, %v4100
  %v4102 = vpop.f32.mrb[0].mxu0
  %4103 = vmatprep.mubr.bf16.mxu0 0
  %4104 = vmatmul.mubr.bf16.gmra.mrb[0].mxu0 %v2399
  %v4105 = vpop.f32.mrb[0].mxu0
  %v4106 = vadd.f32 %v560, %v4105
  %v4107 = vpop.f32.mrb[0].mxu0
  %v4108 = vpop.f32.mrb[0].mxu0
  %v4109 = vadd.f32 %v560, %v4108
  %v4110 = vpop.f32.mrb[0].mxu0
  %4111 = vmatprep.mubr.bf16.mxu0 0
  %4112 = vmatmul.mubr.bf16.gmra.mrb[0].mxu0 %v2402
  %v4113 = vpop.f32.mrb[0].mxu0
  %v4114 = vadd.f32 %v560, %v4113
  %v4115 = vpop.f32.mrb[0].mxu0
  %v4116 = vpop.f32.mrb[0].mxu0
  %v4117 = vadd.f32 %v560, %v4116
  %v4118 = vpop.f32.mrb[0].mxu0
  %4119 = vmatprep.mubr.bf16.mxu0 0
  %4120 = vmatmul.mubr.bf16.gmra.mrb[0].mxu0 %v2405
  %v4121 = vpop.f32.mrb[0].mxu0
  %v4122 = vadd.f32 %v560, %v4121
  %v4123 = vpop.f32.mrb[0].mxu0
  %v4124 = vpop.f32.mrb[0].mxu0
  %v4125 = vadd.f32 %v560, %v4124
  %v4126 = vpop.f32.mrb[0].mxu0
  %4127 = vmatprep.mubr.bf16.mxu0 0
  %4128 = vmatmul.mubr.bf16.gmra.mrb[0].mxu0 %v2408
  %v4129 = vpop.f32.mrb[0].mxu0
  %v4130 = vadd.f32 %v560, %v4129
  %v4131 = vpop.f32.mrb[0].mxu0
  %v4132 = vpop.f32.mrb[0].mxu0
  %v4133 = vadd.f32 %v560, %v4132
  %v4134 = vpop.f32.mrb[0].mxu0
  %4135 = vmatprep.mubr.bf16.mxu0 0
  %4136 = vmatmul.mubr.bf16.gmra.mrb[0].mxu0 %v2411
  %v4137 = vpop.f32.mrb[0].mxu0
  %v4138 = vadd.f32 %v560, %v4137
  %v4139 = vpop.f32.mrb[0].mxu0
  %v4140 = vpop.f32.mrb[0].mxu0
  %v4141 = vadd.f32 %v560, %v4140
  %v4142 = vpop.f32.mrb[0].mxu0
  %4143 = vmatprep.mubr.bf16.mxu0 0
  %4144 = vmatmul.mubr.bf16.gmra.mrb[0].mxu0 %v2414
  %v4145 = vpop.f32.mrb[0].mxu0
  %v4146 = vadd.f32 %v560, %v4145
  %v4147 = vpop.f32.mrb[0].mxu0
  %v4148 = vpop.f32.mrb[0].mxu0
  %v4149 = vadd.f32 %v560, %v4148
  %v4150 = vpop.f32.mrb[0].mxu0
  %4151 = vmatprep.mubr.bf16.mxu0 0
  %4152 = vmatmul.mubr.bf16.gmra.mrb[0].mxu0 %v2417
  %v4153 = vpop.f32.mrb[0].mxu0
  %v4154 = vadd.f32 %v560, %v4153
  %v4155 = vpop.f32.mrb[0].mxu0
  %v4156 = vpop.f32.mrb[0].mxu0
  %v4157 = vadd.f32 %v560, %v4156
  %v4158 = vpop.f32.mrb[0].mxu0
  %4159 = vmatprep.mubr.bf16.mxu0 0
  %4160 = vmatmul.mubr.bf16.gmra.mrb[0].mxu0 %v2420
  %v4161 = vpop.f32.mrb[0].mxu0
  %v4162 = vadd.f32 %v560, %v4161
  %v4163 = vpop.f32.mrb[0].mxu0
  %v4164 = vpop.f32.mrb[0].mxu0
  %v4165 = vadd.f32 %v560, %v4164
  %v4166 = vpop.f32.mrb[0].mxu0
  %4167 = vmatprep.mubr.bf16.mxu0 0
  %4168 = vmatmul.mubr.bf16.gmra.mrb[0].mxu0 %v2423
  %v4169 = vpop.f32.mrb[0].mxu0
  %v4170 = vadd.f32 %v560, %v4169
  %v4171 = vpop.f32.mrb[0].mxu0
  %v4172 = vpop.f32.mrb[0].mxu0
  %v4173 = vadd.f32 %v560, %v4172
  %v4174 = vpop.f32.mrb[0].mxu0
  %4175 = vmatprep.mubr.bf16.mxu0 0
  %4176 = vmatmul.mubr.bf16.gmra.mrb[0].mxu0 %v2426
  %v4177 = vpop.f32.mrb[0].mxu0
  %v4178 = vadd.f32 %v560, %v4177
  %v4179 = vpop.f32.mrb[0].mxu0
  %v4180 = vpop.f32.mrb[0].mxu0
  %v4181 = vadd.f32 %v560, %v4180
  %v4182 = vpop.f32.mrb[0].mxu0
  %4183 = vmatprep.mubr.bf16.mxu0 0
  %4184 = vmatmul.mubr.bf16.gmra.mrb[0].mxu0 %v2429
  %v4185 = vpop.f32.mrb[0].mxu0
  %v4186 = vadd.f32 %v560, %v4185
  %v4187 = vpop.f32.mrb[0].mxu0
  %v4188 = vpop.f32.mrb[0].mxu0
  %v4189 = vadd.f32 %v560, %v4188
  %v4190 = vpop.f32.mrb[0].mxu0
  %4191 = vmatprep.mubr.bf16.mxu0 0
  %4192 = vmatmul.mubr.bf16.gmra.mrb[0].mxu0 %v2432
  %v4193 = vpop.f32.mrb[0].mxu0
  %v4194 = vadd.f32 %v560, %v4193
  %v4195 = vpop.f32.mrb[0].mxu0
  %v4196 = vpop.f32.mrb[0].mxu0
  %v4197 = vadd.f32 %v560, %v4196
  %v4198 = vpop.f32.mrb[0].mxu0
  %4199 = vmatprep.mubr.bf16.mxu0 0
  %4200 = vmatmul.mubr.bf16.gmra.mrb[0].mxu0 %v2435
  %v4201 = vpop.f32.mrb[0].mxu0
  %v4202 = vadd.f32 %v560, %v4201
  %v4203 = vpop.f32.mrb[0].mxu0
  %v4204 = vpop.f32.mrb[0].mxu0
  %v4205 = vadd.f32 %v560, %v4204
  %v4206 = vpop.f32.mrb[0].mxu0
  %4207 = vmatprep.mubr.bf16.mxu0 0
  %4208 = vmatmul.mubr.bf16.gmra.mrb[0].mxu0 %v2438
  %v4209 = vpop.f32.mrb[0].mxu0
  %v4210 = vadd.f32 %v560, %v4209
  %v4211 = vpop.f32.mrb[0].mxu0
  %v4212 = vpop.f32.mrb[0].mxu0
  %v4213 = vadd.f32 %v560, %v4212
  %v4214 = vpop.f32.mrb[0].mxu0
  %4215 = vmatprep.mubr.bf16.mxu0 0
  %4216 = vmatmul.mubr.bf16.gmra.mrb[0].mxu0 %v2441
  %v4217 = vpop.f32.mrb[0].mxu0
  %v4218 = vadd.f32 %v560, %v4217
  %v4219 = vpop.f32.mrb[0].mxu0
  %v4220 = vpop.f32.mrb[0].mxu0
  %v4221 = vadd.f32 %v560, %v4220
  %v4222 = vpop.f32.mrb[0].mxu0
  %4223 = vmatprep.mubr.bf16.mxu0 0
  %4224 = vmatmul.mubr.bf16.gmra.mrb[0].mxu0 %v2444
  %v4225 = vpop.f32.mrb[0].mxu0
  %v4226 = vadd.f32 %v560, %v4225
  %v4227 = vpop.f32.mrb[0].mxu0
  %v4228 = vpop.f32.mrb[0].mxu0
  %v4229 = vadd.f32 %v560, %v4228
  %v4230 = vpop.f32.mrb[0].mxu0
  %4231 = vmatprep.mubr.bf16.mxu0 0
  %4232 = vmatmul.mubr.bf16.gmra.mrb[0].mxu0 %v2447
  %v4233 = vpop.f32.mrb[0].mxu0
  %v4234 = vadd.f32 %v560, %v4233
  %v4235 = vpop.f32.mrb[0].mxu0
  %v4236 = vpop.f32.mrb[0].mxu0
  %v4237 = vadd.f32 %v560, %v4236
  %v4238 = vpop.f32.mrb[0].mxu0
  %4239 = vmatprep.mubr.bf16.mxu0 0
  %4240 = vmatmul.mubr.bf16.gmra.mrb[0].mxu0 %v2450
  %v4241 = vpop.f32.mrb[0].mxu0
  %v4242 = vadd.f32 %v560, %v4241
  %v4243 = vpop.f32.mrb[0].mxu0
  %v4244 = vpop.f32.mrb[0].mxu0
  %v4245 = vadd.f32 %v560, %v4244
  %v4246 = vpop.f32.mrb[0].mxu0
  %4247 = vmatprep.mubr.bf16.mxu0 0
  %4248 = vmatmul.mubr.bf16.gmra.mrb[0].mxu0 %v2453
  %v4249 = vpop.f32.mrb[0].mxu0
  %v4250 = vadd.f32 %v560, %v4249
  %v4251 = vpop.f32.mrb[0].mxu0
  %v4252 = vpop.f32.mrb[0].mxu0
  %v4253 = vadd.f32 %v560, %v4252
  %v4254 = vpop.f32.mrb[0].mxu0
  %4255 = vmatprep.mubr.bf16.mxu0 0
  %4256 = vmatmul.mubr.bf16.gmra.mrb[0].mxu0 %v2456
  %v4257 = vpop.f32.mrb[0].mxu0
  %v4258 = vadd.f32 %v560, %v4257
  %v4259 = vpop.f32.mrb[0].mxu0
  %v4260 = vpop.f32.mrb[0].mxu0
  %v4261 = vadd.f32 %v560, %v4260
  %v4262 = vpop.f32.mrb[0].mxu0
  %4263 = vmatprep.mubr.bf16.mxu0 0
  %4264 = vmatmul.mubr.bf16.gmra.mrb[0].mxu0 %v2459
  %v4265 = vpop.f32.mrb[0].mxu0
  %v4266 = vadd.f32 %v560, %v4265
  %v4267 = vpop.f32.mrb[0].mxu0
  %v4268 = vpop.f32.mrb[0].mxu0
  %v4269 = vadd.f32 %v560, %v4268
  %v4270 = vpop.f32.mrb[0].mxu0
  %4271 = vmatprep.mubr.bf16.mxu0 0
  %4272 = vmatmul.mubr.bf16.gmra.mrb[0].mxu0 %v2462
  %v4273 = vpop.f32.mrb[0].mxu0
  %v4274 = vadd.f32 %v560, %v4273
  %v4275 = vpop.f32.mrb[0].mxu0
  %v4276 = vpop.f32.mrb[0].mxu0
  %v4277 = vadd.f32 %v560, %v4276
  %v4278 = vpop.f32.mrb[0].mxu0
  %4279 = vmatprep.mubr.bf16.mxu0 0
  %4280 = vmatmul.mubr.bf16.gmra.mrb[0].mxu0 %v2465
  %v4281 = vpop.f32.mrb[0].mxu0
  %v4282 = vadd.f32 %v560, %v4281
  %v4283 = vpop.f32.mrb[0].mxu0
  %v4284 = vpop.f32.mrb[0].mxu0
  %v4285 = vadd.f32 %v560, %v4284
  %v4286 = vpop.f32.mrb[0].mxu0
  %4287 = vmatprep.mubr.bf16.mxu0 0
  %4288 = vmatmul.mubr.bf16.gmra.mrb[0].mxu0 %v2468
  %v4289 = vpop.f32.mrb[0].mxu0
  %v4290 = vadd.f32 %v560, %v4289
  %v4291 = vpop.f32.mrb[0].mxu0
  %v4292 = vpop.f32.mrb[0].mxu0
  %v4293 = vadd.f32 %v560, %v4292
  %v4294 = vpop.f32.mrb[0].mxu0
  %4295 = vmatprep.mubr.bf16.mxu0 0
  %4296 = vmatmul.mubr.bf16.gmra.mrb[0].mxu0 %v2471
  %v4297 = vpop.f32.mrb[0].mxu0
  %v4298 = vadd.f32 %v560, %v4297
  %v4299 = vpop.f32.mrb[0].mxu0
  %v4300 = vpop.f32.mrb[0].mxu0
  %v4301 = vadd.f32 %v560, %v4300
  %v4302 = vpop.f32.mrb[0].mxu0
  %4303 = vmatprep.mubr.bf16.mxu0 0
  %4304 = vmatmul.mubr.bf16.gmra.mrb[0].mxu0 %v2474
  %v4305 = vpop.f32.mrb[0].mxu0
  %v4306 = vadd.f32 %v560, %v4305
  %v4307 = vpop.f32.mrb[0].mxu0
  %v4308 = vpop.f32.mrb[0].mxu0
  %v4309 = vadd.f32 %v560, %v4308
  %v4310 = vpop.f32.mrb[0].mxu0
  %4311 = vmatprep.mubr.bf16.mxu0 0
  %4312 = vmatmul.mubr.bf16.gmra.mrb[0].mxu0 %v2477
  %v4313 = vpop.f32.mrb[0].mxu0
  %v4314 = vadd.f32 %v560, %v4313
  %v4315 = vpop.f32.mrb[0].mxu0
  %v4316 = vpop.f32.mrb[0].mxu0
  %v4317 = vadd.f32 %v560, %v4316
  %v4318 = vpop.f32.mrb[0].mxu0
  %4319 = vmatprep.mubr.bf16.mxu0 0
  %4320 = vmatmul.mubr.bf16.gmra.mrb[0].mxu0 %v2480
  %v4321 = vpop.f32.mrb[0].mxu0
  %v4322 = vadd.f32 %v560, %v4321
  %v4323 = vpop.f32.mrb[0].mxu0
  %v4324 = vpop.f32.mrb[0].mxu0
  %v4325 = vadd.f32 %v560, %v4324
  %v4326 = vpop.f32.mrb[0].mxu0
  %4327 = vmatprep.mubr.bf16.mxu0 0
  %4328 = vmatmul.mubr.bf16.gmra.mrb[0].mxu0 %v2483
  %v4329 = vpop.f32.mrb[0].mxu0
  %v4330 = vadd.f32 %v560, %v4329
  %v4331 = vpop.f32.mrb[0].mxu0
  %v4332 = vpop.f32.mrb[0].mxu0
  %v4333 = vadd.f32 %v560, %v4332
  %v4334 = vpop.f32.mrb[0].mxu0
  %4335 = vmatprep.mubr.bf16.mxu0 0
  %4336 = vmatmul.mubr.bf16.gmra.mrb[0].mxu0 %v2486
  %v4337 = vpop.f32.mrb[0].mxu0
  %v4338 = vadd.f32 %v560, %v4337
  %v4339 = vpop.f32.mrb[0].mxu0
  %v4340 = vpop.f32.mrb[0].mxu0
  %v4341 = vadd.f32 %v560, %v4340
  %v4342 = vpop.f32.mrb[0].mxu0
  %4343 = vmatprep.mubr.bf16.mxu0 0
  %4344 = vmatmul.mubr.bf16.gmra.mrb[0].mxu0 %v2489
  %v4345 = vpop.f32.mrb[0].mxu0
  %v4346 = vadd.f32 %v560, %v4345
  %v4347 = vpop.f32.mrb[0].mxu0
  %v4348 = vpop.f32.mrb[0].mxu0
  %v4349 = vadd.f32 %v560, %v4348
  %v4350 = vpop.f32.mrb[0].mxu0
  %4351 = vmatprep.mubr.bf16.mxu0 0
  %4352 = vmatmul.mubr.bf16.gmra.mrb[0].mxu0 %v2492
  %v4353 = vpop.f32.mrb[0].mxu0
  %v4354 = vadd.f32 %v560, %v4353
  %v4355 = vpop.f32.mrb[0].mxu0
  %v4356 = vpop.f32.mrb[0].mxu0
  %v4357 = vadd.f32 %v560, %v4356
  %v4358 = vpop.f32.mrb[0].mxu0
  %4359 = vmatprep.mubr.bf16.mxu0 0
  %4360 = vmatmul.mubr.bf16.gmra.mrb[0].mxu0 %v2495
  %v4361 = vpop.f32.mrb[0].mxu0
  %v4362 = vadd.f32 %v560, %v4361
  %v4363 = vpop.f32.mrb[0].mxu0
  %v4364 = vpop.f32.mrb[0].mxu0
  %v4365 = vadd.f32 %v560, %v4364
  %v4366 = vpop.f32.mrb[0].mxu0
  %4367 = vmatprep.mubr.bf16.mxu0 0
  %4368 = vmatmul.mubr.bf16.gmra.mrb[0].mxu0 %v2498
  %v4369 = vpop.f32.mrb[0].mxu0
  %v4370 = vadd.f32 %v560, %v4369
  %v4371 = vpop.f32.mrb[0].mxu0
  %v4372 = vpop.f32.mrb[0].mxu0
  %v4373 = vadd.f32 %v560, %v4372
  %v4374 = vpop.f32.mrb[0].mxu0
  %4375 = vmatprep.mubr.bf16.mxu0 0
  %4376 = vmatmul.mubr.bf16.gmra.mrb[0].mxu0 %v2501
  %v4377 = vpop.f32.mrb[0].mxu0
  %v4378 = vadd.f32 %v560, %v4377
  %v4379 = vpop.f32.mrb[0].mxu0
  %v4380 = vpop.f32.mrb[0].mxu0
  %v4381 = vadd.f32 %v560, %v4380
  %v4382 = vpop.f32.mrb[0].mxu0
  %4383 = vmatprep.mubr.bf16.mxu0 0
  %4384 = vmatmul.mubr.bf16.gmra.mrb[0].mxu0 %v2504
  %v4385 = vpop.f32.mrb[0].mxu0
  %v4386 = vadd.f32 %v560, %v4385
  %v4387 = vpop.f32.mrb[0].mxu0
  %v4388 = vpop.f32.mrb[0].mxu0
  %v4389 = vadd.f32 %v560, %v4388
  %v4390 = vpop.f32.mrb[0].mxu0
  %4391 = vmatprep.mubr.bf16.mxu0 0
  %4392 = vmatmul.mubr.bf16.gmra.mrb[0].mxu0 %v2507
  %v4393 = vpop.f32.mrb[0].mxu0
  %v4394 = vadd.f32 %v560, %v4393
  %v4395 = vpop.f32.mrb[0].mxu0
  %v4396 = vpop.f32.mrb[0].mxu0
  %v4397 = vadd.f32 %v560, %v4396
  %v4398 = vpop.f32.mrb[0].mxu0
  %4399 = vmatprep.mubr.bf16.mxu0 0
  %4400 = vmatmul.mubr.bf16.gmra.mrb[0].mxu0 %v2510
  %v4401 = vpop.f32.mrb[0].mxu0
  %v4402 = vadd.f32 %v560, %v4401
  %v4403 = vpop.f32.mrb[0].mxu0
  %v4404 = vpop.f32.mrb[0].mxu0
  %v4405 = vadd.f32 %v560, %v4404
  %v4406 = vpop.f32.mrb[0].mxu0
  %4407 = vmatprep.mubr.bf16.mxu0 0
  %4408 = vmatmul.mubr.bf16.gmra.mrb[0].mxu0 %v2513
  %v4409 = vpop.f32.mrb[0].mxu0
  %v4410 = vadd.f32 %v560, %v4409
  %v4411 = vpop.f32.mrb[0].mxu0
  %v4412 = vpop.f32.mrb[0].mxu0
  %v4413 = vadd.f32 %v560, %v4412
  %v4414 = vpop.f32.mrb[0].mxu0
  %4415 = vmatprep.mubr.bf16.mxu0 0
  %4416 = vmatmul.mubr.bf16.gmra.mrb[0].mxu0 %v2516
  %v4417 = vpop.f32.mrb[0].mxu0
  %v4418 = vadd.f32 %v560, %v4417
  %v4419 = vpop.f32.mrb[0].mxu0
  %v4420 = vpop.f32.mrb[0].mxu0
  %v4421 = vadd.f32 %v560, %v4420
  %v4422 = vpop.f32.mrb[0].mxu0
  %4423 = vmatprep.mubr.bf16.mxu0 0
  %4424 = vmatmul.mubr.bf16.gmra.mrb[0].mxu0 %v2519
  %v4425 = vpop.f32.mrb[0].mxu0
  %v4426 = vadd.f32 %v560, %v4425
  %v4427 = vpop.f32.mrb[0].mxu0
  %v4428 = vpop.f32.mrb[0].mxu0
  %v4429 = vadd.f32 %v560, %v4428
  %v4430 = vpop.f32.mrb[0].mxu0
  %4431 = vmatprep.mubr.bf16.mxu0 0
  %4432 = vmatmul.mubr.bf16.gmra.mrb[0].mxu0 %v2522
  %v4433 = vpop.f32.mrb[0].mxu0
  %v4434 = vadd.f32 %v560, %v4433
  %v4435 = vpop.f32.mrb[0].mxu0
  %v4436 = vpop.f32.mrb[0].mxu0
  %v4437 = vadd.f32 %v560, %v4436
  %v4438 = vpop.f32.mrb[0].mxu0
  %4439 = vmatprep.mubr.bf16.mxu0 0
  %4440 = vmatmul.mubr.bf16.gmra.mrb[0].mxu0 %v2525
  %v4441 = vpop.f32.mrb[0].mxu0
  %v4442 = vadd.f32 %v560, %v4441
  %v4443 = vpop.f32.mrb[0].mxu0
  %v4444 = vpop.f32.mrb[0].mxu0
  %v4445 = vadd.f32 %v560, %v4444
  %v4446 = vpop.f32.mrb[0].mxu0
  %4447 = vmatprep.mubr.bf16.mxu0 0
  %4448 = vmatmul.mubr.bf16.gmra.mrb[0].mxu0 %v2528
  %v4449 = vpop.f32.mrb[0].mxu0
  %v4450 = vadd.f32 %v560, %v4449
  %v4451 = vpop.f32.mrb[0].mxu0
  %v4452 = vpop.f32.mrb[0].mxu0
  %v4453 = vadd.f32 %v560, %v4452
  %v4454 = vpop.f32.mrb[0].mxu0
  %4455 = vmatprep.mubr.bf16.mxu0 0
  %4456 = vmatmul.mubr.bf16.gmra.mrb[0].mxu0 %v2531
  %v4457 = vpop.f32.mrb[0].mxu0
  %v4458 = vadd.f32 %v560, %v4457
  %v4459 = vpop.f32.mrb[0].mxu0
  %v4460 = vpop.f32.mrb[0].mxu0
  %v4461 = vadd.f32 %v560, %v4460
  %v4462 = vpop.f32.mrb[0].mxu0
  %4463 = vmatprep.mubr.bf16.mxu0 0
  %4464 = vmatmul.mubr.bf16.gmra.mrb[0].mxu0 %v2534
  %v4465 = vpop.f32.mrb[0].mxu0
  %v4466 = vadd.f32 %v560, %v4465
  %v4467 = vpop.f32.mrb[0].mxu0
  %v4468 = vpop.f32.mrb[0].mxu0
  %v4469 = vadd.f32 %v560, %v4468
  %v4470 = vpop.f32.mrb[0].mxu0
  %4471 = vmatprep.mubr.bf16.mxu0 0
  %4472 = vmatmul.mubr.bf16.gmra.mrb[0].mxu0 %v2537
  %v4473 = vpop.f32.mrb[0].mxu0
  %v4474 = vadd.f32 %v560, %v4473
  %v4475 = vpop.f32.mrb[0].mxu0
  %v4476 = vpop.f32.mrb[0].mxu0
  %v4477 = vadd.f32 %v560, %v4476
  %v4478 = vpop.f32.mrb[0].mxu0
  %4479 = vmatprep.mubr.bf16.mxu0 0
  %4480 = vmatmul.mubr.bf16.gmra.mrb[0].mxu0 %v2540
  %v4481 = vpop.f32.mrb[0].mxu0
  %v4482 = vadd.f32 %v560, %v4481
  %v4483 = vpop.f32.mrb[0].mxu0
  %v4484 = vpop.f32.mrb[0].mxu0
  %v4485 = vadd.f32 %v560, %v4484
  %v4486 = vpop.f32.mrb[0].mxu0
  %4487 = vmatprep.mubr.bf16.mxu0 0
  %4488 = vmatmul.mubr.bf16.gmra.mrb[0].mxu0 %v2543
  %v4489 = vpop.f32.mrb[0].mxu0
  %v4490 = vadd.f32 %v560, %v4489
  %v4491 = vpop.f32.mrb[0].mxu0
  %v4492 = vpop.f32.mrb[0].mxu0
  %v4493 = vadd.f32 %v560, %v4492
  %v4494 = vpop.f32.mrb[0].mxu0
  %4495 = vmatprep.mubr.bf16.mxu0 0
  %4496 = vmatmul.mubr.bf16.gmra.mrb[0].mxu0 %v2546
  %v4497 = vpop.f32.mrb[0].mxu0
  %v4498 = vadd.f32 %v560, %v4497
  %v4499 = vpop.f32.mrb[0].mxu0
  %v4500 = vpop.f32.mrb[0].mxu0
  %v4501 = vadd.f32 %v560, %v4500
  %v4502 = vpop.f32.mrb[0].mxu0
  %4503 = vmatprep.mubr.bf16.mxu0 0
  %4504 = vmatmul.mubr.bf16.gmra.mrb[0].mxu0 %v2549
  %v4505 = vpop.f32.mrb[0].mxu0
  %v4506 = vadd.f32 %v560, %v4505
  %v4507 = vpop.f32.mrb[0].mxu0
  %v4508 = vpop.f32.mrb[0].mxu0
  %v4509 = vadd.f32 %v560, %v4508
  %v4510 = vpop.f32.mrb[0].mxu0
  %4511 = vmatprep.mubr.bf16.mxu0 0
  %4512 = vmatmul.mubr.bf16.gmra.mrb[0].mxu0 %v2552
  %v4513 = vpop.f32.mrb[0].mxu0
  %v4514 = vadd.f32 %v560, %v4513
  %v4515 = vpop.f32.mrb[0].mxu0
  %v4516 = vpop.f32.mrb[0].mxu0
  %v4517 = vadd.f32 %v560, %v4516
  %v4518 = vpop.f32.mrb[0].mxu0
  %4519 = vmatprep.mubr.bf16.mxu0 0
  %4520 = vmatmul.mubr.bf16.gmra.mrb[0].mxu0 %v2555
  %v4521 = vpop.f32.mrb[0].mxu0
  %v4522 = vadd.f32 %v560, %v4521
  %v4523 = vpop.f32.mrb[0].mxu0
  %v4524 = vpop.f32.mrb[0].mxu0
  %v4525 = vadd.f32 %v560, %v4524
  %v4526 = vpop.f32.mrb[0].mxu0
  %4527 = vmatprep.mubr.bf16.mxu0 0
  %4528 = vmatmul.mubr.bf16.gmra.mrb[0].mxu0 %v2558
  %v4529 = vpop.f32.mrb[0].mxu0
  %v4530 = vadd.f32 %v560, %v4529
  %v4531 = vpop.f32.mrb[0].mxu0
  %v4532 = vpop.f32.mrb[0].mxu0
  %v4533 = vadd.f32 %v560, %v4532
  %v4534 = vpop.f32.mrb[0].mxu0
  %4535 = vmatprep.mubr.bf16.mxu0 0
  %4536 = vmatmul.mubr.bf16.gmra.mrb[0].mxu0 %v2561
  %v4537 = vpop.f32.mrb[0].mxu0
  %v4538 = vadd.f32 %v560, %v4537
  %v4539 = vpop.f32.mrb[0].mxu0
  %v4540 = vpop.f32.mrb[0].mxu0
  %v4541 = vadd.f32 %v560, %v4540
  %v4542 = vpop.f32.mrb[0].mxu0
  %4543 = vmatprep.mubr.bf16.mxu0 0
  %4544 = vmatmul.mubr.bf16.gmra.mrb[0].mxu0 %v2564
  %v4545 = vpop.f32.mrb[0].mxu0
  %v4546 = vadd.f32 %v560, %v4545
  %v4547 = vpop.f32.mrb[0].mxu0
  %v4548 = vpop.f32.mrb[0].mxu0
  %v4549 = vadd.f32 %v560, %v4548
  %v4550 = vpop.f32.mrb[0].mxu0
  %4551 = vmatprep.mubr.bf16.mxu0 0
  %4552 = vmatmul.mubr.bf16.gmra.mrb[0].mxu0 %v2567
  %v4553 = vpop.f32.mrb[0].mxu0
  %v4554 = vadd.f32 %v560, %v4553
  %v4555 = vpop.f32.mrb[0].mxu0
  %v4556 = vpop.f32.mrb[0].mxu0
  %v4557 = vadd.f32 %v560, %v4556
  %v4558 = vpop.f32.mrb[0].mxu0
  %4559 = vmatprep.mubr.bf16.mxu0 0
  %4560 = vmatmul.mubr.bf16.gmra.mrb[0].mxu0 %v2570
  %v4561 = vpop.f32.mrb[0].mxu0
  %v4562 = vadd.f32 %v560, %v4561
  %v4563 = vpop.f32.mrb[0].mxu0
  %v4564 = vpop.f32.mrb[0].mxu0
  %v4565 = vadd.f32 %v560, %v4564
  %v4566 = vpop.f32.mrb[0].mxu0
  %4567 = vmatprep.mubr.bf16.mxu0 0
  %4568 = vmatmul.mubr.bf16.gmra.mrb[0].mxu0 %v2573
  %v4569 = vpop.f32.mrb[0].mxu0
  %v4570 = vadd.f32 %v560, %v4569
  %v4571 = vpop.f32.mrb[0].mxu0
  %v4572 = vpop.f32.mrb[0].mxu0
  %v4573 = vadd.f32 %v560, %v4572
  %v4574 = vpop.f32.mrb[0].mxu0
  %4575 = vmatprep.mubr.bf16.mxu0 0
  %4576 = vmatmul.mubr.bf16.gmra.mrb[0].mxu0 %v2576
  %v4577 = vpop.f32.mrb[0].mxu0
  %v4578 = vadd.f32 %v560, %v4577
  %v4579 = vpop.f32.mrb[0].mxu0
  %v4580 = vpop.f32.mrb[0].mxu0
  %v4581 = vadd.f32 %v560, %v4580
  %v4582 = vpop.f32.mrb[0].mxu0
  %4583 = vmatprep.mubr.bf16.mxu0 0
  %4584 = vmatmul.mubr.bf16.gmra.mrb[0].mxu0 %v2579
  %v4585 = vpop.f32.mrb[0].mxu0
  %v4586 = vadd.f32 %v560, %v4585
  %v4587 = vpop.f32.mrb[0].mxu0
  %v4588 = vpop.f32.mrb[0].mxu0
  %v4589 = vadd.f32 %v560, %v4588
  %v4590 = vpop.f32.mrb[0].mxu0
  %4591 = vmatprep.mubr.bf16.mxu0 0
  %4592 = vmatmul.mubr.bf16.gmra.mrb[0].mxu0 %v2582
  %v4593 = vpop.f32.mrb[0].mxu0
  %v4594 = vadd.f32 %v560, %v4593
  %v4595 = vpop.f32.mrb[0].mxu0
  %v4596 = vpop.f32.mrb[0].mxu0
  %v4597 = vadd.f32 %v560, %v4596
  %v4598 = vpop.f32.mrb[0].mxu0
  %4599 = vmatprep.mubr.bf16.mxu0 0
  %4600 = vmatmul.mubr.bf16.gmra.mrb[0].mxu0 %v2585
  %v4601 = vpop.f32.mrb[0].mxu0
  %v4602 = vadd.f32 %v560, %v4601
  %v4603 = vpop.f32.mrb[0].mxu0
  %v4604 = vpop.f32.mrb[0].mxu0
  %v4605 = vadd.f32 %v560, %v4604
  %v4606 = vpop.f32.mrb[0].mxu0
  %4607 = vmatprep.mubr.bf16.mxu0 0
  %4608 = vmatmul.mubr.bf16.gmra.mrb[0].mxu0 %v2588
  %v4609 = vpop.f32.mrb[0].mxu0
  %v4610 = vadd.f32 %v560, %v4609
  %v4611 = vpop.f32.mrb[0].mxu0
  %v4612 = vpop.f32.mrb[0].mxu0
  %v4613 = vadd.f32 %v560, %v4612
  %v4614 = vpop.f32.mrb[0].mxu0
  %4615 = vmatprep.mubr.bf16.mxu0 0
  %4616 = vmatmul.mubr.bf16.gmra.mrb[0].mxu0 %v2591
  %v4617 = vpop.f32.mrb[0].mxu0
  %v4618 = vadd.f32 %v560, %v4617
  %v4619 = vpop.f32.mrb[0].mxu0
  %v4620 = vpop.f32.mrb[0].mxu0
  %v4621 = vadd.f32 %v560, %v4620
  %v4622 = vpop.f32.mrb[0].mxu0
  %4623 = vmatprep.mubr.bf16.mxu0 0
  %4624 = vmatmul.mubr.bf16.gmra.mrb[0].mxu0 %v2594
  %v4625 = vpop.f32.mrb[0].mxu0
  %v4626 = vadd.f32 %v560, %v4625
  %v4627 = vpop.f32.mrb[0].mxu0
  %v4628 = vpop.f32.mrb[0].mxu0
  %v4629 = vadd.f32 %v560, %v4628
  %v4630 = vpop.f32.mrb[0].mxu0
  %4631 = vmatprep.mubr.bf16.mxu0 0
  %4632 = vmatmul.mubr.bf16.gmra.mrb[0].mxu0 %v2597
  %v4633 = vpop.f32.mrb[0].mxu0
  %v4634 = vadd.f32 %v560, %v4633
  %v4635 = vpop.f32.mrb[0].mxu0
  %v4636 = vpop.f32.mrb[0].mxu0
  %v4637 = vadd.f32 %v560, %v4636
  %v4638 = vpop.f32.mrb[0].mxu0
  %4639 = vmatprep.mubr.bf16.mxu0 0
  %4640 = vmatmul.mubr.bf16.gmra.mrb[0].mxu0 %v2600
  %v4641 = vpop.f32.mrb[0].mxu0
  %v4642 = vadd.f32 %v560, %v4641
  %v4643 = vpop.f32.mrb[0].mxu0
  %v4644 = vpop.f32.mrb[0].mxu0
  %v4645 = vadd.f32 %v560, %v4644
  %v4646 = vpop.f32.mrb[0].mxu0
  %4647 = vmatprep.mubr.bf16.mxu0 0
  %4648 = vmatmul.mubr.bf16.gmra.mrb[0].mxu0 %v2603
  %v4649 = vpop.f32.mrb[0].mxu0
  %v4650 = vadd.f32 %v560, %v4649
  %v4651 = vpop.f32.mrb[0].mxu0
  %v4652 = vpop.f32.mrb[0].mxu0
  %v4653 = vadd.f32 %v560, %v4652
  %v4654 = vpop.f32.mrb[0].mxu0
  %4655 = vmatprep.mubr.bf16.mxu0 0
  %4656 = vmatmul.mubr.bf16.gmra.mrb[0].mxu0 %v2606
  %v4657 = vpop.f32.mrb[0].mxu0
  %v4658 = vadd.f32 %v560, %v4657
  %v4659 = vpop.f32.mrb[0].mxu0
  %v4660 = vpop.f32.mrb[0].mxu0
  %v4661 = vadd.f32 %v560, %v4660
  %v4662 = vpop.f32.mrb[0].mxu0
  %4663 = vmatprep.mubr.bf16.mxu0 0
  %4664 = vmatmul.mubr.bf16.gmra.mrb[0].mxu0 %v2609
  %v4665 = vpop.f32.mrb[0].mxu0
  %v4666 = vadd.f32 %v560, %v4665
  %v4667 = vpop.f32.mrb[0].mxu0
  %v4668 = vpop.f32.mrb[0].mxu0
  %v4669 = vadd.f32 %v560, %v4668
  %v4670 = vpop.f32.mrb[0].mxu0
  %4671 = vmatprep.mubr.bf16.mxu0 0
  %4672 = vmatmul.mubr.bf16.gmra.mrb[0].mxu0 %v2612
  %v4673 = vpop.f32.mrb[0].mxu0
  %v4674 = vadd.f32 %v560, %v4673
  %v4675 = vpop.f32.mrb[0].mxu0
  %v4676 = vpop.f32.mrb[0].mxu0
  %v4677 = vadd.f32 %v560, %v4676
  %v4678 = vpop.f32.mrb[0].mxu0
  %4679 = vmatprep.mubr.bf16.mxu0 0
  %4680 = vmatmul.mubr.bf16.gmra.mrb[0].mxu0 %v2615
  %v4681 = vpop.f32.mrb[0].mxu0
  %v4682 = vadd.f32 %v560, %v4681
  %v4683 = vpop.f32.mrb[0].mxu0
  %v4684 = vpop.f32.mrb[0].mxu0
  %v4685 = vadd.f32 %v560, %v4684
  %v4686 = vpop.f32.mrb[0].mxu0
  %4687 = vmatprep.mubr.bf16.mxu0 0
  %4688 = vmatmul.mubr.bf16.gmra.mrb[0].mxu0 %v2618
  %v4689 = vpop.f32.mrb[0].mxu0
  %v4690 = vadd.f32 %v560, %v4689
  %v4691 = vpop.f32.mrb[0].mxu0
  %v4692 = vpop.f32.mrb[0].mxu0
  %v4693 = vadd.f32 %v560, %v4692
  %v4694 = vpop.f32.mrb[0].mxu0
  %4695 = vmatprep.mubr.bf16.mxu0 0
  %4696 = vmatmul.mubr.bf16.gmra.mrb[0].mxu0 %v2621
  %v4697 = vpop.f32.mrb[0].mxu0
  %v4698 = vadd.f32 %v560, %v4697
  %v4699 = vpop.f32.mrb[0].mxu0
  %v4700 = vpop.f32.mrb[0].mxu0
  %v4701 = vadd.f32 %v560, %v4700
  %v4702 = vpop.f32.mrb[0].mxu0
  %4703 = vdwg.mxu0
  %v4704 = vmax.f32 %v2658, 0.0
  %v4705 = vmax.f32 %v2661, 0.0
  %v4706 = vmax.f32 %v2666, 0.0
  %v4707 = vmax.f32 %v2669, 0.0
  %v4708 = vmax.f32 %v2674, 0.0
  %v4709 = vmax.f32 %v2677, 0.0
  %v4710 = vmax.f32 %v2682, 0.0
  %v4711 = vmax.f32 %v2685, 0.0
  %v4712 = vmax.f32 %v2690, 0.0
  %v4713 = vmax.f32 %v2693, 0.0
  %v4714 = vmax.f32 %v2698, 0.0
  %v4715 = vmax.f32 %v2701, 0.0
  %v4716 = vmax.f32 %v2706, 0.0
  %v4717 = vmax.f32 %v2709, 0.0
  %v4718 = vmax.f32 %v2714, 0.0
  %v4719 = vmax.f32 %v2717, 0.0
  %v4720 = vmax.f32 %v2722, 0.0
  %v4721 = vmax.f32 %v2725, 0.0
  %v4722 = vmax.f32 %v2730, 0.0
  %v4723 = vmax.f32 %v2733, 0.0
  %v4724 = vmax.f32 %v2738, 0.0
  %v4725 = vmax.f32 %v2741, 0.0
  %v4726 = vmax.f32 %v2746, 0.0
  %v4727 = vmax.f32 %v2749, 0.0
  %v4728 = vmax.f32 %v2754, 0.0
  %v4729 = vmax.f32 %v2757, 0.0
  %v4730 = vmax.f32 %v2762, 0.0
  %v4731 = vmax.f32 %v2765, 0.0
  %v4732 = vmax.f32 %v2770, 0.0
  %v4733 = vmax.f32 %v2773, 0.0
  %v4734 = vmax.f32 %v2778, 0.0
  %v4735 = vmax.f32 %v2781, 0.0
  %v4736 = vmax.f32 %v2786, 0.0
  %v4737 = vmax.f32 %v2789, 0.0
  %v4738 = vmax.f32 %v2794, 0.0
  %v4739 = vmax.f32 %v2797, 0.0
  %v4740 = vmax.f32 %v2802, 0.0
  %v4741 = vmax.f32 %v2805, 0.0
  %v4742 = vmax.f32 %v2810, 0.0
  %v4743 = vmax.f32 %v2813, 0.0
  %v4744 = vmax.f32 %v2818, 0.0
  %v4745 = vmax.f32 %v2821, 0.0
  %v4746 = vmax.f32 %v2826, 0.0
  %v4747 = vmax.f32 %v2829, 0.0
  %v4748 = vmax.f32 %v2834, 0.0
  %v4749 = vmax.f32 %v2837, 0.0
  %v4750 = vmax.f32 %v2842, 0.0
  %v4751 = vmax.f32 %v2845, 0.0
  %v4752 = vmax.f32 %v2850, 0.0
  %v4753 = vmax.f32 %v2853, 0.0
  %v4754 = vmax.f32 %v2858, 0.0
  %v4755 = vmax.f32 %v2861, 0.0
  %v4756 = vmax.f32 %v2866, 0.0
  %v4757 = vmax.f32 %v2869, 0.0
  %v4758 = vmax.f32 %v2874, 0.0
  %v4759 = vmax.f32 %v2877, 0.0
  %v4760 = vmax.f32 %v2882, 0.0
  %v4761 = vmax.f32 %v2885, 0.0
  %v4762 = vmax.f32 %v2890, 0.0
  %v4763 = vmax.f32 %v2893, 0.0
  %v4764 = vmax.f32 %v2898, 0.0
  %v4765 = vmax.f32 %v2901, 0.0
  %v4766 = vmax.f32 %v2906, 0.0
  %v4767 = vmax.f32 %v2909, 0.0
  %v4768 = vmax.f32 %v2914, 0.0
  %v4769 = vmax.f32 %v2917, 0.0
  %v4770 = vmax.f32 %v2922, 0.0
  %v4771 = vmax.f32 %v2925, 0.0
  %v4772 = vmax.f32 %v2930, 0.0
  %v4773 = vmax.f32 %v2933, 0.0
  %v4774 = vmax.f32 %v2938, 0.0
  %v4775 = vmax.f32 %v2941, 0.0
  %v4776 = vmax.f32 %v2946, 0.0
  %v4777 = vmax.f32 %v2949, 0.0
  %v4778 = vmax.f32 %v2954, 0.0
  %v4779 = vmax.f32 %v2957, 0.0
  %v4780 = vmax.f32 %v2962, 0.0
  %v4781 = vmax.f32 %v2965, 0.0
  %v4782 = vmax.f32 %v2970, 0.0
  %v4783 = vmax.f32 %v2973, 0.0
  %v4784 = vmax.f32 %v2978, 0.0
  %v4785 = vmax.f32 %v2981, 0.0
  %v4786 = vmax.f32 %v2986, 0.0
  %v4787 = vmax.f32 %v2989, 0.0
  %v4788 = vmax.f32 %v2994, 0.0
  %v4789 = vmax.f32 %v2997, 0.0
  %v4790 = vmax.f32 %v3002, 0.0
  %v4791 = vmax.f32 %v3005, 0.0
  %v4792 = vmax.f32 %v3010, 0.0
  %v4793 = vmax.f32 %v3013, 0.0
  %v4794 = vmax.f32 %v3018, 0.0
  %v4795 = vmax.f32 %v3021, 0.0
  %v4796 = vmax.f32 %v3026, 0.0
  %v4797 = vmax.f32 %v3029, 0.0
  %v4798 = vmax.f32 %v3034, 0.0
  %v4799 = vmax.f32 %v3037, 0.0
  %v4800 = vmax.f32 %v3042, 0.0
  %v4801 = vmax.f32 %v3045, 0.0
  %v4802 = vmax.f32 %v3050, 0.0
  %v4803 = vmax.f32 %v3053, 0.0
  %v4804 = vmax.f32 %v3058, 0.0
  %v4805 = vmax.f32 %v3061, 0.0
  %v4806 = vmax.f32 %v3066, 0.0
  %v4807 = vmax.f32 %v3069, 0.0
  %v4808 = vmax.f32 %v3074, 0.0
  %v4809 = vmax.f32 %v3077, 0.0
  %v4810 = vmax.f32 %v3082, 0.0
  %v4811 = vmax.f32 %v3085, 0.0
  %v4812 = vmax.f32 %v3090, 0.0
  %v4813 = vmax.f32 %v3093, 0.0
  %v4814 = vmax.f32 %v3098, 0.0
  %v4815 = vmax.f32 %v3101, 0.0
  %v4816 = vmax.f32 %v3106, 0.0
  %v4817 = vmax.f32 %v3109, 0.0
  %v4818 = vmax.f32 %v3114, 0.0
  %v4819 = vmax.f32 %v3117, 0.0
  %v4820 = vmax.f32 %v3122, 0.0
  %v4821 = vmax.f32 %v3125, 0.0
  %v4822 = vmax.f32 %v3130, 0.0
  %v4823 = vmax.f32 %v3133, 0.0
  %v4824 = vmax.f32 %v3138, 0.0
  %v4825 = vmax.f32 %v3141, 0.0
  %v4826 = vmax.f32 %v3146, 0.0
  %v4827 = vmax.f32 %v3149, 0.0
  %v4828 = vmax.f32 %v3154, 0.0
  %v4829 = vmax.f32 %v3157, 0.0
  %v4830 = vmax.f32 %v3162, 0.0
  %v4831 = vmax.f32 %v3165, 0.0
  %v4832 = vmax.f32 %v3170, 0.0
  %v4833 = vmax.f32 %v3173, 0.0
  %v4834 = vmax.f32 %v3178, 0.0
  %v4835 = vmax.f32 %v3181, 0.0
  %v4836 = vmax.f32 %v3186, 0.0
  %v4837 = vmax.f32 %v3189, 0.0
  %v4838 = vmax.f32 %v3194, 0.0
  %v4839 = vmax.f32 %v3197, 0.0
  %v4840 = vmax.f32 %v3202, 0.0
  %v4841 = vmax.f32 %v3205, 0.0
  %v4842 = vmax.f32 %v3210, 0.0
  %v4843 = vmax.f32 %v3213, 0.0
  %v4844 = vmax.f32 %v3218, 0.0
  %v4845 = vmax.f32 %v3221, 0.0
  %v4846 = vmax.f32 %v3226, 0.0
  %v4847 = vmax.f32 %v3229, 0.0
  %v4848 = vmax.f32 %v3234, 0.0
  %v4849 = vmax.f32 %v3237, 0.0
  %v4850 = vmax.f32 %v3242, 0.0
  %v4851 = vmax.f32 %v3245, 0.0
  %v4852 = vmax.f32 %v3250, 0.0
  %v4853 = vmax.f32 %v3253, 0.0
  %v4854 = vmax.f32 %v3258, 0.0
  %v4855 = vmax.f32 %v3261, 0.0
  %v4856 = vmax.f32 %v3266, 0.0
  %v4857 = vmax.f32 %v3269, 0.0
  %v4858 = vmax.f32 %v3274, 0.0
  %v4859 = vmax.f32 %v3277, 0.0
  %v4860 = vmax.f32 %v3282, 0.0
  %v4861 = vmax.f32 %v3285, 0.0
  %v4862 = vmax.f32 %v3290, 0.0
  %v4863 = vmax.f32 %v3293, 0.0
  %v4864 = vmax.f32 %v3298, 0.0
  %v4865 = vmax.f32 %v3301, 0.0
  %v4866 = vmax.f32 %v3306, 0.0
  %v4867 = vmax.f32 %v3309, 0.0
  %v4868 = vmax.f32 %v3314, 0.0
  %v4869 = vmax.f32 %v3317, 0.0
  %v4870 = vmax.f32 %v3322, 0.0
  %v4871 = vmax.f32 %v3325, 0.0
  %v4872 = vmax.f32 %v3330, 0.0
  %v4873 = vmax.f32 %v3333, 0.0
  %v4874 = vmax.f32 %v3338, 0.0
  %v4875 = vmax.f32 %v3341, 0.0
  %v4876 = vmax.f32 %v3346, 0.0
  %v4877 = vmax.f32 %v3349, 0.0
  %v4878 = vmax.f32 %v3354, 0.0
  %v4879 = vmax.f32 %v3357, 0.0
  %v4880 = vmax.f32 %v3362, 0.0
  %v4881 = vmax.f32 %v3365, 0.0
  %v4882 = vmax.f32 %v3370, 0.0
  %v4883 = vmax.f32 %v3373, 0.0
  %v4884 = vmax.f32 %v3378, 0.0
  %v4885 = vmax.f32 %v3381, 0.0
  %v4886 = vmax.f32 %v3386, 0.0
  %v4887 = vmax.f32 %v3389, 0.0
  %v4888 = vmax.f32 %v3394, 0.0
  %v4889 = vmax.f32 %v3397, 0.0
  %v4890 = vmax.f32 %v3402, 0.0
  %v4891 = vmax.f32 %v3405, 0.0
  %v4892 = vmax.f32 %v3410, 0.0
  %v4893 = vmax.f32 %v3413, 0.0
  %v4894 = vmax.f32 %v3418, 0.0
  %v4895 = vmax.f32 %v3421, 0.0
  %v4896 = vmax.f32 %v3426, 0.0
  %v4897 = vmax.f32 %v3429, 0.0
  %v4898 = vmax.f32 %v3434, 0.0
  %v4899 = vmax.f32 %v3437, 0.0
  %v4900 = vmax.f32 %v3442, 0.0
  %v4901 = vmax.f32 %v3445, 0.0
  %v4902 = vmax.f32 %v3450, 0.0
  %v4903 = vmax.f32 %v3453, 0.0
  %v4904 = vmax.f32 %v3458, 0.0
  %v4905 = vmax.f32 %v3461, 0.0
  %v4906 = vmax.f32 %v3466, 0.0
  %v4907 = vmax.f32 %v3469, 0.0
  %v4908 = vmax.f32 %v3474, 0.0
  %v4909 = vmax.f32 %v3477, 0.0
  %v4910 = vmax.f32 %v3482, 0.0
  %v4911 = vmax.f32 %v3485, 0.0
  %v4912 = vmax.f32 %v3490, 0.0
  %v4913 = vmax.f32 %v3493, 0.0
  %v4914 = vmax.f32 %v3498, 0.0
  %v4915 = vmax.f32 %v3501, 0.0
  %v4916 = vmax.f32 %v3506, 0.0
  %v4917 = vmax.f32 %v3509, 0.0
  %v4918 = vmax.f32 %v3514, 0.0
  %v4919 = vmax.f32 %v3517, 0.0
  %v4920 = vmax.f32 %v3522, 0.0
  %v4921 = vmax.f32 %v3525, 0.0
  %v4922 = vmax.f32 %v3530, 0.0
  %v4923 = vmax.f32 %v3533, 0.0
  %v4924 = vmax.f32 %v3538, 0.0
  %v4925 = vmax.f32 %v3541, 0.0
  %v4926 = vmax.f32 %v3546, 0.0
  %v4927 = vmax.f32 %v3549, 0.0
  %v4928 = vmax.f32 %v3554, 0.0
  %v4929 = vmax.f32 %v3557, 0.0
  %v4930 = vmax.f32 %v3562, 0.0
  %v4931 = vmax.f32 %v3565, 0.0
  %v4932 = vmax.f32 %v3570, 0.0
  %v4933 = vmax.f32 %v3573, 0.0
  %v4934 = vmax.f32 %v3578, 0.0
  %v4935 = vmax.f32 %v3581, 0.0
  %v4936 = vmax.f32 %v3586, 0.0
  %v4937 = vmax.f32 %v3589, 0.0
  %v4938 = vmax.f32 %v3594, 0.0
  %v4939 = vmax.f32 %v3597, 0.0
  %v4940 = vmax.f32 %v3602, 0.0
  %v4941 = vmax.f32 %v3605, 0.0
  %v4942 = vmax.f32 %v3610, 0.0
  %v4943 = vmax.f32 %v3613, 0.0
  %v4944 = vmax.f32 %v3618, 0.0
  %v4945 = vmax.f32 %v3621, 0.0
  %v4946 = vmax.f32 %v3626, 0.0
  %v4947 = vmax.f32 %v3629, 0.0
  %v4948 = vmax.f32 %v3634, 0.0
  %v4949 = vmax.f32 %v3637, 0.0
  %v4950 = vmax.f32 %v3642, 0.0
  %v4951 = vmax.f32 %v3645, 0.0
  %v4952 = vmax.f32 %v3650, 0.0
  %v4953 = vmax.f32 %v3653, 0.0
  %v4954 = vmax.f32 %v3658, 0.0
  %v4955 = vmax.f32 %v3661, 0.0
  %v4956 = vmax.f32 %v3666, 0.0
  %v4957 = vmax.f32 %v3669, 0.0
  %v4958 = vmax.f32 %v3674, 0.0
  %v4959 = vmax.f32 %v3677, 0.0
  %v4960 = vmax.f32 %v3682, 0.0
  %v4961 = vmax.f32 %v3685, 0.0
  %v4962 = vmax.f32 %v3690, 0.0
  %v4963 = vmax.f32 %v3693, 0.0
  %v4964 = vmax.f32 %v3698, 0.0
  %v4965 = vmax.f32 %v3701, 0.0
  %v4966 = vmax.f32 %v3706, 0.0
  %v4967 = vmax.f32 %v3709, 0.0
  %v4968 = vmax.f32 %v3714, 0.0
  %v4969 = vmax.f32 %v3717, 0.0
  %v4970 = vmax.f32 %v3722, 0.0
  %v4971 = vmax.f32 %v3725, 0.0
  %v4972 = vmax.f32 %v3730, 0.0
  %v4973 = vmax.f32 %v3733, 0.0
  %v4974 = vmax.f32 %v3738, 0.0
  %v4975 = vmax.f32 %v3741, 0.0
  %v4976 = vmax.f32 %v3746, 0.0
  %v4977 = vmax.f32 %v3749, 0.0
  %v4978 = vmax.f32 %v3754, 0.0
  %v4979 = vmax.f32 %v3757, 0.0
  %v4980 = vmax.f32 %v3762, 0.0
  %v4981 = vmax.f32 %v3765, 0.0
  %v4982 = vmax.f32 %v3770, 0.0
  %v4983 = vmax.f32 %v3773, 0.0
  %v4984 = vmax.f32 %v3778, 0.0
  %v4985 = vmax.f32 %v3781, 0.0
  %v4986 = vmax.f32 %v3786, 0.0
  %v4987 = vmax.f32 %v3789, 0.0
  %v4988 = vmax.f32 %v3794, 0.0
  %v4989 = vmax.f32 %v3797, 0.0
  %v4990 = vmax.f32 %v3802, 0.0
  %v4991 = vmax.f32 %v3805, 0.0
  %v4992 = vmax.f32 %v3810, 0.0
  %v4993 = vmax.f32 %v3813, 0.0
  %v4994 = vmax.f32 %v3818, 0.0
  %v4995 = vmax.f32 %v3821, 0.0
  %v4996 = vmax.f32 %v3826, 0.0
  %v4997 = vmax.f32 %v3829, 0.0
  %v4998 = vmax.f32 %v3834, 0.0
  %v4999 = vmax.f32 %v3837, 0.0
  %v5000 = vmax.f32 %v3842, 0.0
  %v5001 = vmax.f32 %v3845, 0.0
  %v5002 = vmax.f32 %v3850, 0.0
  %v5003 = vmax.f32 %v3853, 0.0
  %v5004 = vmax.f32 %v3858, 0.0
  %v5005 = vmax.f32 %v3861, 0.0
  %v5006 = vmax.f32 %v3866, 0.0
  %v5007 = vmax.f32 %v3869, 0.0
  %v5008 = vmax.f32 %v3874, 0.0
  %v5009 = vmax.f32 %v3877, 0.0
  %v5010 = vmax.f32 %v3882, 0.0
  %v5011 = vmax.f32 %v3885, 0.0
  %v5012 = vmax.f32 %v3890, 0.0
  %v5013 = vmax.f32 %v3893, 0.0
  %v5014 = vmax.f32 %v3898, 0.0
  %v5015 = vmax.f32 %v3901, 0.0
  %v5016 = vmax.f32 %v3906, 0.0
  %v5017 = vmax.f32 %v3909, 0.0
  %v5018 = vmax.f32 %v3914, 0.0
  %v5019 = vmax.f32 %v3917, 0.0
  %v5020 = vmax.f32 %v3922, 0.0
  %v5021 = vmax.f32 %v3925, 0.0
  %v5022 = vmax.f32 %v3930, 0.0
  %v5023 = vmax.f32 %v3933, 0.0
  %v5024 = vmax.f32 %v3938, 0.0
  %v5025 = vmax.f32 %v3941, 0.0
  %v5026 = vmax.f32 %v3946, 0.0
  %v5027 = vmax.f32 %v3949, 0.0
  %v5028 = vmax.f32 %v3954, 0.0
  %v5029 = vmax.f32 %v3957, 0.0
  %v5030 = vmax.f32 %v3962, 0.0
  %v5031 = vmax.f32 %v3965, 0.0
  %v5032 = vmax.f32 %v3970, 0.0
  %v5033 = vmax.f32 %v3973, 0.0
  %v5034 = vmax.f32 %v3978, 0.0
  %v5035 = vmax.f32 %v3981, 0.0
  %v5036 = vmax.f32 %v3986, 0.0
  %v5037 = vmax.f32 %v3989, 0.0
  %v5038 = vmax.f32 %v3994, 0.0
  %v5039 = vmax.f32 %v3997, 0.0
  %v5040 = vmax.f32 %v4002, 0.0
  %v5041 = vmax.f32 %v4005, 0.0
  %v5042 = vmax.f32 %v4010, 0.0
  %v5043 = vmax.f32 %v4013, 0.0
  %v5044 = vmax.f32 %v4018, 0.0
  %v5045 = vmax.f32 %v4021, 0.0
  %v5046 = vmax.f32 %v4026, 0.0
  %v5047 = vmax.f32 %v4029, 0.0
  %v5048 = vmax.f32 %v4034, 0.0
  %v5049 = vmax.f32 %v4037, 0.0
  %v5050 = vmax.f32 %v4042, 0.0
  %v5051 = vmax.f32 %v4045, 0.0
  %v5052 = vmax.f32 %v4050, 0.0
  %v5053 = vmax.f32 %v4053, 0.0
  %v5054 = vmax.f32 %v4058, 0.0
  %v5055 = vmax.f32 %v4061, 0.0
  %v5056 = vmax.f32 %v4066, 0.0
  %v5057 = vmax.f32 %v4069, 0.0
  %v5058 = vmax.f32 %v4074, 0.0
  %v5059 = vmax.f32 %v4077, 0.0
  %v5060 = vmax.f32 %v4082, 0.0
  %v5061 = vmax.f32 %v4085, 0.0
  %v5062 = vmax.f32 %v4090, 0.0
  %v5063 = vmax.f32 %v4093, 0.0
  %v5064 = vmax.f32 %v4098, 0.0
  %v5065 = vmax.f32 %v4101, 0.0
  %v5066 = vmax.f32 %v4106, 0.0
  %v5067 = vmax.f32 %v4109, 0.0
  %v5068 = vmax.f32 %v4114, 0.0
  %v5069 = vmax.f32 %v4117, 0.0
  %v5070 = vmax.f32 %v4122, 0.0
  %v5071 = vmax.f32 %v4125, 0.0
  %v5072 = vmax.f32 %v4130, 0.0
  %v5073 = vmax.f32 %v4133, 0.0
  %v5074 = vmax.f32 %v4138, 0.0
  %v5075 = vmax.f32 %v4141, 0.0
  %v5076 = vmax.f32 %v4146, 0.0
  %v5077 = vmax.f32 %v4149, 0.0
  %v5078 = vmax.f32 %v4154, 0.0
  %v5079 = vmax.f32 %v4157, 0.0
  %v5080 = vmax.f32 %v4162, 0.0
  %v5081 = vmax.f32 %v4165, 0.0
  %v5082 = vmax.f32 %v4170, 0.0
  %v5083 = vmax.f32 %v4173, 0.0
  %v5084 = vmax.f32 %v4178, 0.0
  %v5085 = vmax.f32 %v4181, 0.0
  %v5086 = vmax.f32 %v4186, 0.0
  %v5087 = vmax.f32 %v4189, 0.0
  %v5088 = vmax.f32 %v4194, 0.0
  %v5089 = vmax.f32 %v4197, 0.0
  %v5090 = vmax.f32 %v4202, 0.0
  %v5091 = vmax.f32 %v4205, 0.0
  %v5092 = vmax.f32 %v4210, 0.0
  %v5093 = vmax.f32 %v4213, 0.0
  %v5094 = vmax.f32 %v4218, 0.0
  %v5095 = vmax.f32 %v4221, 0.0
  %v5096 = vmax.f32 %v4226, 0.0
  %v5097 = vmax.f32 %v4229, 0.0
  %v5098 = vmax.f32 %v4234, 0.0
  %v5099 = vmax.f32 %v4237, 0.0
  %v5100 = vmax.f32 %v4242, 0.0
  %v5101 = vmax.f32 %v4245, 0.0
  %v5102 = vmax.f32 %v4250, 0.0
  %v5103 = vmax.f32 %v4253, 0.0
  %v5104 = vmax.f32 %v4258, 0.0
  %v5105 = vmax.f32 %v4261, 0.0
  %v5106 = vmax.f32 %v4266, 0.0
  %v5107 = vmax.f32 %v4269, 0.0
  %v5108 = vmax.f32 %v4274, 0.0
  %v5109 = vmax.f32 %v4277, 0.0
  %v5110 = vmax.f32 %v4282, 0.0
  %v5111 = vmax.f32 %v4285, 0.0
  %v5112 = vmax.f32 %v4290, 0.0
  %v5113 = vmax.f32 %v4293, 0.0
  %v5114 = vmax.f32 %v4298, 0.0
  %v5115 = vmax.f32 %v4301, 0.0
  %v5116 = vmax.f32 %v4306, 0.0
  %v5117 = vmax.f32 %v4309, 0.0
  %v5118 = vmax.f32 %v4314, 0.0
  %v5119 = vmax.f32 %v4317, 0.0
  %v5120 = vmax.f32 %v4322, 0.0
  %v5121 = vmax.f32 %v4325, 0.0
  %v5122 = vmax.f32 %v4330, 0.0
  %v5123 = vmax.f32 %v4333, 0.0
  %v5124 = vmax.f32 %v4338, 0.0
  %v5125 = vmax.f32 %v4341, 0.0
  %v5126 = vmax.f32 %v4346, 0.0
  %v5127 = vmax.f32 %v4349, 0.0
  %v5128 = vmax.f32 %v4354, 0.0
  %v5129 = vmax.f32 %v4357, 0.0
  %v5130 = vmax.f32 %v4362, 0.0
  %v5131 = vmax.f32 %v4365, 0.0
  %v5132 = vmax.f32 %v4370, 0.0
  %v5133 = vmax.f32 %v4373, 0.0
  %v5134 = vmax.f32 %v4378, 0.0
  %v5135 = vmax.f32 %v4381, 0.0
  %v5136 = vmax.f32 %v4386, 0.0
  %v5137 = vmax.f32 %v4389, 0.0
  %v5138 = vmax.f32 %v4394, 0.0
  %v5139 = vmax.f32 %v4397, 0.0
  %v5140 = vmax.f32 %v4402, 0.0
  %v5141 = vmax.f32 %v4405, 0.0
  %v5142 = vmax.f32 %v4410, 0.0
  %v5143 = vmax.f32 %v4413, 0.0
  %v5144 = vmax.f32 %v4418, 0.0
  %v5145 = vmax.f32 %v4421, 0.0
  %v5146 = vmax.f32 %v4426, 0.0
  %v5147 = vmax.f32 %v4429, 0.0
  %v5148 = vmax.f32 %v4434, 0.0
  %v5149 = vmax.f32 %v4437, 0.0
  %v5150 = vmax.f32 %v4442, 0.0
  %v5151 = vmax.f32 %v4445, 0.0
  %v5152 = vmax.f32 %v4450, 0.0
  %v5153 = vmax.f32 %v4453, 0.0
  %v5154 = vmax.f32 %v4458, 0.0
  %v5155 = vmax.f32 %v4461, 0.0
  %v5156 = vmax.f32 %v4466, 0.0
  %v5157 = vmax.f32 %v4469, 0.0
  %v5158 = vmax.f32 %v4474, 0.0
  %v5159 = vmax.f32 %v4477, 0.0
  %v5160 = vmax.f32 %v4482, 0.0
  %v5161 = vmax.f32 %v4485, 0.0
  %v5162 = vmax.f32 %v4490, 0.0
  %v5163 = vmax.f32 %v4493, 0.0
  %v5164 = vmax.f32 %v4498, 0.0
  %v5165 = vmax.f32 %v4501, 0.0
  %v5166 = vmax.f32 %v4506, 0.0
  %v5167 = vmax.f32 %v4509, 0.0
  %v5168 = vmax.f32 %v4514, 0.0
  %v5169 = vmax.f32 %v4517, 0.0
  %v5170 = vmax.f32 %v4522, 0.0
  %v5171 = vmax.f32 %v4525, 0.0
  %v5172 = vmax.f32 %v4530, 0.0
  %v5173 = vmax.f32 %v4533, 0.0
  %v5174 = vmax.f32 %v4538, 0.0
  %v5175 = vmax.f32 %v4541, 0.0
  %v5176 = vmax.f32 %v4546, 0.0
  %v5177 = vmax.f32 %v4549, 0.0
  %v5178 = vmax.f32 %v4554, 0.0
  %v5179 = vmax.f32 %v4557, 0.0
  %v5180 = vmax.f32 %v4562, 0.0
  %v5181 = vmax.f32 %v4565, 0.0
  %v5182 = vmax.f32 %v4570, 0.0
  %v5183 = vmax.f32 %v4573, 0.0
  %v5184 = vmax.f32 %v4578, 0.0
  %v5185 = vmax.f32 %v4581, 0.0
  %v5186 = vmax.f32 %v4586, 0.0
  %v5187 = vmax.f32 %v4589, 0.0
  %v5188 = vmax.f32 %v4594, 0.0
  %v5189 = vmax.f32 %v4597, 0.0
  %v5190 = vmax.f32 %v4602, 0.0
  %v5191 = vmax.f32 %v4605, 0.0
  %v5192 = vmax.f32 %v4610, 0.0
  %v5193 = vmax.f32 %v4613, 0.0
  %v5194 = vmax.f32 %v4618, 0.0
  %v5195 = vmax.f32 %v4621, 0.0
  %v5196 = vmax.f32 %v4626, 0.0
  %v5197 = vmax.f32 %v4629, 0.0
  %v5198 = vmax.f32 %v4634, 0.0
  %v5199 = vmax.f32 %v4637, 0.0
  %v5200 = vmax.f32 %v4642, 0.0
  %v5201 = vmax.f32 %v4645, 0.0
  %v5202 = vmax.f32 %v4650, 0.0
  %v5203 = vmax.f32 %v4653, 0.0
  %v5204 = vmax.f32 %v4658, 0.0
  %v5205 = vmax.f32 %v4661, 0.0
  %v5206 = vmax.f32 %v4666, 0.0
  %v5207 = vmax.f32 %v4669, 0.0
  %v5208 = vmax.f32 %v4674, 0.0
  %v5209 = vmax.f32 %v4677, 0.0
  %v5210 = vmax.f32 %v4682, 0.0
  %v5211 = vmax.f32 %v4685, 0.0
  %v5212 = vmax.f32 %v4690, 0.0
  %v5213 = vmax.f32 %v4693, 0.0
  %v5214 = vmax.f32 %v4698, 0.0
  %v5215 = vmax.f32 %v4701, 0.0
  %v5216 = vld [vmem:[%s3] sm:$0xff]
  %v5217 = vld [vmem:[%s3 + $0x8] sm:$0xff]
  %v5218 = vld [vmem:[%s3 + $0x10] sm:$0xff]
  %v5219 = vld [vmem:[%s3 + $0x18] sm:$0xff]
  %v5220 = vld [vmem:[%s3 + $0x20] sm:$0xff]
  %v5221 = vld [vmem:[%s3 + $0x28] sm:$0xff]
  %v5222 = vld [vmem:[%s3 + $0x30] sm:$0xff]
  %v5223 = vld [vmem:[%s3 + $0x38] sm:$0xff]
  %v5224 = vld [vmem:[%s3 + $0x40] sm:$0xff]
  %v5225 = vld [vmem:[%s3 + $0x48] sm:$0xff]
  %v5226 = vld [vmem:[%s3 + $0x50] sm:$0xff]
  %v5227 = vld [vmem:[%s3 + $0x58] sm:$0xff]
  %v5228 = vld [vmem:[%s3 + $0x60] sm:$0xff]
  %v5229 = vld [vmem:[%s3 + $0x68] sm:$0xff]
  %v5230 = vld [vmem:[%s3 + $0x70] sm:$0xff]
  %v5231 = vld [vmem:[%s3 + $0x78] sm:$0xff]
  %v5232 = vld [vmem:[%s3 + $0x80] sm:$0xff]
  %v5233 = vld [vmem:[%s3 + $0x88] sm:$0xff]
  %v5234 = vld [vmem:[%s3 + $0x90] sm:$0xff]
  %v5235 = vld [vmem:[%s3 + $0x98] sm:$0xff]
  %v5236 = vld [vmem:[%s3 + $0xa0] sm:$0xff]
  %v5237 = vld [vmem:[%s3 + $0xa8] sm:$0xff]
  %v5238 = vld [vmem:[%s3 + $0xb0] sm:$0xff]
  %v5239 = vld [vmem:[%s3 + $0xb8] sm:$0xff]
  %v5240 = vld [vmem:[%s3 + $0xc0] sm:$0xff]
  %v5241 = vld [vmem:[%s3 + $0xc8] sm:$0xff]
  %v5242 = vld [vmem:[%s3 + $0xd0] sm:$0xff]
  %v5243 = vld [vmem:[%s3 + $0xd8] sm:$0xff]
  %v5244 = vld [vmem:[%s3 + $0xe0] sm:$0xff]
  %v5245 = vld [vmem:[%s3 + $0xe8] sm:$0xff]
  %v5246 = vld [vmem:[%s3 + $0xf0] sm:$0xff]
  %v5247 = vld [vmem:[%s3 + $0xf8] sm:$0xff]
  %v5248 = vpack.c.bf16 %v4705, %v4704
  %v5249 = vpack.c.bf16 %v4707, %v4706
  %v5250 = vpack.c.bf16 %v4709, %v4708
  %v5251 = vpack.c.bf16 %v4711, %v4710
  %v5252 = vpack.c.bf16 %v4713, %v4712
  %v5253 = vpack.c.bf16 %v4715, %v4714
  %v5254 = vpack.c.bf16 %v4717, %v4716
  %v5255 = vpack.c.bf16 %v4719, %v4718
  %v5256 = vpack.c.bf16 %v4721, %v4720
  %v5257 = vpack.c.bf16 %v4723, %v4722
  %v5258 = vpack.c.bf16 %v4725, %v4724
  %v5259 = vpack.c.bf16 %v4727, %v4726
  %v5260 = vpack.c.bf16 %v4729, %v4728
  %v5261 = vpack.c.bf16 %v4731, %v4730
  %v5262 = vpack.c.bf16 %v4733, %v4732
  %v5263 = vpack.c.bf16 %v4735, %v4734
  %v5264 = vpack.c.bf16 %v4737, %v4736
  %v5265 = vpack.c.bf16 %v4739, %v4738
  %v5266 = vpack.c.bf16 %v4741, %v4740
  %v5267 = vpack.c.bf16 %v4743, %v4742
  %v5268 = vpack.c.bf16 %v4745, %v4744
  %v5269 = vpack.c.bf16 %v4747, %v4746
  %v5270 = vpack.c.bf16 %v4749, %v4748
  %v5271 = vpack.c.bf16 %v4751, %v4750
  %v5272 = vpack.c.bf16 %v4753, %v4752
  %v5273 = vpack.c.bf16 %v4755, %v4754
  %v5274 = vpack.c.bf16 %v4757, %v4756
  %v5275 = vpack.c.bf16 %v4759, %v4758
  %v5276 = vpack.c.bf16 %v4761, %v4760
  %v5277 = vpack.c.bf16 %v4763, %v4762
  %v5278 = vpack.c.bf16 %v4765, %v4764
  %v5279 = vpack.c.bf16 %v4767, %v4766
  %v5280 = vpack.c.bf16 %v4769, %v4768
  %v5281 = vpack.c.bf16 %v4771, %v4770
  %v5282 = vpack.c.bf16 %v4773, %v4772
  %v5283 = vpack.c.bf16 %v4775, %v4774
  %v5284 = vpack.c.bf16 %v4777, %v4776
  %v5285 = vpack.c.bf16 %v4779, %v4778
  %v5286 = vpack.c.bf16 %v4781, %v4780
  %v5287 = vpack.c.bf16 %v4783, %v4782
  %v5288 = vpack.c.bf16 %v4785, %v4784
  %v5289 = vpack.c.bf16 %v4787, %v4786
  %v5290 = vpack.c.bf16 %v4789, %v4788
  %v5291 = vpack.c.bf16 %v4791, %v4790
  %v5292 = vpack.c.bf16 %v4793, %v4792
  %v5293 = vpack.c.bf16 %v4795, %v4794
  %v5294 = vpack.c.bf16 %v4797, %v4796
  %v5295 = vpack.c.bf16 %v4799, %v4798
  %v5296 = vpack.c.bf16 %v4801, %v4800
  %v5297 = vpack.c.bf16 %v4803, %v4802
  %v5298 = vpack.c.bf16 %v4805, %v4804
  %v5299 = vpack.c.bf16 %v4807, %v4806
  %v5300 = vpack.c.bf16 %v4809, %v4808
  %v5301 = vpack.c.bf16 %v4811, %v4810
  %v5302 = vpack.c.bf16 %v4813, %v4812
  %v5303 = vpack.c.bf16 %v4815, %v4814
  %v5304 = vpack.c.bf16 %v4817, %v4816
  %v5305 = vpack.c.bf16 %v4819, %v4818
  %v5306 = vpack.c.bf16 %v4821, %v4820
  %v5307 = vpack.c.bf16 %v4823, %v4822
  %v5308 = vpack.c.bf16 %v4825, %v4824
  %v5309 = vpack.c.bf16 %v4827, %v4826
  %v5310 = vpack.c.bf16 %v4829, %v4828
  %v5311 = vpack.c.bf16 %v4831, %v4830
  %v5312 = vpack.c.bf16 %v4833, %v4832
  %v5313 = vpack.c.bf16 %v4835, %v4834
  %v5314 = vpack.c.bf16 %v4837, %v4836
  %v5315 = vpack.c.bf16 %v4839, %v4838
  %v5316 = vpack.c.bf16 %v4841, %v4840
  %v5317 = vpack.c.bf16 %v4843, %v4842
  %v5318 = vpack.c.bf16 %v4845, %v4844
  %v5319 = vpack.c.bf16 %v4847, %v4846
  %v5320 = vpack.c.bf16 %v4849, %v4848
  %v5321 = vpack.c.bf16 %v4851, %v4850
  %v5322 = vpack.c.bf16 %v4853, %v4852
  %v5323 = vpack.c.bf16 %v4855, %v4854
  %v5324 = vpack.c.bf16 %v4857, %v4856
  %v5325 = vpack.c.bf16 %v4859, %v4858
  %v5326 = vpack.c.bf16 %v4861, %v4860
  %v5327 = vpack.c.bf16 %v4863, %v4862
  %v5328 = vpack.c.bf16 %v4865, %v4864
  %v5329 = vpack.c.bf16 %v4867, %v4866
  %v5330 = vpack.c.bf16 %v4869, %v4868
  %v5331 = vpack.c.bf16 %v4871, %v4870
  %v5332 = vpack.c.bf16 %v4873, %v4872
  %v5333 = vpack.c.bf16 %v4875, %v4874
  %v5334 = vpack.c.bf16 %v4877, %v4876
  %v5335 = vpack.c.bf16 %v4879, %v4878
  %v5336 = vpack.c.bf16 %v4881, %v4880
  %v5337 = vpack.c.bf16 %v4883, %v4882
  %v5338 = vpack.c.bf16 %v4885, %v4884
  %v5339 = vpack.c.bf16 %v4887, %v4886
  %v5340 = vpack.c.bf16 %v4889, %v4888
  %v5341 = vpack.c.bf16 %v4891, %v4890
  %v5342 = vpack.c.bf16 %v4893, %v4892
  %v5343 = vpack.c.bf16 %v4895, %v4894
  %v5344 = vpack.c.bf16 %v4897, %v4896
  %v5345 = vpack.c.bf16 %v4899, %v4898
  %v5346 = vpack.c.bf16 %v4901, %v4900
  %v5347 = vpack.c.bf16 %v4903, %v4902
  %v5348 = vpack.c.bf16 %v4905, %v4904
  %v5349 = vpack.c.bf16 %v4907, %v4906
  %v5350 = vpack.c.bf16 %v4909, %v4908
  %v5351 = vpack.c.bf16 %v4911, %v4910
  %v5352 = vpack.c.bf16 %v4913, %v4912
  %v5353 = vpack.c.bf16 %v4915, %v4914
  %v5354 = vpack.c.bf16 %v4917, %v4916
  %v5355 = vpack.c.bf16 %v4919, %v4918
  %v5356 = vpack.c.bf16 %v4921, %v4920
  %v5357 = vpack.c.bf16 %v4923, %v4922
  %v5358 = vpack.c.bf16 %v4925, %v4924
  %v5359 = vpack.c.bf16 %v4927, %v4926
  %v5360 = vpack.c.bf16 %v4929, %v4928
  %v5361 = vpack.c.bf16 %v4931, %v4930
  %v5362 = vpack.c.bf16 %v4933, %v4932
  %v5363 = vpack.c.bf16 %v4935, %v4934
  %v5364 = vpack.c.bf16 %v4937, %v4936
  %v5365 = vpack.c.bf16 %v4939, %v4938
  %v5366 = vpack.c.bf16 %v4941, %v4940
  %v5367 = vpack.c.bf16 %v4943, %v4942
  %v5368 = vpack.c.bf16 %v4945, %v4944
  %v5369 = vpack.c.bf16 %v4947, %v4946
  %v5370 = vpack.c.bf16 %v4949, %v4948
  %v5371 = vpack.c.bf16 %v4951, %v4950
  %v5372 = vpack.c.bf16 %v4953, %v4952
  %v5373 = vpack.c.bf16 %v4955, %v4954
  %v5374 = vpack.c.bf16 %v4957, %v4956
  %v5375 = vpack.c.bf16 %v4959, %v4958
  %v5376 = vpack.c.bf16 %v4961, %v4960
  %v5377 = vpack.c.bf16 %v4963, %v4962
  %v5378 = vpack.c.bf16 %v4965, %v4964
  %v5379 = vpack.c.bf16 %v4967, %v4966
  %v5380 = vpack.c.bf16 %v4969, %v4968
  %v5381 = vpack.c.bf16 %v4971, %v4970
  %v5382 = vpack.c.bf16 %v4973, %v4972
  %v5383 = vpack.c.bf16 %v4975, %v4974
  %v5384 = vpack.c.bf16 %v4977, %v4976
  %v5385 = vpack.c.bf16 %v4979, %v4978
  %v5386 = vpack.c.bf16 %v4981, %v4980
  %v5387 = vpack.c.bf16 %v4983, %v4982
  %v5388 = vpack.c.bf16 %v4985, %v4984
  %v5389 = vpack.c.bf16 %v4987, %v4986
  %v5390 = vpack.c.bf16 %v4989, %v4988
  %v5391 = vpack.c.bf16 %v4991, %v4990
  %v5392 = vpack.c.bf16 %v4993, %v4992
  %v5393 = vpack.c.bf16 %v4995, %v4994
  %v5394 = vpack.c.bf16 %v4997, %v4996
  %v5395 = vpack.c.bf16 %v4999, %v4998
  %v5396 = vpack.c.bf16 %v5001, %v5000
  %v5397 = vpack.c.bf16 %v5003, %v5002
  %v5398 = vpack.c.bf16 %v5005, %v5004
  %v5399 = vpack.c.bf16 %v5007, %v5006
  %v5400 = vpack.c.bf16 %v5009, %v5008
  %v5401 = vpack.c.bf16 %v5011, %v5010
  %v5402 = vpack.c.bf16 %v5013, %v5012
  %v5403 = vpack.c.bf16 %v5015, %v5014
  %v5404 = vpack.c.bf16 %v5017, %v5016
  %v5405 = vpack.c.bf16 %v5019, %v5018
  %v5406 = vpack.c.bf16 %v5021, %v5020
  %v5407 = vpack.c.bf16 %v5023, %v5022
  %v5408 = vpack.c.bf16 %v5025, %v5024
  %v5409 = vpack.c.bf16 %v5027, %v5026
  %v5410 = vpack.c.bf16 %v5029, %v5028
  %v5411 = vpack.c.bf16 %v5031, %v5030
  %v5412 = vpack.c.bf16 %v5033, %v5032
  %v5413 = vpack.c.bf16 %v5035, %v5034
  %v5414 = vpack.c.bf16 %v5037, %v5036
  %v5415 = vpack.c.bf16 %v5039, %v5038
  %v5416 = vpack.c.bf16 %v5041, %v5040
  %v5417 = vpack.c.bf16 %v5043, %v5042
  %v5418 = vpack.c.bf16 %v5045, %v5044
  %v5419 = vpack.c.bf16 %v5047, %v5046
  %v5420 = vpack.c.bf16 %v5049, %v5048
  %v5421 = vpack.c.bf16 %v5051, %v5050
  %v5422 = vpack.c.bf16 %v5053, %v5052
  %v5423 = vpack.c.bf16 %v5055, %v5054
  %v5424 = vpack.c.bf16 %v5057, %v5056
  %v5425 = vpack.c.bf16 %v5059, %v5058
  %v5426 = vpack.c.bf16 %v5061, %v5060
  %v5427 = vpack.c.bf16 %v5063, %v5062
  %v5428 = vpack.c.bf16 %v5065, %v5064
  %v5429 = vpack.c.bf16 %v5067, %v5066
  %v5430 = vpack.c.bf16 %v5069, %v5068
  %v5431 = vpack.c.bf16 %v5071, %v5070
  %v5432 = vpack.c.bf16 %v5073, %v5072
  %v5433 = vpack.c.bf16 %v5075, %v5074
  %v5434 = vpack.c.bf16 %v5077, %v5076
  %v5435 = vpack.c.bf16 %v5079, %v5078
  %v5436 = vpack.c.bf16 %v5081, %v5080
  %v5437 = vpack.c.bf16 %v5083, %v5082
  %v5438 = vpack.c.bf16 %v5085, %v5084
  %v5439 = vpack.c.bf16 %v5087, %v5086
  %v5440 = vpack.c.bf16 %v5089, %v5088
  %v5441 = vpack.c.bf16 %v5091, %v5090
  %v5442 = vpack.c.bf16 %v5093, %v5092
  %v5443 = vpack.c.bf16 %v5095, %v5094
  %v5444 = vpack.c.bf16 %v5097, %v5096
  %v5445 = vpack.c.bf16 %v5099, %v5098
  %v5446 = vpack.c.bf16 %v5101, %v5100
  %v5447 = vpack.c.bf16 %v5103, %v5102
  %v5448 = vpack.c.bf16 %v5105, %v5104
  %v5449 = vpack.c.bf16 %v5107, %v5106
  %v5450 = vpack.c.bf16 %v5109, %v5108
  %v5451 = vpack.c.bf16 %v5111, %v5110
  %v5452 = vpack.c.bf16 %v5113, %v5112
  %v5453 = vpack.c.bf16 %v5115, %v5114
  %v5454 = vpack.c.bf16 %v5117, %v5116
  %v5455 = vpack.c.bf16 %v5119, %v5118
  %v5456 = vpack.c.bf16 %v5121, %v5120
  %v5457 = vpack.c.bf16 %v5123, %v5122
  %v5458 = vpack.c.bf16 %v5125, %v5124
  %v5459 = vpack.c.bf16 %v5127, %v5126
  %v5460 = vpack.c.bf16 %v5129, %v5128
  %v5461 = vpack.c.bf16 %v5131, %v5130
  %v5462 = vpack.c.bf16 %v5133, %v5132
  %v5463 = vpack.c.bf16 %v5135, %v5134
  %v5464 = vpack.c.bf16 %v5137, %v5136
  %v5465 = vpack.c.bf16 %v5139, %v5138
  %v5466 = vpack.c.bf16 %v5141, %v5140
  %v5467 = vpack.c.bf16 %v5143, %v5142
  %v5468 = vpack.c.bf16 %v5145, %v5144
  %v5469 = vpack.c.bf16 %v5147, %v5146
  %v5470 = vpack.c.bf16 %v5149, %v5148
  %v5471 = vpack.c.bf16 %v5151, %v5150
  %v5472 = vpack.c.bf16 %v5153, %v5152
  %v5473 = vpack.c.bf16 %v5155, %v5154
  %v5474 = vpack.c.bf16 %v5157, %v5156
  %v5475 = vpack.c.bf16 %v5159, %v5158
  %v5476 = vpack.c.bf16 %v5161, %v5160
  %v5477 = vpack.c.bf16 %v5163, %v5162
  %v5478 = vpack.c.bf16 %v5165, %v5164
  %v5479 = vpack.c.bf16 %v5167, %v5166
  %v5480 = vpack.c.bf16 %v5169, %v5168
  %v5481 = vpack.c.bf16 %v5171, %v5170
  %v5482 = vpack.c.bf16 %v5173, %v5172
  %v5483 = vpack.c.bf16 %v5175, %v5174
  %v5484 = vpack.c.bf16 %v5177, %v5176
  %v5485 = vpack.c.bf16 %v5179, %v5178
  %v5486 = vpack.c.bf16 %v5181, %v5180
  %v5487 = vpack.c.bf16 %v5183, %v5182
  %v5488 = vpack.c.bf16 %v5185, %v5184
  %v5489 = vpack.c.bf16 %v5187, %v5186
  %v5490 = vpack.c.bf16 %v5189, %v5188
  %v5491 = vpack.c.bf16 %v5191, %v5190
  %v5492 = vpack.c.bf16 %v5193, %v5192
  %v5493 = vpack.c.bf16 %v5195, %v5194
  %v5494 = vpack.c.bf16 %v5197, %v5196
  %v5495 = vpack.c.bf16 %v5199, %v5198
  %v5496 = vpack.c.bf16 %v5201, %v5200
  %v5497 = vpack.c.bf16 %v5203, %v5202
  %v5498 = vpack.c.bf16 %v5205, %v5204
  %v5499 = vpack.c.bf16 %v5207, %v5206
  %v5500 = vpack.c.bf16 %v5209, %v5208
  %v5501 = vpack.c.bf16 %v5211, %v5210
  %v5502 = vpack.c.bf16 %v5213, %v5212
  %v5503 = vpack.c.bf16 %v5215, %v5214
  %v5536 = vunpack.c.l.b16 %v5216
  %v5537 = vunpack.c.h.b16 %v5216
  %v5538 = vunpack.c.l.b16 %v5217
  %v5539 = vunpack.c.h.b16 %v5217
  %v5540 = vunpack.c.l.b16 %v5218
  %v5541 = vunpack.c.h.b16 %v5218
  %v5542 = vunpack.c.l.b16 %v5219
  %v5543 = vunpack.c.h.b16 %v5219
  %v5544 = vunpack.c.l.b16 %v5220
  %v5545 = vunpack.c.h.b16 %v5220
  %v5546 = vunpack.c.l.b16 %v5221
  %v5547 = vunpack.c.h.b16 %v5221
  %v5548 = vunpack.c.l.b16 %v5222
  %v5549 = vunpack.c.h.b16 %v5222
  %v5550 = vunpack.c.l.b16 %v5223
  %v5551 = vunpack.c.h.b16 %v5223
  %v5552 = vunpack.c.l.b16 %v5224
  %v5553 = vunpack.c.h.b16 %v5224
  %v5554 = vunpack.c.l.b16 %v5225
  %v5555 = vunpack.c.h.b16 %v5225
  %v5556 = vunpack.c.l.b16 %v5226
  %v5557 = vunpack.c.h.b16 %v5226
  %v5558 = vunpack.c.l.b16 %v5227
  %v5559 = vunpack.c.h.b16 %v5227
  %v5560 = vunpack.c.l.b16 %v5228
  %v5561 = vunpack.c.h.b16 %v5228
  %v5562 = vunpack.c.l.b16 %v5229
  %v5563 = vunpack.c.h.b16 %v5229
  %v5564 = vunpack.c.l.b16 %v5230
  %v5565 = vunpack.c.h.b16 %v5230
  %v5566 = vunpack.c.l.b16 %v5231
  %v5567 = vunpack.c.h.b16 %v5231
  %v5568 = vunpack.c.l.b16 %v5232
  %v5569 = vunpack.c.h.b16 %v5232
  %v5570 = vunpack.c.l.b16 %v5233
  %v5571 = vunpack.c.h.b16 %v5233
  %v5572 = vunpack.c.l.b16 %v5234
  %v5573 = vunpack.c.h.b16 %v5234
  %v5574 = vunpack.c.l.b16 %v5235
  %v5575 = vunpack.c.h.b16 %v5235
  %v5576 = vunpack.c.l.b16 %v5236
  %v5577 = vunpack.c.h.b16 %v5236
  %v5578 = vunpack.c.l.b16 %v5237
  %v5579 = vunpack.c.h.b16 %v5237
  %v5580 = vunpack.c.l.b16 %v5238
  %v5581 = vunpack.c.h.b16 %v5238
  %v5582 = vunpack.c.l.b16 %v5239
  %v5583 = vunpack.c.h.b16 %v5239
  %v5584 = vunpack.c.l.b16 %v5240
  %v5585 = vunpack.c.h.b16 %v5240
  %v5586 = vunpack.c.l.b16 %v5241
  %v5587 = vunpack.c.h.b16 %v5241
  %v5588 = vunpack.c.l.b16 %v5242
  %v5589 = vunpack.c.h.b16 %v5242
  %v5590 = vunpack.c.l.b16 %v5243
  %v5591 = vunpack.c.h.b16 %v5243
  %v5592 = vunpack.c.l.b16 %v5244
  %v5593 = vunpack.c.h.b16 %v5244
  %v5594 = vunpack.c.l.b16 %v5245
  %v5595 = vunpack.c.h.b16 %v5245
  %v5596 = vunpack.c.l.b16 %v5246
  %v5597 = vunpack.c.h.b16 %v5246
  %v5598 = vunpack.c.l.b16 %v5247
  %v5599 = vunpack.c.h.b16 %v5247
  %v5600 = vpack.c.b16 %v5568, %v5536
  %v5601 = vpack.c.b16 %v5569, %v5537
  %v5602 = vpack.c.b16 %v5570, %v5538
  %v5603 = vpack.c.b16 %v5571, %v5539
  %v5604 = vpack.c.b16 %v5572, %v5540
  %v5605 = vpack.c.b16 %v5573, %v5541
  %v5606 = vpack.c.b16 %v5574, %v5542
  %v5607 = vpack.c.b16 %v5575, %v5543
  %v5608 = vpack.c.b16 %v5576, %v5544
  %v5609 = vpack.c.b16 %v5577, %v5545
  %v5610 = vpack.c.b16 %v5578, %v5546
  %v5611 = vpack.c.b16 %v5579, %v5547
  %v5612 = vpack.c.b16 %v5580, %v5548
  %v5613 = vpack.c.b16 %v5581, %v5549
  %v5614 = vpack.c.b16 %v5582, %v5550
  %v5615 = vpack.c.b16 %v5583, %v5551
  %v5616 = vpack.c.b16 %v5584, %v5552
  %v5617 = vpack.c.b16 %v5585, %v5553
  %v5618 = vpack.c.b16 %v5586, %v5554
  %v5619 = vpack.c.b16 %v5587, %v5555
  %v5620 = vpack.c.b16 %v5588, %v5556
  %v5621 = vpack.c.b16 %v5589, %v5557
  %v5622 = vpack.c.b16 %v5590, %v5558
  %v5623 = vpack.c.b16 %v5591, %v5559
  %v5624 = vpack.c.b16 %v5592, %v5560
  %v5625 = vpack.c.b16 %v5593, %v5561
  %v5626 = vpack.c.b16 %v5594, %v5562
  %v5627 = vpack.c.b16 %v5595, %v5563
  %v5628 = vpack.c.b16 %v5596, %v5564
  %v5629 = vpack.c.b16 %v5597, %v5565
  %v5630 = vpack.c.b16 %v5598, %v5566
  %v5631 = vpack.c.b16 %v5599, %v5567
  %5664 = vmatprep.subr.bf16.mxu0 0
  %5665 = vmatpush1.bf16.msra.mxu0 %v5248
  %5666 = vmatprep.subr.bf16.mxu0 0
  %5667 = vmatpush1.bf16.msra.mxu0 %v5249
  %5668 = vmatprep.subr.bf16.mxu0 0
  %5669 = vmatpush1.bf16.msra.mxu0 %v5250
  %5670 = vmatprep.subr.bf16.mxu0 0
  %5671 = vmatpush1.bf16.msra.mxu0 %v5251
  %5672 = vmatprep.subr.bf16.mxu0 0
  %5673 = vmatpush1.bf16.msra.mxu0 %v5252
  %5674 = vmatprep.subr.bf16.mxu0 0
  %5675 = vmatpush1.bf16.msra.mxu0 %v5253
  %5676 = vmatprep.subr.bf16.mxu0 0
  %5677 = vmatpush1.bf16.msra.mxu0 %v5254
  %5678 = vmatprep.subr.bf16.mxu0 0
  %5679 = vmatpush1.bf16.msra.mxu0 %v5255
  %5680 = vmatprep.subr.bf16.mxu0 0
  %5681 = vmatpush1.bf16.msra.mxu0 %v5256
  %5682 = vmatprep.subr.bf16.mxu0 0
  %5683 = vmatpush1.bf16.msra.mxu0 %v5257
  %5684 = vmatprep.subr.bf16.mxu0 0
  %5685 = vmatpush1.bf16.msra.mxu0 %v5258
  %5686 = vmatprep.subr.bf16.mxu0 0
  %5687 = vmatpush1.bf16.msra.mxu0 %v5259
  %5688 = vmatprep.subr.bf16.mxu0 0
  %5689 = vmatpush1.bf16.msra.mxu0 %v5260
  %5690 = vmatprep.subr.bf16.mxu0 0
  %5691 = vmatpush1.bf16.msra.mxu0 %v5261
  %5692 = vmatprep.subr.bf16.mxu0 0
  %5693 = vmatpush1.bf16.msra.mxu0 %v5262
  %5694 = vmatprep.subr.bf16.mxu0 0
  %5695 = vmatpush1.bf16.msra.mxu0 %v5263
  %5696 = vmatprep.mubr.bf16.mxu0 %v5601
  %5697 = vmatmul.mubr.bf16.gmra.mrb[0].mxu0 %v5600
  %v5698 = vpop.f32.mrb[0].mxu0
  %v5699 = vadd.f32 0.0, %v5698
  %v5700 = vpop.f32.mrb[0].mxu0
  %v5701 = vpop.f32.mrb[0].mxu0
  %v5702 = vadd.f32 0.0, %v5701
  %v5703 = vpop.f32.mrb[0].mxu0
  %5704 = vdwg.mxu0
  %5705 = vmatprep.subr.bf16.mxu0 0
  %5706 = vmatpush1.bf16.msra.mxu0 %v5264
  %5707 = vmatprep.subr.bf16.mxu0 0
  %5708 = vmatpush1.bf16.msra.mxu0 %v5265
  %5709 = vmatprep.subr.bf16.mxu0 0
  %5710 = vmatpush1.bf16.msra.mxu0 %v5266
  %5711 = vmatprep.subr.bf16.mxu0 0
  %5712 = vmatpush1.bf16.msra.mxu0 %v5267
  %5713 = vmatprep.subr.bf16.mxu0 0
  %5714 = vmatpush1.bf16.msra.mxu0 %v5268
  %5715 = vmatprep.subr.bf16.mxu0 0
  %5716 = vmatpush1.bf16.msra.mxu0 %v5269
  %5717 = vmatprep.subr.bf16.mxu0 0
  %5718 = vmatpush1.bf16.msra.mxu0 %v5270
  %5719 = vmatprep.subr.bf16.mxu0 0
  %5720 = vmatpush1.bf16.msra.mxu0 %v5271
  %5721 = vmatprep.subr.bf16.mxu0 0
  %5722 = vmatpush1.bf16.msra.mxu0 %v5272
  %5723 = vmatprep.subr.bf16.mxu0 0
  %5724 = vmatpush1.bf16.msra.mxu0 %v5273
  %5725 = vmatprep.subr.bf16.mxu0 0
  %5726 = vmatpush1.bf16.msra.mxu0 %v5274
  %5727 = vmatprep.subr.bf16.mxu0 0
  %5728 = vmatpush1.bf16.msra.mxu0 %v5275
  %5729 = vmatprep.subr.bf16.mxu0 0
  %5730 = vmatpush1.bf16.msra.mxu0 %v5276
  %5731 = vmatprep.subr.bf16.mxu0 0
  %5732 = vmatpush1.bf16.msra.mxu0 %v5277
  %5733 = vmatprep.subr.bf16.mxu0 0
  %5734 = vmatpush1.bf16.msra.mxu0 %v5278
  %5735 = vmatprep.subr.bf16.mxu0 0
  %5736 = vmatpush1.bf16.msra.mxu0 %v5279
  %5737 = vmatprep.mubr.bf16.mxu0 %v5603
  %5738 = vmatmul.mubr.bf16.gmra.mrb[0].mxu0 %v5602
  %v5739 = vpop.f32.mrb[0].mxu0
  %v5740 = vadd.f32 %v5699, %v5739
  %v5741 = vpop.f32.mrb[0].mxu0
  %v5742 = vpop.f32.mrb[0].mxu0
  %v5743 = vadd.f32 %v5702, %v5742
  %v5744 = vpop.f32.mrb[0].mxu0
  %5745 = vdwg.mxu0
  %5746 = vmatprep.subr.bf16.mxu0 0
  %5747 = vmatpush1.bf16.msra.mxu0 %v5280
  %5748 = vmatprep.subr.bf16.mxu0 0
  %5749 = vmatpush1.bf16.msra.mxu0 %v5281
  %5750 = vmatprep.subr.bf16.mxu0 0
  %5751 = vmatpush1.bf16.msra.mxu0 %v5282
  %5752 = vmatprep.subr.bf16.mxu0 0
  %5753 = vmatpush1.bf16.msra.mxu0 %v5283
  %5754 = vmatprep.subr.bf16.mxu0 0
  %5755 = vmatpush1.bf16.msra.mxu0 %v5284
  %5756 = vmatprep.subr.bf16.mxu0 0
  %5757 = vmatpush1.bf16.msra.mxu0 %v5285
  %5758 = vmatprep.subr.bf16.mxu0 0
  %5759 = vmatpush1.bf16.msra.mxu0 %v5286
  %5760 = vmatprep.subr.bf16.mxu0 0
  %5761 = vmatpush1.bf16.msra.mxu0 %v5287
  %5762 = vmatprep.subr.bf16.mxu0 0
  %5763 = vmatpush1.bf16.msra.mxu0 %v5288
  %5764 = vmatprep.subr.bf16.mxu0 0
  %5765 = vmatpush1.bf16.msra.mxu0 %v5289
  %5766 = vmatprep.subr.bf16.mxu0 0
  %5767 = vmatpush1.bf16.msra.mxu0 %v5290
  %5768 = vmatprep.subr.bf16.mxu0 0
  %5769 = vmatpush1.bf16.msra.mxu0 %v5291
  %5770 = vmatprep.subr.bf16.mxu0 0
  %5771 = vmatpush1.bf16.msra.mxu0 %v5292
  %5772 = vmatprep.subr.bf16.mxu0 0
  %5773 = vmatpush1.bf16.msra.mxu0 %v5293
  %5774 = vmatprep.subr.bf16.mxu0 0
  %5775 = vmatpush1.bf16.msra.mxu0 %v5294
  %5776 = vmatprep.subr.bf16.mxu0 0
  %5777 = vmatpush1.bf16.msra.mxu0 %v5295
  %5778 = vmatprep.mubr.bf16.mxu0 %v5605
  %5779 = vmatmul.mubr.bf16.gmra.mrb[0].mxu0 %v5604
  %v5780 = vpop.f32.mrb[0].mxu0
  %v5781 = vadd.f32 %v5740, %v5780
  %v5782 = vpop.f32.mrb[0].mxu0
  %v5783 = vpop.f32.mrb[0].mxu0
  %v5784 = vadd.f32 %v5743, %v5783
  %v5785 = vpop.f32.mrb[0].mxu0
  %5786 = vdwg.mxu0
  %5787 = vmatprep.subr.bf16.mxu0 0
  %5788 = vmatpush1.bf16.msra.mxu0 %v5296
  %5789 = vmatprep.subr.bf16.mxu0 0
  %5790 = vmatpush1.bf16.msra.mxu0 %v5297
  %5791 = vmatprep.subr.bf16.mxu0 0
  %5792 = vmatpush1.bf16.msra.mxu0 %v5298
  %5793 = vmatprep.subr.bf16.mxu0 0
  %5794 = vmatpush1.bf16.msra.mxu0 %v5299
  %5795 = vmatprep.subr.bf16.mxu0 0
  %5796 = vmatpush1.bf16.msra.mxu0 %v5300
  %5797 = vmatprep.subr.bf16.mxu0 0
  %5798 = vmatpush1.bf16.msra.mxu0 %v5301
  %5799 = vmatprep.subr.bf16.mxu0 0
  %5800 = vmatpush1.bf16.msra.mxu0 %v5302
  %5801 = vmatprep.subr.bf16.mxu0 0
  %5802 = vmatpush1.bf16.msra.mxu0 %v5303
  %5803 = vmatprep.subr.bf16.mxu0 0
  %5804 = vmatpush1.bf16.msra.mxu0 %v5304
  %5805 = vmatprep.subr.bf16.mxu0 0
  %5806 = vmatpush1.bf16.msra.mxu0 %v5305
  %5807 = vmatprep.subr.bf16.mxu0 0
  %5808 = vmatpush1.bf16.msra.mxu0 %v5306
  %5809 = vmatprep.subr.bf16.mxu0 0
  %5810 = vmatpush1.bf16.msra.mxu0 %v5307
  %5811 = vmatprep.subr.bf16.mxu0 0
  %5812 = vmatpush1.bf16.msra.mxu0 %v5308
  %5813 = vmatprep.subr.bf16.mxu0 0
  %5814 = vmatpush1.bf16.msra.mxu0 %v5309
  %5815 = vmatprep.subr.bf16.mxu0 0
  %5816 = vmatpush1.bf16.msra.mxu0 %v5310
  %5817 = vmatprep.subr.bf16.mxu0 0
  %5818 = vmatpush1.bf16.msra.mxu0 %v5311
  %5819 = vmatprep.mubr.bf16.mxu0 %v5607
  %5820 = vmatmul.mubr.bf16.gmra.mrb[0].mxu0 %v5606
  %v5821 = vpop.f32.mrb[0].mxu0
  %v5822 = vadd.f32 %v5781, %v5821
  %v5823 = vpop.f32.mrb[0].mxu0
  %v5824 = vpop.f32.mrb[0].mxu0
  %v5825 = vadd.f32 %v5784, %v5824
  %v5826 = vpop.f32.mrb[0].mxu0
  %5827 = vdwg.mxu0
  %5828 = vmatprep.subr.bf16.mxu0 0
  %5829 = vmatpush1.bf16.msra.mxu0 %v5312
  %5830 = vmatprep.subr.bf16.mxu0 0
  %5831 = vmatpush1.bf16.msra.mxu0 %v5313
  %5832 = vmatprep.subr.bf16.mxu0 0
  %5833 = vmatpush1.bf16.msra.mxu0 %v5314
  %5834 = vmatprep.subr.bf16.mxu0 0
  %5835 = vmatpush1.bf16.msra.mxu0 %v5315
  %5836 = vmatprep.subr.bf16.mxu0 0
  %5837 = vmatpush1.bf16.msra.mxu0 %v5316
  %5838 = vmatprep.subr.bf16.mxu0 0
  %5839 = vmatpush1.bf16.msra.mxu0 %v5317
  %5840 = vmatprep.subr.bf16.mxu0 0
  %5841 = vmatpush1.bf16.msra.mxu0 %v5318
  %5842 = vmatprep.subr.bf16.mxu0 0
  %5843 = vmatpush1.bf16.msra.mxu0 %v5319
  %5844 = vmatprep.subr.bf16.mxu0 0
  %5845 = vmatpush1.bf16.msra.mxu0 %v5320
  %5846 = vmatprep.subr.bf16.mxu0 0
  %5847 = vmatpush1.bf16.msra.mxu0 %v5321
  %5848 = vmatprep.subr.bf16.mxu0 0
  %5849 = vmatpush1.bf16.msra.mxu0 %v5322
  %5850 = vmatprep.subr.bf16.mxu0 0
  %5851 = vmatpush1.bf16.msra.mxu0 %v5323
  %5852 = vmatprep.subr.bf16.mxu0 0
  %5853 = vmatpush1.bf16.msra.mxu0 %v5324
  %5854 = vmatprep.subr.bf16.mxu0 0
  %5855 = vmatpush1.bf16.msra.mxu0 %v5325
  %5856 = vmatprep.subr.bf16.mxu0 0
  %5857 = vmatpush1.bf16.msra.mxu0 %v5326
  %5858 = vmatprep.subr.bf16.mxu0 0
  %5859 = vmatpush1.bf16.msra.mxu0 %v5327
  %5860 = vmatprep.mubr.bf16.mxu0 %v5609
  %5861 = vmatmul.mubr.bf16.gmra.mrb[0].mxu0 %v5608
  %v5862 = vpop.f32.mrb[0].mxu0
  %v5863 = vadd.f32 %v5822, %v5862
  %v5864 = vpop.f32.mrb[0].mxu0
  %v5865 = vpop.f32.mrb[0].mxu0
  %v5866 = vadd.f32 %v5825, %v5865
  %v5867 = vpop.f32.mrb[0].mxu0
  %5868 = vdwg.mxu0
  %5869 = vmatprep.subr.bf16.mxu0 0
  %5870 = vmatpush1.bf16.msra.mxu0 %v5328
  %5871 = vmatprep.subr.bf16.mxu0 0
  %5872 = vmatpush1.bf16.msra.mxu0 %v5329
  %5873 = vmatprep.subr.bf16.mxu0 0
  %5874 = vmatpush1.bf16.msra.mxu0 %v5330
  %5875 = vmatprep.subr.bf16.mxu0 0
  %5876 = vmatpush1.bf16.msra.mxu0 %v5331
  %5877 = vmatprep.subr.bf16.mxu0 0
  %5878 = vmatpush1.bf16.msra.mxu0 %v5332
  %5879 = vmatprep.subr.bf16.mxu0 0
  %5880 = vmatpush1.bf16.msra.mxu0 %v5333
  %5881 = vmatprep.subr.bf16.mxu0 0
  %5882 = vmatpush1.bf16.msra.mxu0 %v5334
  %5883 = vmatprep.subr.bf16.mxu0 0
  %5884 = vmatpush1.bf16.msra.mxu0 %v5335
  %5885 = vmatprep.subr.bf16.mxu0 0
  %5886 = vmatpush1.bf16.msra.mxu0 %v5336
  %5887 = vmatprep.subr.bf16.mxu0 0
  %5888 = vmatpush1.bf16.msra.mxu0 %v5337
  %5889 = vmatprep.subr.bf16.mxu0 0
  %5890 = vmatpush1.bf16.msra.mxu0 %v5338
  %5891 = vmatprep.subr.bf16.mxu0 0
  %5892 = vmatpush1.bf16.msra.mxu0 %v5339
  %5893 = vmatprep.subr.bf16.mxu0 0
  %5894 = vmatpush1.bf16.msra.mxu0 %v5340
  %5895 = vmatprep.subr.bf16.mxu0 0
  %5896 = vmatpush1.bf16.msra.mxu0 %v5341
  %5897 = vmatprep.subr.bf16.mxu0 0
  %5898 = vmatpush1.bf16.msra.mxu0 %v5342
  %5899 = vmatprep.subr.bf16.mxu0 0
  %5900 = vmatpush1.bf16.msra.mxu0 %v5343
  %5901 = vmatprep.mubr.bf16.mxu0 %v5611
  %5902 = vmatmul.mubr.bf16.gmra.mrb[0].mxu0 %v5610
  %v5903 = vpop.f32.mrb[0].mxu0
  %v5904 = vadd.f32 %v5863, %v5903
  %v5905 = vpop.f32.mrb[0].mxu0
  %v5906 = vpop.f32.mrb[0].mxu0
  %v5907 = vadd.f32 %v5866, %v5906
  %v5908 = vpop.f32.mrb[0].mxu0
  %5909 = vdwg.mxu0
  %5910 = vmatprep.subr.bf16.mxu0 0
  %5911 = vmatpush1.bf16.msra.mxu0 %v5344
  %5912 = vmatprep.subr.bf16.mxu0 0
  %5913 = vmatpush1.bf16.msra.mxu0 %v5345
  %5914 = vmatprep.subr.bf16.mxu0 0
  %5915 = vmatpush1.bf16.msra.mxu0 %v5346
  %5916 = vmatprep.subr.bf16.mxu0 0
  %5917 = vmatpush1.bf16.msra.mxu0 %v5347
  %5918 = vmatprep.subr.bf16.mxu0 0
  %5919 = vmatpush1.bf16.msra.mxu0 %v5348
  %5920 = vmatprep.subr.bf16.mxu0 0
  %5921 = vmatpush1.bf16.msra.mxu0 %v5349
  %5922 = vmatprep.subr.bf16.mxu0 0
  %5923 = vmatpush1.bf16.msra.mxu0 %v5350
  %5924 = vmatprep.subr.bf16.mxu0 0
  %5925 = vmatpush1.bf16.msra.mxu0 %v5351
  %5926 = vmatprep.subr.bf16.mxu0 0
  %5927 = vmatpush1.bf16.msra.mxu0 %v5352
  %5928 = vmatprep.subr.bf16.mxu0 0
  %5929 = vmatpush1.bf16.msra.mxu0 %v5353
  %5930 = vmatprep.subr.bf16.mxu0 0
  %5931 = vmatpush1.bf16.msra.mxu0 %v5354
  %5932 = vmatprep.subr.bf16.mxu0 0
  %5933 = vmatpush1.bf16.msra.mxu0 %v5355
  %5934 = vmatprep.subr.bf16.mxu0 0
  %5935 = vmatpush1.bf16.msra.mxu0 %v5356
  %5936 = vmatprep.subr.bf16.mxu0 0
  %5937 = vmatpush1.bf16.msra.mxu0 %v5357
  %5938 = vmatprep.subr.bf16.mxu0 0
  %5939 = vmatpush1.bf16.msra.mxu0 %v5358
  %5940 = vmatprep.subr.bf16.mxu0 0
  %5941 = vmatpush1.bf16.msra.mxu0 %v5359
  %5942 = vmatprep.mubr.bf16.mxu0 %v5613
  %5943 = vmatmul.mubr.bf16.gmra.mrb[0].mxu0 %v5612
  %v5944 = vpop.f32.mrb[0].mxu0
  %v5945 = vadd.f32 %v5904, %v5944
  %v5946 = vpop.f32.mrb[0].mxu0
  %v5947 = vpop.f32.mrb[0].mxu0
  %v5948 = vadd.f32 %v5907, %v5947
  %v5949 = vpop.f32.mrb[0].mxu0
  %5950 = vdwg.mxu0
  %5951 = vmatprep.subr.bf16.mxu0 0
  %5952 = vmatpush1.bf16.msra.mxu0 %v5360
  %5953 = vmatprep.subr.bf16.mxu0 0
  %5954 = vmatpush1.bf16.msra.mxu0 %v5361
  %5955 = vmatprep.subr.bf16.mxu0 0
  %5956 = vmatpush1.bf16.msra.mxu0 %v5362
  %5957 = vmatprep.subr.bf16.mxu0 0
  %5958 = vmatpush1.bf16.msra.mxu0 %v5363
  %5959 = vmatprep.subr.bf16.mxu0 0
  %5960 = vmatpush1.bf16.msra.mxu0 %v5364
  %5961 = vmatprep.subr.bf16.mxu0 0
  %5962 = vmatpush1.bf16.msra.mxu0 %v5365
  %5963 = vmatprep.subr.bf16.mxu0 0
  %5964 = vmatpush1.bf16.msra.mxu0 %v5366
  %5965 = vmatprep.subr.bf16.mxu0 0
  %5966 = vmatpush1.bf16.msra.mxu0 %v5367
  %5967 = vmatprep.subr.bf16.mxu0 0
  %5968 = vmatpush1.bf16.msra.mxu0 %v5368
  %5969 = vmatprep.subr.bf16.mxu0 0
  %5970 = vmatpush1.bf16.msra.mxu0 %v5369
  %5971 = vmatprep.subr.bf16.mxu0 0
  %5972 = vmatpush1.bf16.msra.mxu0 %v5370
  %5973 = vmatprep.subr.bf16.mxu0 0
  %5974 = vmatpush1.bf16.msra.mxu0 %v5371
  %5975 = vmatprep.subr.bf16.mxu0 0
  %5976 = vmatpush1.bf16.msra.mxu0 %v5372
  %5977 = vmatprep.subr.bf16.mxu0 0
  %5978 = vmatpush1.bf16.msra.mxu0 %v5373
  %5979 = vmatprep.subr.bf16.mxu0 0
  %5980 = vmatpush1.bf16.msra.mxu0 %v5374
  %5981 = vmatprep.subr.bf16.mxu0 0
  %5982 = vmatpush1.bf16.msra.mxu0 %v5375
  %5983 = vmatprep.mubr.bf16.mxu0 %v5615
  %5984 = vmatmul.mubr.bf16.gmra.mrb[0].mxu0 %v5614
  %v5985 = vpop.f32.mrb[0].mxu0
  %v5986 = vadd.f32 %v5945, %v5985
  %v5987 = vpop.f32.mrb[0].mxu0
  %v5988 = vpop.f32.mrb[0].mxu0
  %v5989 = vadd.f32 %v5948, %v5988
  %v5990 = vpop.f32.mrb[0].mxu0
  %5991 = vdwg.mxu0
  %5992 = vmatprep.subr.bf16.mxu0 0
  %5993 = vmatpush1.bf16.msra.mxu0 %v5376
  %5994 = vmatprep.subr.bf16.mxu0 0
  %5995 = vmatpush1.bf16.msra.mxu0 %v5377
  %5996 = vmatprep.subr.bf16.mxu0 0
  %5997 = vmatpush1.bf16.msra.mxu0 %v5378
  %5998 = vmatprep.subr.bf16.mxu0 0
  %5999 = vmatpush1.bf16.msra.mxu0 %v5379
  %6000 = vmatprep.subr.bf16.mxu0 0
  %6001 = vmatpush1.bf16.msra.mxu0 %v5380
  %6002 = vmatprep.subr.bf16.mxu0 0
  %6003 = vmatpush1.bf16.msra.mxu0 %v5381
  %6004 = vmatprep.subr.bf16.mxu0 0
  %6005 = vmatpush1.bf16.msra.mxu0 %v5382
  %6006 = vmatprep.subr.bf16.mxu0 0
  %6007 = vmatpush1.bf16.msra.mxu0 %v5383
  %6008 = vmatprep.subr.bf16.mxu0 0
  %6009 = vmatpush1.bf16.msra.mxu0 %v5384
  %6010 = vmatprep.subr.bf16.mxu0 0
  %6011 = vmatpush1.bf16.msra.mxu0 %v5385
  %6012 = vmatprep.subr.bf16.mxu0 0
  %6013 = vmatpush1.bf16.msra.mxu0 %v5386
  %6014 = vmatprep.subr.bf16.mxu0 0
  %6015 = vmatpush1.bf16.msra.mxu0 %v5387
  %6016 = vmatprep.subr.bf16.mxu0 0
  %6017 = vmatpush1.bf16.msra.mxu0 %v5388
  %6018 = vmatprep.subr.bf16.mxu0 0
  %6019 = vmatpush1.bf16.msra.mxu0 %v5389
  %6020 = vmatprep.subr.bf16.mxu0 0
  %6021 = vmatpush1.bf16.msra.mxu0 %v5390
  %6022 = vmatprep.subr.bf16.mxu0 0
  %6023 = vmatpush1.bf16.msra.mxu0 %v5391
  %6024 = vmatprep.mubr.bf16.mxu0 %v5617
  %6025 = vmatmul.mubr.bf16.gmra.mrb[0].mxu0 %v5616
  %v6026 = vpop.f32.mrb[0].mxu0
  %v6027 = vadd.f32 %v5986, %v6026
  %v6028 = vpop.f32.mrb[0].mxu0
  %v6029 = vpop.f32.mrb[0].mxu0
  %v6030 = vadd.f32 %v5989, %v6029
  %v6031 = vpop.f32.mrb[0].mxu0
  %6032 = vdwg.mxu0
  %6033 = vmatprep.subr.bf16.mxu0 0
  %6034 = vmatpush1.bf16.msra.mxu0 %v5392
  %6035 = vmatprep.subr.bf16.mxu0 0
  %6036 = vmatpush1.bf16.msra.mxu0 %v5393
  %6037 = vmatprep.subr.bf16.mxu0 0
  %6038 = vmatpush1.bf16.msra.mxu0 %v5394
  %6039 = vmatprep.subr.bf16.mxu0 0
  %6040 = vmatpush1.bf16.msra.mxu0 %v5395
  %6041 = vmatprep.subr.bf16.mxu0 0
  %6042 = vmatpush1.bf16.msra.mxu0 %v5396
  %6043 = vmatprep.subr.bf16.mxu0 0
  %6044 = vmatpush1.bf16.msra.mxu0 %v5397
  %6045 = vmatprep.subr.bf16.mxu0 0
  %6046 = vmatpush1.bf16.msra.mxu0 %v5398
  %6047 = vmatprep.subr.bf16.mxu0 0
  %6048 = vmatpush1.bf16.msra.mxu0 %v5399
  %6049 = vmatprep.subr.bf16.mxu0 0
  %6050 = vmatpush1.bf16.msra.mxu0 %v5400
  %6051 = vmatprep.subr.bf16.mxu0 0
  %6052 = vmatpush1.bf16.msra.mxu0 %v5401
  %6053 = vmatprep.subr.bf16.mxu0 0
  %6054 = vmatpush1.bf16.msra.mxu0 %v5402
  %6055 = vmatprep.subr.bf16.mxu0 0
  %6056 = vmatpush1.bf16.msra.mxu0 %v5403
  %6057 = vmatprep.subr.bf16.mxu0 0
  %6058 = vmatpush1.bf16.msra.mxu0 %v5404
  %6059 = vmatprep.subr.bf16.mxu0 0
  %6060 = vmatpush1.bf16.msra.mxu0 %v5405
  %6061 = vmatprep.subr.bf16.mxu0 0
  %6062 = vmatpush1.bf16.msra.mxu0 %v5406
  %6063 = vmatprep.subr.bf16.mxu0 0
  %6064 = vmatpush1.bf16.msra.mxu0 %v5407
  %6065 = vmatprep.mubr.bf16.mxu0 %v5619
  %6066 = vmatmul.mubr.bf16.gmra.mrb[0].mxu0 %v5618
  %v6067 = vpop.f32.mrb[0].mxu0
  %v6068 = vadd.f32 %v6027, %v6067
  %v6069 = vpop.f32.mrb[0].mxu0
  %v6070 = vpop.f32.mrb[0].mxu0
  %v6071 = vadd.f32 %v6030, %v6070
  %v6072 = vpop.f32.mrb[0].mxu0
  %6073 = vdwg.mxu0
  %6074 = vmatprep.subr.bf16.mxu0 0
  %6075 = vmatpush1.bf16.msra.mxu0 %v5408
  %6076 = vmatprep.subr.bf16.mxu0 0
  %6077 = vmatpush1.bf16.msra.mxu0 %v5409
  %6078 = vmatprep.subr.bf16.mxu0 0
  %6079 = vmatpush1.bf16.msra.mxu0 %v5410
  %6080 = vmatprep.subr.bf16.mxu0 0
  %6081 = vmatpush1.bf16.msra.mxu0 %v5411
  %6082 = vmatprep.subr.bf16.mxu0 0
  %6083 = vmatpush1.bf16.msra.mxu0 %v5412
  %6084 = vmatprep.subr.bf16.mxu0 0
  %6085 = vmatpush1.bf16.msra.mxu0 %v5413
  %6086 = vmatprep.subr.bf16.mxu0 0
  %6087 = vmatpush1.bf16.msra.mxu0 %v5414
  %6088 = vmatprep.subr.bf16.mxu0 0
  %6089 = vmatpush1.bf16.msra.mxu0 %v5415
  %6090 = vmatprep.subr.bf16.mxu0 0
  %6091 = vmatpush1.bf16.msra.mxu0 %v5416
  %6092 = vmatprep.subr.bf16.mxu0 0
  %6093 = vmatpush1.bf16.msra.mxu0 %v5417
  %6094 = vmatprep.subr.bf16.mxu0 0
  %6095 = vmatpush1.bf16.msra.mxu0 %v5418
  %6096 = vmatprep.subr.bf16.mxu0 0
  %6097 = vmatpush1.bf16.msra.mxu0 %v5419
  %6098 = vmatprep.subr.bf16.mxu0 0
  %6099 = vmatpush1.bf16.msra.mxu0 %v5420
  %6100 = vmatprep.subr.bf16.mxu0 0
  %6101 = vmatpush1.bf16.msra.mxu0 %v5421
  %6102 = vmatprep.subr.bf16.mxu0 0
  %6103 = vmatpush1.bf16.msra.mxu0 %v5422
  %6104 = vmatprep.subr.bf16.mxu0 0
  %6105 = vmatpush1.bf16.msra.mxu0 %v5423
  %6106 = vmatprep.mubr.bf16.mxu0 %v5621
  %6107 = vmatmul.mubr.bf16.gmra.mrb[0].mxu0 %v5620
  %v6108 = vpop.f32.mrb[0].mxu0
  %v6109 = vadd.f32 %v6068, %v6108
  %v6110 = vpop.f32.mrb[0].mxu0
  %v6111 = vpop.f32.mrb[0].mxu0
  %v6112 = vadd.f32 %v6071, %v6111
  %v6113 = vpop.f32.mrb[0].mxu0
  %6114 = vdwg.mxu0
  %6115 = vmatprep.subr.bf16.mxu0 0
  %6116 = vmatpush1.bf16.msra.mxu0 %v5424
  %6117 = vmatprep.subr.bf16.mxu0 0
  %6118 = vmatpush1.bf16.msra.mxu0 %v5425
  %6119 = vmatprep.subr.bf16.mxu0 0
  %6120 = vmatpush1.bf16.msra.mxu0 %v5426
  %6121 = vmatprep.subr.bf16.mxu0 0
  %6122 = vmatpush1.bf16.msra.mxu0 %v5427
  %6123 = vmatprep.subr.bf16.mxu0 0
  %6124 = vmatpush1.bf16.msra.mxu0 %v5428
  %6125 = vmatprep.subr.bf16.mxu0 0
  %6126 = vmatpush1.bf16.msra.mxu0 %v5429
  %6127 = vmatprep.subr.bf16.mxu0 0
  %6128 = vmatpush1.bf16.msra.mxu0 %v5430
  %6129 = vmatprep.subr.bf16.mxu0 0
  %6130 = vmatpush1.bf16.msra.mxu0 %v5431
  %6131 = vmatprep.subr.bf16.mxu0 0
  %6132 = vmatpush1.bf16.msra.mxu0 %v5432
  %6133 = vmatprep.subr.bf16.mxu0 0
  %6134 = vmatpush1.bf16.msra.mxu0 %v5433
  %6135 = vmatprep.subr.bf16.mxu0 0
  %6136 = vmatpush1.bf16.msra.mxu0 %v5434
  %6137 = vmatprep.subr.bf16.mxu0 0
  %6138 = vmatpush1.bf16.msra.mxu0 %v5435
  %6139 = vmatprep.subr.bf16.mxu0 0
  %6140 = vmatpush1.bf16.msra.mxu0 %v5436
  %6141 = vmatprep.subr.bf16.mxu0 0
  %6142 = vmatpush1.bf16.msra.mxu0 %v5437
  %6143 = vmatprep.subr.bf16.mxu0 0
  %6144 = vmatpush1.bf16.msra.mxu0 %v5438
  %6145 = vmatprep.subr.bf16.mxu0 0
  %6146 = vmatpush1.bf16.msra.mxu0 %v5439
  %6147 = vmatprep.mubr.bf16.mxu0 %v5623
  %6148 = vmatmul.mubr.bf16.gmra.mrb[0].mxu0 %v5622
  %v6149 = vpop.f32.mrb[0].mxu0
  %v6150 = vadd.f32 %v6109, %v6149
  %v6151 = vpop.f32.mrb[0].mxu0
  %v6152 = vpop.f32.mrb[0].mxu0
  %v6153 = vadd.f32 %v6112, %v6152
  %v6154 = vpop.f32.mrb[0].mxu0
  %6155 = vdwg.mxu0
  %6156 = vmatprep.subr.bf16.mxu0 0
  %6157 = vmatpush1.bf16.msra.mxu0 %v5440
  %6158 = vmatprep.subr.bf16.mxu0 0
  %6159 = vmatpush1.bf16.msra.mxu0 %v5441
  %6160 = vmatprep.subr.bf16.mxu0 0
  %6161 = vmatpush1.bf16.msra.mxu0 %v5442
  %6162 = vmatprep.subr.bf16.mxu0 0
  %6163 = vmatpush1.bf16.msra.mxu0 %v5443
  %6164 = vmatprep.subr.bf16.mxu0 0
  %6165 = vmatpush1.bf16.msra.mxu0 %v5444
  %6166 = vmatprep.subr.bf16.mxu0 0
  %6167 = vmatpush1.bf16.msra.mxu0 %v5445
  %6168 = vmatprep.subr.bf16.mxu0 0
  %6169 = vmatpush1.bf16.msra.mxu0 %v5446
  %6170 = vmatprep.subr.bf16.mxu0 0
  %6171 = vmatpush1.bf16.msra.mxu0 %v5447
  %6172 = vmatprep.subr.bf16.mxu0 0
  %6173 = vmatpush1.bf16.msra.mxu0 %v5448
  %6174 = vmatprep.subr.bf16.mxu0 0
  %6175 = vmatpush1.bf16.msra.mxu0 %v5449
  %6176 = vmatprep.subr.bf16.mxu0 0
  %6177 = vmatpush1.bf16.msra.mxu0 %v5450
  %6178 = vmatprep.subr.bf16.mxu0 0
  %6179 = vmatpush1.bf16.msra.mxu0 %v5451
  %6180 = vmatprep.subr.bf16.mxu0 0
  %6181 = vmatpush1.bf16.msra.mxu0 %v5452
  %6182 = vmatprep.subr.bf16.mxu0 0
  %6183 = vmatpush1.bf16.msra.mxu0 %v5453
  %6184 = vmatprep.subr.bf16.mxu0 0
  %6185 = vmatpush1.bf16.msra.mxu0 %v5454
  %6186 = vmatprep.subr.bf16.mxu0 0
  %6187 = vmatpush1.bf16.msra.mxu0 %v5455
  %6188 = vmatprep.mubr.bf16.mxu0 %v5625
  %6189 = vmatmul.mubr.bf16.gmra.mrb[0].mxu0 %v5624
  %v6190 = vpop.f32.mrb[0].mxu0
  %v6191 = vadd.f32 %v6150, %v6190
  %v6192 = vpop.f32.mrb[0].mxu0
  %v6193 = vpop.f32.mrb[0].mxu0
  %v6194 = vadd.f32 %v6153, %v6193
  %v6195 = vpop.f32.mrb[0].mxu0
  %6196 = vdwg.mxu0
  %6197 = vmatprep.subr.bf16.mxu0 0
  %6198 = vmatpush1.bf16.msra.mxu0 %v5456
  %6199 = vmatprep.subr.bf16.mxu0 0
  %6200 = vmatpush1.bf16.msra.mxu0 %v5457
  %6201 = vmatprep.subr.bf16.mxu0 0
  %6202 = vmatpush1.bf16.msra.mxu0 %v5458
  %6203 = vmatprep.subr.bf16.mxu0 0
  %6204 = vmatpush1.bf16.msra.mxu0 %v5459
  %6205 = vmatprep.subr.bf16.mxu0 0
  %6206 = vmatpush1.bf16.msra.mxu0 %v5460
  %6207 = vmatprep.subr.bf16.mxu0 0
  %6208 = vmatpush1.bf16.msra.mxu0 %v5461
  %6209 = vmatprep.subr.bf16.mxu0 0
  %6210 = vmatpush1.bf16.msra.mxu0 %v5462
  %6211 = vmatprep.subr.bf16.mxu0 0
  %6212 = vmatpush1.bf16.msra.mxu0 %v5463
  %6213 = vmatprep.subr.bf16.mxu0 0
  %6214 = vmatpush1.bf16.msra.mxu0 %v5464
  %6215 = vmatprep.subr.bf16.mxu0 0
  %6216 = vmatpush1.bf16.msra.mxu0 %v5465
  %6217 = vmatprep.subr.bf16.mxu0 0
  %6218 = vmatpush1.bf16.msra.mxu0 %v5466
  %6219 = vmatprep.subr.bf16.mxu0 0
  %6220 = vmatpush1.bf16.msra.mxu0 %v5467
  %6221 = vmatprep.subr.bf16.mxu0 0
  %6222 = vmatpush1.bf16.msra.mxu0 %v5468
  %6223 = vmatprep.subr.bf16.mxu0 0
  %6224 = vmatpush1.bf16.msra.mxu0 %v5469
  %6225 = vmatprep.subr.bf16.mxu0 0
  %6226 = vmatpush1.bf16.msra.mxu0 %v5470
  %6227 = vmatprep.subr.bf16.mxu0 0
  %6228 = vmatpush1.bf16.msra.mxu0 %v5471
  %6229 = vmatprep.mubr.bf16.mxu0 %v5627
  %6230 = vmatmul.mubr.bf16.gmra.mrb[0].mxu0 %v5626
  %v6231 = vpop.f32.mrb[0].mxu0
  %v6232 = vadd.f32 %v6191, %v6231
  %v6233 = vpop.f32.mrb[0].mxu0
  %v6234 = vpop.f32.mrb[0].mxu0
  %v6235 = vadd.f32 %v6194, %v6234
  %v6236 = vpop.f32.mrb[0].mxu0
  %6237 = vdwg.mxu0
  %6238 = vmatprep.subr.bf16.mxu0 0
  %6239 = vmatpush1.bf16.msra.mxu0 %v5472
  %6240 = vmatprep.subr.bf16.mxu0 0
  %6241 = vmatpush1.bf16.msra.mxu0 %v5473
  %6242 = vmatprep.subr.bf16.mxu0 0
  %6243 = vmatpush1.bf16.msra.mxu0 %v5474
  %6244 = vmatprep.subr.bf16.mxu0 0
  %6245 = vmatpush1.bf16.msra.mxu0 %v5475
  %6246 = vmatprep.subr.bf16.mxu0 0
  %6247 = vmatpush1.bf16.msra.mxu0 %v5476
  %6248 = vmatprep.subr.bf16.mxu0 0
  %6249 = vmatpush1.bf16.msra.mxu0 %v5477
  %6250 = vmatprep.subr.bf16.mxu0 0
  %6251 = vmatpush1.bf16.msra.mxu0 %v5478
  %6252 = vmatprep.subr.bf16.mxu0 0
  %6253 = vmatpush1.bf16.msra.mxu0 %v5479
  %6254 = vmatprep.subr.bf16.mxu0 0
  %6255 = vmatpush1.bf16.msra.mxu0 %v5480
  %6256 = vmatprep.subr.bf16.mxu0 0
  %6257 = vmatpush1.bf16.msra.mxu0 %v5481
  %6258 = vmatprep.subr.bf16.mxu0 0
  %6259 = vmatpush1.bf16.msra.mxu0 %v5482
  %6260 = vmatprep.subr.bf16.mxu0 0
  %6261 = vmatpush1.bf16.msra.mxu0 %v5483
  %6262 = vmatprep.subr.bf16.mxu0 0
  %6263 = vmatpush1.bf16.msra.mxu0 %v5484
  %6264 = vmatprep.subr.bf16.mxu0 0
  %6265 = vmatpush1.bf16.msra.mxu0 %v5485
  %6266 = vmatprep.subr.bf16.mxu0 0
  %6267 = vmatpush1.bf16.msra.mxu0 %v5486
  %6268 = vmatprep.subr.bf16.mxu0 0
  %6269 = vmatpush1.bf16.msra.mxu0 %v5487
  %6270 = vmatprep.mubr.bf16.mxu0 %v5629
  %6271 = vmatmul.mubr.bf16.gmra.mrb[0].mxu0 %v5628
  %v6272 = vpop.f32.mrb[0].mxu0
  %v6273 = vadd.f32 %v6232, %v6272
  %v6274 = vpop.f32.mrb[0].mxu0
  %v6275 = vpop.f32.mrb[0].mxu0
  %v6276 = vadd.f32 %v6235, %v6275
  %v6277 = vpop.f32.mrb[0].mxu0
  %6278 = vdwg.mxu0
  %6279 = vmatprep.subr.bf16.mxu0 0
  %6280 = vmatpush1.bf16.msra.mxu0 %v5488
  %6281 = vmatprep.subr.bf16.mxu0 0
  %6282 = vmatpush1.bf16.msra.mxu0 %v5489
  %6283 = vmatprep.subr.bf16.mxu0 0
  %6284 = vmatpush1.bf16.msra.mxu0 %v5490
  %6285 = vmatprep.subr.bf16.mxu0 0
  %6286 = vmatpush1.bf16.msra.mxu0 %v5491
  %6287 = vmatprep.subr.bf16.mxu0 0
  %6288 = vmatpush1.bf16.msra.mxu0 %v5492
  %6289 = vmatprep.subr.bf16.mxu0 0
  %6290 = vmatpush1.bf16.msra.mxu0 %v5493
  %6291 = vmatprep.subr.bf16.mxu0 0
  %6292 = vmatpush1.bf16.msra.mxu0 %v5494
  %6293 = vmatprep.subr.bf16.mxu0 0
  %6294 = vmatpush1.bf16.msra.mxu0 %v5495
  %6295 = vmatprep.subr.bf16.mxu0 0
  %6296 = vmatpush1.bf16.msra.mxu0 %v5496
  %6297 = vmatprep.subr.bf16.mxu0 0
  %6298 = vmatpush1.bf16.msra.mxu0 %v5497
  %6299 = vmatprep.subr.bf16.mxu0 0
  %6300 = vmatpush1.bf16.msra.mxu0 %v5498
  %6301 = vmatprep.subr.bf16.mxu0 0
  %6302 = vmatpush1.bf16.msra.mxu0 %v5499
  %6303 = vmatprep.subr.bf16.mxu0 0
  %6304 = vmatpush1.bf16.msra.mxu0 %v5500
  %6305 = vmatprep.subr.bf16.mxu0 0
  %6306 = vmatpush1.bf16.msra.mxu0 %v5501
  %6307 = vmatprep.subr.bf16.mxu0 0
  %6308 = vmatpush1.bf16.msra.mxu0 %v5502
  %6309 = vmatprep.subr.bf16.mxu0 0
  %6310 = vmatpush1.bf16.msra.mxu0 %v5503
  %6311 = vmatprep.mubr.bf16.mxu0 %v5631
  %6312 = vmatmul.mubr.bf16.gmra.mrb[0].mxu0 %v5630
  %v6313 = vpop.f32.mrb[0].mxu0
  %v6314 = vadd.f32 %v6273, %v6313
  %v6315 = vpop.f32.mrb[0].mxu0
  %v6316 = vpop.f32.mrb[0].mxu0
  %v6317 = vadd.f32 %v6276, %v6316
  %v6318 = vpop.f32.mrb[0].mxu0
  %6319 = vdwg.mxu0
  %v6320 = vpack.c.bf16 %v6317, %v6314
  %v6321 = vld [vmem:[%s4] sm:$0xf]
  %v6322 = vld [vmem:[%s4 + $0x4] sm:$0xf]
  %v6323 = vld [vmem:[%s4 + $0x8] sm:$0xf]
  %v6324 = vld [vmem:[%s4 + $0xc] sm:$0xf]
  %v6325 = vld [vmem:[%s4 + $0x10] sm:$0xf]
  %v6326 = vld [vmem:[%s4 + $0x14] sm:$0xf]
  %v6327 = vld [vmem:[%s4 + $0x18] sm:$0xf]
  %v6328 = vld [vmem:[%s4 + $0x1c] sm:$0xf]
  %v6329 = vld [vmem:[%s5] sm:$0x1]
  %v6331 = vlaneseq
  %v6332 = vshrl.u32 %v6331, 7
  %v6333 = vsub.s32 0, %v6332
  %v6334 = vrot.slane %v6329, %v6333
  %v6344 = vunpack.c.l.b16 %v6321
  %v6345 = vunpack.c.l.b16 %v6322
  %v6346 = vunpack.c.l.b16 %v6323
  %v6347 = vunpack.c.l.b16 %v6324
  %v6348 = vunpack.c.l.b16 %v6325
  %v6349 = vunpack.c.l.b16 %v6326
  %v6350 = vunpack.c.l.b16 %v6327
  %v6351 = vunpack.c.l.b16 %v6328
  %v6352 = vpack.c.b16 %v6345, %v6344
  %v6353 = vpack.c.b16 %v6347, %v6346
  %v6354 = vpack.c.b16 %v6349, %v6348
  %v6355 = vpack.c.b16 %v6351, %v6350
  %vm6360 = vcmask 523264
  %v6362 = vsel %vm6360, %v6320, 0
  %6364 = vmatprep.subr.bf16.mxu0 0
  %6365 = vmatpush1.bf16.msra.mxu0 %v6352
  %6366 = vmatprep.subr.bf16.mxu0 0
  %6367 = vmatpush1.bf16.msra.mxu0 %v6353
  %6368 = vmatprep.subr.bf16.mxu0 0
  %6369 = vmatpush1.bf16.msra.mxu0 %v6354
  %6370 = vmatprep.subr.bf16.mxu0 0
  %6371 = vmatpush1.bf16.msra.mxu0 %v6355
  %6372 = vmatprep.subr.bf16.mxu0 0
  %6373 = vmatpush1.bf16.msra.mxu0 0
  %6374 = vmatprep.subr.bf16.mxu0 0
  %6375 = vmatpush1.bf16.msra.mxu0 0
  %6376 = vmatprep.subr.bf16.mxu0 0
  %6377 = vmatpush1.bf16.msra.mxu0 0
  %6378 = vmatprep.subr.bf16.mxu0 0
  %6379 = vmatpush1.bf16.msra.mxu0 0
  %6380 = vmatprep.subr.bf16.mxu0 0
  %6381 = vmatpush1.bf16.msra.mxu0 0
  %6382 = vmatprep.subr.bf16.mxu0 0
  %6383 = vmatpush1.bf16.msra.mxu0 0
  %6384 = vmatprep.subr.bf16.mxu0 0
  %6385 = vmatpush1.bf16.msra.mxu0 0
  %6386 = vmatprep.subr.bf16.mxu0 0
  %6387 = vmatpush1.bf16.msra.mxu0 0
  %6388 = vmatprep.subr.bf16.mxu0 0
  %6389 = vmatpush1.bf16.msra.mxu0 0
  %6390 = vmatprep.subr.bf16.mxu0 0
  %6391 = vmatpush1.bf16.msra.mxu0 0
  %6392 = vmatprep.subr.bf16.mxu0 0
  %6393 = vmatpush1.bf16.msra.mxu0 0
  %6394 = vmatprep.subr.bf16.mxu0 0
  %6395 = vmatpush1.bf16.msra.mxu0 0
  %6396 = vmatprep.mubr.bf16.mxu0 0
  %6397 = vmatmul.mubr.bf16.gmra.mrb[0].mxu0 %v6362
  %v6398 = vpop.f32.mrb[0].mxu0
  %v6399 = vadd.f32 %v6334, %v6398
  %v6400 = vpop.f32.mrb[0].mxu0
  %v6401 = vpop.f32.mrb[0].mxu0
  %v6402 = vadd.f32 %v6334, %v6401
  %v6403 = vpop.f32.mrb[0].mxu0
  %6404 = vdwg.mxu0
  %v6405 = vpack.c.bf16 %v6402, %v6399
  %v6406 = vld [vmem:[%s6] sm:$0xf]
  %v6407 = vld [vmem:[%s6 + $0x4] sm:$0xf]
  %v6408 = vld [vmem:[%s6 + $0x8] sm:$0xf]
  %v6409 = vld [vmem:[%s6 + $0xc] sm:$0xf]
  %v6410 = vld [vmem:[%s8] sm:$0x1]
  %v6412 = vlaneseq
  %v6413 = vshrl.u32 %v6412, 7
  %v6414 = vsub.s32 0, %v6413
  %v6415 = vrot.slane %v6410, %v6414
  %v6421 = vunpack.c.l.b16 %v6406
  %v6422 = vunpack.c.l.b16 %v6407
  %v6423 = vunpack.c.l.b16 %v6408
  %v6424 = vunpack.c.l.b16 %v6409
  %v6425 = vpack.c.b16 %v6422, %v6421
  %v6426 = vpack.c.b16 %v6424, %v6423
  %v6430 = vsel %vm1854, %v6405, 0
  %6432 = vmatprep.subr.bf16.mxu0 0
  %6433 = vmatpush1.bf16.msra.mxu0 %v6425
  %6434 = vmatprep.subr.bf16.mxu0 0
  %6435 = vmatpush1.bf16.msra.mxu0 %v6426
  %6436 = vmatprep.subr.bf16.mxu0 0
  %6437 = vmatpush1.bf16.msra.mxu0 0
  %6438 = vmatprep.subr.bf16.mxu0 0
  %6439 = vmatpush1.bf16.msra.mxu0 0
  %6440 = vmatprep.subr.bf16.mxu0 0
  %6441 = vmatpush1.bf16.msra.mxu0 0
  %6442 = vmatprep.subr.bf16.mxu0 0
  %6443 = vmatpush1.bf16.msra.mxu0 0
  %6444 = vmatprep.subr.bf16.mxu0 0
  %6445 = vmatpush1.bf16.msra.mxu0 0
  %6446 = vmatprep.subr.bf16.mxu0 0
  %6447 = vmatpush1.bf16.msra.mxu0 0
  %6448 = vmatprep.subr.bf16.mxu0 0
  %6449 = vmatpush1.bf16.msra.mxu0 0
  %6450 = vmatprep.subr.bf16.mxu0 0
  %6451 = vmatpush1.bf16.msra.mxu0 0
  %6452 = vmatprep.subr.bf16.mxu0 0
  %6453 = vmatpush1.bf16.msra.mxu0 0
  %6454 = vmatprep.subr.bf16.mxu0 0
  %6455 = vmatpush1.bf16.msra.mxu0 0
  %6456 = vmatprep.subr.bf16.mxu0 0
  %6457 = vmatpush1.bf16.msra.mxu0 0
  %6458 = vmatprep.subr.bf16.mxu0 0
  %6459 = vmatpush1.bf16.msra.mxu0 0
  %6460 = vmatprep.subr.bf16.mxu0 0
  %6461 = vmatpush1.bf16.msra.mxu0 0
  %6462 = vmatprep.subr.bf16.mxu0 0
  %6463 = vmatpush1.bf16.msra.mxu0 0
  %6464 = vmatprep.mubr.bf16.mxu0 0
  %6465 = vmatmul.mubr.bf16.gmra.mrb[0].mxu0 %v6430
  %v6466 = vpop.f32.mrb[0].mxu0
  %v6467 = vadd.f32 %v6415, %v6466
  %v6468 = vpop.f32.mrb[0].mxu0
  %v6469 = vpop.f32.mrb[0].mxu0
  %v6470 = vadd.f32 %v6415, %v6469
  %v6471 = vpop.f32.mrb[0].mxu0
  %6472 = vdwg.mxu0
  %v6473 = vlaneseq
  %v6474 = vand.u32 %v6473, 127
  %vm6475 = vcmp.ge.s32.totalorder %v6474, 64
  %vm6476 = vcmp.lt.s32.totalorder %v6474, 96
  %vm6477 = vmand %vm6475, %vm6476
  %v6478 = vtanh.pop %v6467
  %v6479 = vxor.u32 %v6467, 2147483648
  %v6480 = vmul.f32 %v6479, 1.442695
  %v6481 = vpow.pop %v6480
  %v6482 = vadd.f32 %v6481, 1.0
  %v6483 = vrcp.pop %v6482
  %v6484 = vmul.f32 1.0, %v6483
  %v6485 = vsel %vm6477, %v6478, %v6484
  %v6486 = vmul.f32 %v6485, 0.0
  %6488 = vrot.lane.b32.xlu0 %v6485, 64
  %v6489 = vpop.permute.xlu0 %6488
  %v6491 = vmul.f32 %v6485, %v6489
  %6493 = vrot.lane.b32.xlu0 %v6491, 32
  %v6494 = vpop.permute.xlu0 %6493
  %v6496 = vadd.f32 %v6486, %v6494
  %v6497 = vtanh.pop %v6496
  %6499 = vrot.lane.b32.xlu0 %v6497, 64
  %v6500 = vpop.permute.xlu0 %6499
  %v6502 = vmul.f32 %v6485, %v6500
  %v6503 = vpack.c.bf16 %v6502, %v6502
  %v6504 = vld [vmem:[%s7] sm:$0xf]
  %v6505 = vld [vmem:[%s7 + $0x4] sm:$0xf]
  %v6506 = vld [vmem:[%s7 + $0x8] sm:$0xf]
  %v6507 = vld [vmem:[%s7 + $0xc] sm:$0xf]
  %6509 = vrot.lane.b32.xlu0 %v6503, 32
  %v6510 = vpop.permute.xlu0 %6509
  %v6515 = vunpack.c.l.b16 %v6504
  %v6516 = vunpack.c.l.b16 %v6505
  %v6517 = vunpack.c.l.b16 %v6506
  %v6518 = vunpack.c.l.b16 %v6507
  %v6519 = vpack.c.b16 %v6516, %v6515
  %v6520 = vpack.c.b16 %v6518, %v6517
  %v6524 = vsel %vm1854, %v6510, 0
  %6526 = vmatprep.subr.bf16.mxu0 0
  %6527 = vmatpush1.bf16.msra.mxu0 %v6519
  %6528 = vmatprep.subr.bf16.mxu0 0
  %6529 = vmatpush1.bf16.msra.mxu0 %v6520
  %6530 = vmatprep.subr.bf16.mxu0 0
  %6531 = vmatpush1.bf16.msra.mxu0 0
  %6532 = vmatprep.subr.bf16.mxu0 0
  %6533 = vmatpush1.bf16.msra.mxu0 0
  %6534 = vmatprep.subr.bf16.mxu0 0
  %6535 = vmatpush1.bf16.msra.mxu0 0
  %6536 = vmatprep.subr.bf16.mxu0 0
  %6537 = vmatpush1.bf16.msra.mxu0 0
  %6538 = vmatprep.subr.bf16.mxu0 0
  %6539 = vmatpush1.bf16.msra.mxu0 0
  %6540 = vmatprep.subr.bf16.mxu0 0
  %6541 = vmatpush1.bf16.msra.mxu0 0
  %6542 = vmatprep.subr.bf16.mxu0 0
  %6543 = vmatpush1.bf16.msra.mxu0 0
  %6544 = vmatprep.subr.bf16.mxu0 0
  %6545 = vmatpush1.bf16.msra.mxu0 0
  %6546 = vmatprep.subr.bf16.mxu0 0
  %6547 = vmatpush1.bf16.msra.mxu0 0
  %6548 = vmatprep.subr.bf16.mxu0 0
  %6549 = vmatpush1.bf16.msra.mxu0 0
  %6550 = vmatprep.subr.bf16.mxu0 0
  %6551 = vmatpush1.bf16.msra.mxu0 0
  %6552 = vmatprep.subr.bf16.mxu0 0
  %6553 = vmatpush1.bf16.msra.mxu0 0
  %6554 = vmatprep.subr.bf16.mxu0 0
  %6555 = vmatpush1.bf16.msra.mxu0 0
  %6556 = vmatprep.subr.bf16.mxu0 0
  %6557 = vmatpush1.bf16.msra.mxu0 0
  %6558 = vmatprep.mubr.bf16.mxu0 0
  %6559 = vmatmul.mubr.bf16.gmra.mrb[0].mxu0 %v6524
  %v6560 = vpop.f32.mrb[0].mxu0
  %v6561 = vadd.f32 0.0, %v6560
  %v6562 = vpop.f32.mrb[0].mxu0
  %v6563 = vpop.f32.mrb[0].mxu0
  %v6564 = vpop.f32.mrb[0].mxu0
  %6565 = vdwg.mxu0
  %v6566 = vadd.f32 %v6470, %v6561
  %v6567 = vtanh.pop %v6566
  %v6568 = vxor.u32 %v6566, 2147483648
  %v6569 = vmul.f32 %v6568, 1.442695
  %v6570 = vpow.pop %v6569
  %v6571 = vadd.f32 %v6570, 1.0
  %v6572 = vrcp.pop %v6571
  %v6573 = vmul.f32 1.0, %v6572
  %v6574 = vsel %vm6477, %v6567, %v6573
  %v6575 = vmul.f32 %v6574, %v6496
  %6577 = vrot.lane.b32.xlu0 %v6574, 64
  %v6578 = vpop.permute.xlu0 %6577
  %v6580 = vmul.f32 %v6574, %v6578
  %6582 = vrot.lane.b32.xlu0 %v6580, 32
  %v6583 = vpop.permute.xlu0 %6582
  %v6585 = vadd.f32 %v6575, %v6583
  %v6586 = vtanh.pop %v6585
  %6588 = vrot.lane.b32.xlu0 %v6586, 64
  %v6589 = vpop.permute.xlu0 %6588
  %v6591 = vmul.f32 %v6574, %v6589
  %v6592 = vpack.c.bf16 %v6591, %v6502
  %v6593 = vld [vmem:[%s9] sm:$0xf]
  %v6594 = vld [vmem:[%s9 + $0x4] sm:$0xf]
  %v6595 = vld [vmem:[%s9 + $0x8] sm:$0xf]
  %v6596 = vld [vmem:[%s9 + $0xc] sm:$0xf]
  %v6597 = vld [vmem:[%s10] sm:$0x1]
  %v6599 = vlaneseq
  %v6600 = vshrl.u32 %v6599, 7
  %v6601 = vsub.s32 0, %v6600
  %v6602 = vrot.slane %v6597, %v6601
  %6605 = vrot.lane.b32.xlu0 %v6592, 32
  %v6606 = vpop.permute.xlu0 %6605
  %v6611 = vunpack.c.l.b16 %v6593
  %v6612 = vunpack.c.l.b16 %v6594
  %v6613 = vunpack.c.l.b16 %v6595
  %v6614 = vunpack.c.l.b16 %v6596
  %v6615 = vpack.c.b16 %v6612, %v6611
  %v6616 = vpack.c.b16 %v6614, %v6613
  %v6620 = vsel %vm1854, %v6606, 0
  %6622 = vmatprep.subr.bf16.mxu0 0
  %6623 = vmatpush1.bf16.msra.mxu0 %v6615
  %6624 = vmatprep.subr.bf16.mxu0 0
  %6625 = vmatpush1.bf16.msra.mxu0 %v6616
  %6626 = vmatprep.subr.bf16.mxu0 0
  %6627 = vmatpush1.bf16.msra.mxu0 0
  %6628 = vmatprep.subr.bf16.mxu0 0
  %6629 = vmatpush1.bf16.msra.mxu0 0
  %6630 = vmatprep.subr.bf16.mxu0 0
  %6631 = vmatpush1.bf16.msra.mxu0 0
  %6632 = vmatprep.subr.bf16.mxu0 0
  %6633 = vmatpush1.bf16.msra.mxu0 0
  %6634 = vmatprep.subr.bf16.mxu0 0
  %6635 = vmatpush1.bf16.msra.mxu0 0
  %6636 = vmatprep.subr.bf16.mxu0 0
  %6637 = vmatpush1.bf16.msra.mxu0 0
  %6638 = vmatprep.subr.bf16.mxu0 0
  %6639 = vmatpush1.bf16.msra.mxu0 0
  %6640 = vmatprep.subr.bf16.mxu0 0
  %6641 = vmatpush1.bf16.msra.mxu0 0
  %6642 = vmatprep.subr.bf16.mxu0 0
  %6643 = vmatpush1.bf16.msra.mxu0 0
  %6644 = vmatprep.subr.bf16.mxu0 0
  %6645 = vmatpush1.bf16.msra.mxu0 0
  %6646 = vmatprep.subr.bf16.mxu0 0
  %6647 = vmatpush1.bf16.msra.mxu0 0
  %6648 = vmatprep.subr.bf16.mxu0 0
  %6649 = vmatpush1.bf16.msra.mxu0 0
  %6650 = vmatprep.subr.bf16.mxu0 0
  %6651 = vmatpush1.bf16.msra.mxu0 0
  %6652 = vmatprep.subr.bf16.mxu0 0
  %6653 = vmatpush1.bf16.msra.mxu0 0
  %6654 = vmatprep.mubr.bf16.mxu0 0
  %6655 = vmatmul.mubr.bf16.gmra.mrb[0].mxu0 %v6620
  %v6656 = vpop.f32.mrb[0].mxu0
  %v6657 = vadd.f32 %v6602, %v6656
  %v6658 = vpop.f32.mrb[0].mxu0
  %v6659 = vpop.f32.mrb[0].mxu0
  %v6660 = vadd.f32 %v6602, %v6659
  %v6661 = vpop.f32.mrb[0].mxu0
  %6662 = vdwg.mxu0
  %vm6663 = vcmask 64512
  %6664 = vst.msk [vmem:[%s11] sm:$0xff] %vm6663, %v6657
  %6665 = vst.msk [vmem:[%s11 + $0x8] sm:$0xff] %vm6663, %v6660
  // Predicated region
  $region46: #{clstm_forward.1} parent=0 // pred_check
    _
  $region47: #{clstm_forward.1} parent=0 // pred_check_branch
    %6667 = sbr.rel (0) target = $region49
  $region48: #{clstm_forward.1} parent=0 // pred_region
    _
  $region49: #{clstm_forward.1} parent=0 // pred_fallthru
    _
  // Predicated region
  $region50: #{clstm_forward.1} parent=0 // pred_check
    _
  $region51: #{clstm_forward.1} parent=0 // pred_check_branch
    %6669 = sbr.rel (0) target = $region53
  $region52: #{clstm_forward.1} parent=0 // pred_region
    _
  $region53: #{clstm_forward.1} parent=0 // pred_fallthru
    _

</llo_original>
